<compile_context>
chip_gen: v5e
topology: v5e:2x2
jax: 0.10.0
libtpu: 0.0.40
codegen_flags: <defaults>
</compile_context>

<pallas_src>
import math
from functools import partial

import jax
import jax.numpy as jnp
from jax.experimental import pallas as pl
from jax.experimental.pallas import tpu as pltpu

NEG_INF = -1e30  # additive mask value (exp underflows to exactly 0, no NaNs)


# ------------------------------ small helpers ------------------------------

if hasattr(pl, "reciprocal"):
    def _recip(x):
        return pl.reciprocal(x, approx=True)        # EUP slot -> effectively free
else:  # very old jax fallback
    def _recip(x):
        return 1.0 / x


def _compiler_params(dimension_semantics):
    return pltpu.CompilerParams(
        dimension_semantics=dimension_semantics,
        vmem_limit_bytes=48 * 1024 * 1024,
    )


def _const_index_map(nd):
    def im(*_):
        return (0,) * nd
    return im


def _const_spec(x):
    """Whole-array block, same block at every grid step (fetched once, resident)."""
    return pl.BlockSpec(x.shape, _const_index_map(x.ndim))


# ----------------------------- in-kernel math ------------------------------

def _layernorm(x, gamma, beta, eps=1e-5):
    mu = jnp.mean(x, axis=-1, keepdims=True)
    var = jnp.mean((x - mu) ** 2, axis=-1, keepdims=True)
    return (x - mu) * jax.lax.rsqrt(var + eps) * gamma + beta


def _head_proj(x_h, w_h, b_h):
    """x_h: (H, L, D) bf16, w_h: (H, D, hd) bf16, b_h: (H, 1, hd) f32 -> (H, L, hd) f32.

    Per-head projection as ONE head-batched 3-D matmul (leading batch dim) so no
    lane slicing / relayout is ever needed on the activations."""
    y = jnp.einsum('hld,hdf->hlf', x_h, w_h, preferred_element_type=jnp.float32)
    return y + b_h


def _attend(q_h, k_h, v_h, mask):
    """q_h: (H, Lq, hd); k_h/v_h: (H, Lk, hd); mask: (Lq, Lk) additive. -> (H, Lq, hd) f32."""
    hd = q_h.shape[-1]
    s = jnp.einsum('hqf,hkf->hqk',
                   q_h.astype(jnp.bfloat16), k_h.astype(jnp.bfloat16),
                   preferred_element_type=jnp.float32)
    s = s * (1.0 / math.sqrt(hd)) + mask[None, :, :]
    s = s - jnp.max(s, axis=-1, keepdims=True)
    p = jnp.exp(s)
    p = p * _recip(jnp.sum(p, axis=-1, keepdims=True))
    return jnp.einsum('hqk,hkf->hqf',
                      p.astype(jnp.bfloat16), v_h.astype(jnp.bfloat16),
                      preferred_element_type=jnp.float32)


def _head_out_proj(o_h, wo_h, bo):
    """Fold the head-concat into the output projection: out = sum_h o_h @ Wo[h] + b."""
    y = jnp.einsum('hlf,hfd->hld', o_h.astype(jnp.bfloat16), wo_h,
                   preferred_element_type=jnp.float32)
    return jnp.sum(y, axis=0) + bo


# ----------------------- kernel 1: audio memory prep -----------------------

def prep_kernel(audio_ref, onehot_ref,
                afm_w, afm_b, ca_wk, ca_bk, ca_wv, ca_bv, obj_w,
                kmem_ref, vmem_ref, obj_ref):
    H = ca_wk.shape[0]
    S = audio_ref.shape[1]
    D = afm_w.shape[1]
    # hidden_states = audio_feature_map(wav2vec(...).last_hidden_state)
    hs = jnp.dot(audio_ref[0].astype(jnp.bfloat16), afm_w[...],
                 preferred_element_type=jnp.float32) + afm_b[...]
    hs_h = jnp.broadcast_to(hs.astype(jnp.bfloat16)[None], (H, S, D))
    # cross-attention K/V of the static memory, cached head-major once for all steps
    kmem_ref[0] = _head_proj(hs_h, ca_wk[...], ca_bk[...]).astype(kmem_ref.dtype)
    vmem_ref[0] = _head_proj(hs_h, ca_wv[...], ca_bv[...]).astype(vmem_ref.dtype)
    # obj_vector(one_hot)  (bias=False)
    obj_ref[0] = jnp.dot(onehot_ref[0].astype(jnp.bfloat16), obj_w[...],
                         preferred_element_type=jnp.float32)


# --------------- kernel 2: fused autoregressive decoder loop ---------------

def decode_step_kernel(pe_ref, obj_ref, kmem_ref, vmem_ref, cmask_ref, mmask_ref,
                       sa_wq, sa_wk, sa_wv, sa_bq, sa_bk, sa_bv, sa_wo, sa_bo,
                       ca_wq, ca_bq, ca_wo, ca_bo,
                       ff_w1, ff_b1, ff_w2, ff_b2,
                       n1_g, n1_b, n2_g, n2_b, n3_g, n3_b,
                       gen_ref,
                       emb_sc):
    """Grid = (batch, decode step).  emb_sc (T, D) is torch `vertice_emb` (row 0 =
    obj embedding, row r>=1 = token appended after step r-1); shapes are static."""
    step = pl.program_id(1)
    nsteps = pl.num_programs(1)
    T, D = emb_sc.shape
    H = sa_wq.shape[0]

    # one-time (per batch element) init: all-zero prefix buffer
    @pl.when(step == 0)
    def _init():
        emb_sc[...] = jnp.zeros_like(emb_sc)

    # PPE quirk of the torch module (batch_first tensor + pe[:x.size(0)]):
    # every frame of batch element b receives pe[b, 0, :].
    x = emb_sc[...] + pe_ref[0]                                  # (T, D)

    # Seed row 0 with the obj embedding AFTER the step-0 read, so the step-0
    # decoder input is the zero start token (exactly the torch loop).
    @pl.when(step == 0)
    def _seed():
        emb_sc[0:1, :] = obj_ref[0]

    xb_h = jnp.broadcast_to(x.astype(jnp.bfloat16)[None], (H, T, D))

    # ---- self attention (OpacusDecoderLayer, post-norm) ----
    q_h = _head_proj(xb_h, sa_wq[...], sa_bq[...])
    k_h = _head_proj(xb_h, sa_wk[...], sa_bk[...])
    v_h = _head_proj(xb_h, sa_wv[...], sa_bv[...])
    sa = _head_out_proj(_attend(q_h, k_h, v_h, cmask_ref[...]), sa_wo[...], sa_bo[...])
    x = _layernorm(x + sa, n1_g[...], n1_b[...])

    # ---- cross attention against the cached head-major audio memory ----
    x1_h = jnp.broadcast_to(x.astype(jnp.bfloat16)[None], (H, T, D))
    qc_h = _head_proj(x1_h, ca_wq[...], ca_bq[...])
    ca = _head_out_proj(_attend(qc_h, kmem_ref[0], vmem_ref[0], mmask_ref[...]),
                        ca_wo[...], ca_bo[...])
    x = _layernorm(x + ca, n2_g[...], n2_b[...])

    # ---- feed forward (relu) ----
    h = jnp.dot(x.astype(jnp.bfloat16), ff_w1[...],
                preferred_element_type=jnp.float32) + ff_b1[...]
    h = jnp.maximum(h, 0.0)
    ff = jnp.dot(h.astype(jnp.bfloat16), ff_w2[...],
                 preferred_element_type=jnp.float32) + ff_b2[...]
    gen = _layernorm(x + ff, n3_g[...], n3_b[...])               # gen_viseme_feat (T, D)

    # cheap (T,D) store every step; the final step's write is the kernel output
    gen_ref[0] = gen

    # vertice_emb <- cat(vertice_emb, gen[:, step, :]) : single-row dynamic copy
    @pl.when(step + 1 < nsteps)
    def _append():
        emb_sc[pl.ds(step + 1, 1), :] = gen_ref[0, pl.ds(step, 1), :]


# ---------------------- kernel 3: motion_decoder head ----------------------

def motion_decoder_kernel(gen_ref, obj_ref, tmpl_ref, vm_w, vm_b, out_ref):
    # vertice_map_r (num_dec_layers=1, style_concat=False):
    #   out = Linear(gen_viseme_feat + style_emb) + template
    y = gen_ref[0] + obj_ref[0]
    out = jnp.dot(y.astype(jnp.bfloat16), vm_w[...],
                  preferred_element_type=jnp.float32) + vm_b[...]
    out_ref[0] = out + tmpl_ref[0]


# ------------------------------ host wrapper -------------------------------

def _split_heads_w(w, nhead):
    """(D_in, D_out) -> (H, D_in, hd); host-side layout only."""
    d_in, d_out = w.shape
    hd = d_out // nhead
    return jnp.transpose(w.reshape(d_in, nhead, hd), (1, 0, 2)).astype(jnp.bfloat16)


def _split_heads_b(b, nhead):
    """(1, D_out) -> (H, 1, hd)."""
    d_out = b.shape[-1]
    hd = d_out // nhead
    return b.reshape(nhead, 1, hd).astype(jnp.float32)


def _pick_tile(total, unit=128, max_tile=1024):
    best = unit
    c = unit
    while c <= min(total, max_tile):
        if total % c == 0:
            best = c
        c += unit
    return best


@partial(jax.jit, static_argnames=('dataset', 'nhead'))
def imitator_forward(audio_hidden, template, vertice, one_hot, params,
                     *, dataset='vocaset', nhead=4):
    """Mirrors imitator.forward (teacher_forcing flag unused by the torch code path;
    dropout = identity; external `criterion` replaced by an MSE stand-in)."""
    B, S, _ = audio_hidden.shape
    T = vertice.shape[1]
    D = params['afm_w'].shape[1]
    hd = D // nhead
    V3 = params['vm_w'].shape[1]
    V3p = ((V3 + 127) // 128) * 128
    d = params['dec']
    f32, bf16 = jnp.float32, jnp.bfloat16

    # ----- host-side layout plumbing (no per-step compute hoisted) -----
    pe_b = params['pe'][:B, 0, :][:, None, :].astype(f32)               # (B,1,D) PPE quirk
    one_hot3 = one_hot[:, None, :].astype(f32)                          # (B,1,num_id)

    # additive masks are constants (torch keeps causal_mh_mask as a buffer too)
    rt = jnp.arange(T)[:, None]
    ct = jnp.arange(T)[None, :]
    cmask = jnp.where(ct <= rt, 0.0, NEG_INF).astype(f32)               # casual_mask()
    cs = jnp.arange(S)[None, :]
    if dataset == 'BIWI':
        ok = (cs == 2 * rt) | (cs == 2 * rt + 1)
    else:  # vocaset
        ok = (cs == rt)
    # TODO(synk): BIWI rows with 2*i >= S are fully masked (torch softmax -> NaN);
    # here they fall back to uniform attention.  Irrelevant for vocaset (S == T).
    mmask = jnp.where(ok, 0.0, NEG_INF).astype(f32)                     # enc_dec_mask()

    # per-head weight layout + bf16 cast (MXU-native on v5e/v6e/v7x)
    sa_wq = _split_heads_w(d['sa_wq'], nhead); sa_bq = _split_heads_b(d['sa_bq'], nhead)
    sa_wk = _split_heads_w(d['sa_wk'], nhead); sa_bk = _split_heads_b(d['sa_bk'], nhead)
    sa_wv = _split_heads_w(d['sa_wv'], nhead); sa_bv = _split_heads_b(d['sa_bv'], nhead)
    sa_wo = d['sa_wo'].reshape(nhead, hd, D).astype(bf16)
    sa_bo = d['sa_bo'].astype(f32)
    ca_wq = _split_heads_w(d['ca_wq'], nhead); ca_bq = _split_heads_b(d['ca_bq'], nhead)
    ca_wk = _split_heads_w(d['ca_wk'], nhead); ca_bk = _split_heads_b(d['ca_bk'], nhead)
    ca_wv = _split_heads_w(d['ca_wv'], nhead); ca_bv = _split_heads_b(d['ca_bv'], nhead)
    ca_wo = d['ca_wo'].reshape(nhead, hd, D).astype(bf16)
    ca_bo = d['ca_bo'].astype(f32)
    afm_w = params['afm_w'].astype(bf16); afm_b = params['afm_b'].astype(f32)
    obj_w = params['obj_w'].astype(bf16)
    ff_w1 = d['ff_w1'].astype(bf16); ff_w2 = d['ff_w2'].astype(bf16)
    vm_w = jnp.pad(params['vm_w'], ((0, 0), (0, V3p - V3))).astype(bf16)
    vm_b = jnp.pad(params['vm_b'], ((0, 0), (0, V3p - V3))).astype(f32)
    tmpl = jnp.pad(template, ((0, 0), (0, V3p - V3)))[:, None, :].astype(f32)   # (B,1,V3p)

    # ----- kernel 1: one-time audio-memory / style prep -----
    prep_inputs = (audio_hidden, one_hot3, afm_w, afm_b,
                   ca_wk, ca_bk, ca_wv, ca_bv, obj_w)
    prep_in_specs = [
        pl.BlockSpec((1, S, audio_hidden.shape[-1]), lambda b: (b, 0, 0)),
        pl.BlockSpec((1, 1, one_hot.shape[-1]), lambda b: (b, 0, 0)),
    ] + [_const_spec(a) for a in prep_inputs[2:]]
    kmem, vmem, obj_emb = pl.pallas_call(
        prep_kernel,
        grid_spec=pltpu.PrefetchScalarGridSpec(
            num_scalar_prefetch=0, grid=(B,),
            in_specs=prep_in_specs,
            out_specs=[
                pl.BlockSpec((1, nhead, S, hd), lambda b: (b, 0, 0, 0)),
                pl.BlockSpec((1, nhead, S, hd), lambda b: (b, 0, 0, 0)),
                pl.BlockSpec((1, 1, D), lambda b: (b, 0, 0)),
            ]),
        out_shape=(jax.ShapeDtypeStruct((B, nhead, S, hd), bf16),
                   jax.ShapeDtypeStruct((B, nhead, S, hd), bf16),
                   jax.ShapeDtypeStruct((B, 1, D), f32)),
        compiler_params=_compiler_params(("parallel",)),
    )(*prep_inputs)

    # ----- kernel 2: fused autoregressive transformer-decoder loop -----
    weights = (sa_wq, sa_wk, sa_wv, sa_bq, sa_bk, sa_bv, sa_wo, sa_bo,
               ca_wq, ca_bq, ca_wo, ca_bo,
               ff_w1, d['ff_b1'].astype(f32), ff_w2, d['ff_b2'].astype(f32),
               d['n1_g'].astype(f32), d['n1_b'].astype(f32),
               d['n2_g'].astype(f32), d['n2_b'].astype(f32),
               d['n3_g'].astype(f32), d['n3_b'].astype(f32))
    dec_inputs = (pe_b, obj_emb, kmem, vmem, cmask, mmask) + weights
    dec_in_specs = [
        pl.BlockSpec((1, 1, D), lambda b, t: (b, 0, 0)),             # pe (PPE quirk)
        pl.BlockSpec((1, 1, D), lambda b, t: (b, 0, 0)),             # obj embedding
        pl.BlockSpec((1, nhead, S, hd), lambda b, t: (b, 0, 0, 0)),  # memory K (head-major)
        pl.BlockSpec((1, nhead, S, hd), lambda b, t: (b, 0, 0, 0)),  # memory V (head-major)
        _const_spec(cmask), _const_spec(mmask),
    ] + [_const_spec(w) for w in weights]
    gen = pl.pallas_call(
        decode_step_kernel,
        grid_spec=pltpu.PrefetchScalarGridSpec(
            num_scalar_prefetch=0, grid=(B, T),
            in_specs=dec_in_specs,
            out_specs=pl.BlockSpec((1, T, D), lambda b, t: (b, 0, 0)),
            scratch_shapes=[pltpu.VMEM((T, D), f32)]),               # vertice_emb buffer
        out_shape=jax.ShapeDtypeStruct((B, T, D), f32),
        compiler_params=_compiler_params(("parallel", "arbitrary")),
    )(*dec_inputs)

    # ----- kernel 3: motion_decoder head + template, tiled over padded vertex dim -----
    VN = _pick_tile(V3p)
    out_p = pl.pallas_call(
        motion_decoder_kernel,
        grid_spec=pltpu.PrefetchScalarGridSpec(
            num_scalar_prefetch=0, grid=(B, V3p // VN),
            in_specs=[
                pl.BlockSpec((1, T, D), lambda b, v: (b, 0, 0)),
                pl.BlockSpec((1, 1, D), lambda b, v: (b, 0, 0)),
                pl.BlockSpec((1, 1, VN), lambda b, v: (b, 0, v)),
                pl.BlockSpec((D, VN), lambda b, v: (0, v)),
                pl.BlockSpec((1, VN), lambda b, v: (0, v)),
            ],
            out_specs=pl.BlockSpec((1, T, VN), lambda b, v: (b, 0, v))),
        out_shape=jax.ShapeDtypeStruct((B, T, V3p), f32),
        compiler_params=_compiler_params(("parallel", "parallel")),
    )(gen, obj_emb, tmpl, vm_w, vm_b)

    out = out_p[:, :, :V3]
    # TODO(synk): `criterion` is an external argument in the torch module; MSE stand-in.
    loss = jnp.mean((out - vertice) ** 2)
    return loss, out


# -------------------------------- parameters -------------------------------

def make_pe(d_model, max_len):
    position = jnp.arange(max_len, dtype=jnp.float32)[:, None]
    div_term = jnp.exp(jnp.arange(0, d_model, 2, dtype=jnp.float32) *
                       (-math.log(10000.0) / d_model))
    pe = jnp.zeros((max_len, 1, d_model), jnp.float32)
    pe = pe.at[:, 0, 0::2].set(jnp.sin(position * div_term))
    pe = pe.at[:, 0, 1::2].set(jnp.cos(position * div_term))
    return pe


def init_params(key, D, F, vert_dim, num_id, max_len=600):
    """Deterministic random weights with the shapes implied by imitator.__init__."""
    ks = iter(jax.random.split(key, 24))

    def w(shape, scale=0.05):
        return (scale * jax.random.normal(next(ks), shape)).astype(jnp.float32)

    def zeros(*s):
        return jnp.zeros(s, jnp.float32)

    def ones(*s):
        return jnp.ones(s, jnp.float32)

    dec = {
        'sa_wq': w((D, D)), 'sa_bq': zeros(1, D),
        'sa_wk': w((D, D)), 'sa_bk': zeros(1, D),
        'sa_wv': w((D, D)), 'sa_bv': zeros(1, D),
        'sa_wo': w((D, D)), 'sa_bo': zeros(1, D),
        'ca_wq': w((D, D)), 'ca_bq': zeros(1, D),
        'ca_wk': w((D, D)), 'ca_bk': zeros(1, D),
        'ca_wv': w((D, D)), 'ca_bv': zeros(1, D),
        'ca_wo': w((D, D)), 'ca_bo': zeros(1, D),
        'ff_w1': w((D, F)), 'ff_b1': zeros(1, F),
        'ff_w2': w((F, D)), 'ff_b2': zeros(1, D),
        'n1_g': ones(1, D), 'n1_b': zeros(1, D),
        'n2_g': ones(1, D), 'n2_b': zeros(1, D),
        'n3_g': ones(1, D), 'n3_b': zeros(1, D),
    }
    return {
        'afm_w': w((768, D)), 'afm_b': zeros(1, D),                 # audio_feature_map
        'obj_w': w((num_id, D)),                                    # obj_vector (bias=False)
        # TODO(synk): torch zero-inits this layer; random so output is non-trivial.
        'vm_w': w((D, vert_dim)), 'vm_b': zeros(1, vert_dim),       # motion_decoder final layer
        'pe': make_pe(D, max_len),
        'dec': dec,
    }


# ----------------------------------- main ----------------------------------

if __name__ == "__main__":
    B, S, T = 2, 8, 8          # batch, audio frames, target frames (vocaset: S == T)
    D, F = 64, 128             # feature_dim, dim_feedforward = 2 * feature_dim
    V3, NUM_ID = 96, 8         # vertice_dim, num_identity_classes

    key = jax.random.PRNGKey(0)
    k_in, k_p = jax.random.split(key)
    ka, kt, kv = jax.random.split(k_in, 3)

    # TODO(synk): wav2vec2 audio encoder is an external pretrained model; its
    # last_hidden_state (B, S, 768) is consumed directly.
    audio_hidden = jax.random.normal(ka, (B, S, 768), jnp.float32)
    template = jax.random.normal(kt, (B, V3), jnp.float32)
    vertice = jax.random.normal(kv, (B, T, V3), jnp.float32)
    one_hot = jax.nn.one_hot(jnp.array([0, 3]), NUM_ID, dtype=jnp.float32)

    params = init_params(k_p, D, F, V3, NUM_ID, max_len=600)

    loss, out = imitator_forward(audio_hidden, template, vertice, one_hot, params)
    jax.block_until_ready((loss, out))
    assert out.shape == (B, T, V3) and out.dtype == jnp.float32
    assert loss.shape == ()
    assert bool(jnp.all(jnp.isfinite(out))) and bool(jnp.isfinite(loss))
    print("KERNEL_OK")
</pallas_src>

<mosaic_0001>
module attributes {stable_mosaic.version = 11 : i64} {
  func.func @prep_kernel(%arg0: i32, %arg1: memref<1x8x768xf32, #tpu.memory_space<vmem>>, %arg2: memref<1x1x8xf32, #tpu.memory_space<vmem>>, %arg3: memref<768x64xbf16, #tpu.memory_space<vmem>>, %arg4: memref<1x64xf32, #tpu.memory_space<vmem>>, %arg5: memref<4x64x16xbf16, #tpu.memory_space<vmem>>, %arg6: memref<4x1x16xf32, #tpu.memory_space<vmem>>, %arg7: memref<4x64x16xbf16, #tpu.memory_space<vmem>>, %arg8: memref<4x1x16xf32, #tpu.memory_space<vmem>>, %arg9: memref<8x64xbf16, #tpu.memory_space<vmem>>, %arg10: memref<1x4x8x16xbf16, #tpu.memory_space<vmem>>, %arg11: memref<1x4x8x16xbf16, #tpu.memory_space<vmem>>, %arg12: memref<1x1x64xf32, #tpu.memory_space<vmem>>) attributes {dimension_semantics = [#tpu.dimension_semantics<parallel>], iteration_bounds = array<i64: 2>, scalar_prefetch = 0 : i64, scratch_operands = 0 : i64, tpu.core_type = #tpu.core_type<tc>, window_params = [{transform_indices = @transform_0, window_bounds = array<i64: 1, 8, 768>}, {transform_indices = @transform_1, window_bounds = array<i64: 1, 1, 8>}, {pipeline_mode = #tpu.pipeline_mode<synchronous>, transform_indices = @transform_2, window_bounds = array<i64: 768, 64>}, {pipeline_mode = #tpu.pipeline_mode<synchronous>, transform_indices = @transform_3, window_bounds = array<i64: 1, 64>}, {pipeline_mode = #tpu.pipeline_mode<synchronous>, transform_indices = @transform_4, window_bounds = array<i64: 4, 64, 16>}, {pipeline_mode = #tpu.pipeline_mode<synchronous>, transform_indices = @transform_5, window_bounds = array<i64: 4, 1, 16>}, {pipeline_mode = #tpu.pipeline_mode<synchronous>, transform_indices = @transform_6, window_bounds = array<i64: 4, 64, 16>}, {pipeline_mode = #tpu.pipeline_mode<synchronous>, transform_indices = @transform_7, window_bounds = array<i64: 4, 1, 16>}, {pipeline_mode = #tpu.pipeline_mode<synchronous>, transform_indices = @transform_8, window_bounds = array<i64: 8, 64>}, {transform_indices = @transform_9, window_bounds = array<i64: 1, 4, 8, 16>}, {transform_indices = @transform_10, window_bounds = array<i64: 1, 4, 8, 16>}, {transform_indices = @transform_11, window_bounds = array<i64: 1, 1, 64>}]} {
    %c0 = arith.constant 0 : index
    %c0_0 = arith.constant 0 : index
    %c0_1 = arith.constant 0 : index
    %0 = vector.load %arg1[%c0, %c0_0, %c0_1] : memref<1x8x768xf32, #tpu.memory_space<vmem>>, vector<1x8x768xf32>
    %1 = vector.shape_cast %0 : vector<1x8x768xf32> to vector<8x768xf32>
    %2 = arith.truncf %1 : vector<8x768xf32> to vector<8x768xbf16>
    %c0_2 = arith.constant 0 : index
    %c0_3 = arith.constant 0 : index
    %3 = vector.load %arg3[%c0_2, %c0_3] : memref<768x64xbf16, #tpu.memory_space<vmem>>, vector<768x64xbf16>
    %cst = arith.constant dense<0.000000e+00> : vector<8x64xf32>
    %4 = tpu.matmul %2, %3, %cst {dimension_numbers = #tpu.dot_dimension_numbers<[1], [0], [0], [1], [0, 0, 1, 1], [], []>} : vector<8x768xbf16>, vector<768x64xbf16>, vector<8x64xf32> -> vector<8x64xf32>
    %c0_4 = arith.constant 0 : index
    %c0_5 = arith.constant 0 : index
    %5 = vector.load %arg4[%c0_4, %c0_5] : memref<1x64xf32, #tpu.memory_space<vmem>>, vector<1x64xf32>
    %6 = vector.broadcast %5 : vector<1x64xf32> to vector<8x64xf32>
    %7 = arith.addf %4, %6 : vector<8x64xf32>
    %8 = arith.truncf %7 : vector<8x64xf32> to vector<8x64xbf16>
    %9 = vector.shape_cast %8 : vector<8x64xbf16> to vector<1x8x64xbf16>
    %10 = vector.shape_cast %9 : vector<1x8x64xbf16> to vector<1x8x64xbf16>
    %11 = vector.broadcast %10 : vector<1x8x64xbf16> to vector<4x8x64xbf16>
    %c0_6 = arith.constant 0 : index
    %c0_7 = arith.constant 0 : index
    %c0_8 = arith.constant 0 : index
    %12 = vector.load %arg5[%c0_6, %c0_7, %c0_8] : memref<4x64x16xbf16, #tpu.memory_space<vmem>>, vector<4x64x16xbf16>
    %c0_9 = arith.constant 0 : index
    %c0_10 = arith.constant 0 : index
    %c0_11 = arith.constant 0 : index
    %13 = vector.load %arg6[%c0_9, %c0_10, %c0_11] : memref<4x1x16xf32, #tpu.memory_space<vmem>>, vector<4x1x16xf32>
    "tpu.trace_start"() <{level = 10 : i32, message = "hld,hdf->hlf"}> : () -> ()
    %cst_12 = arith.constant dense<0.000000e+00> : vector<4x8x16xf32>
    %14 = tpu.matmul %11, %12, %cst_12 {dimension_numbers = #tpu.dot_dimension_numbers<[2], [1], [1], [2], [0, 0, 0, 1, 1, 2], [0], [0]>} : vector<4x8x64xbf16>, vector<4x64x16xbf16>, vector<4x8x16xf32> -> vector<4x8x16xf32>
    "tpu.trace_stop"() : () -> ()
    %15 = vector.broadcast %13 : vector<4x1x16xf32> to vector<4x8x16xf32>
    %16 = arith.addf %14, %15 : vector<4x8x16xf32>
    %17 = arith.truncf %16 : vector<4x8x16xf32> to vector<4x8x16xbf16>
    %c0_13 = arith.constant 0 : index
    %c0_14 = arith.constant 0 : index
    %c0_15 = arith.constant 0 : index
    %c0_16 = arith.constant 0 : index
    %18 = vector.load %arg10[%c0_13, %c0_14, %c0_15, %c0_16] : memref<1x4x8x16xbf16, #tpu.memory_space<vmem>>, vector<1x4x8x16xbf16>
    %19 = vector.shape_cast %18 : vector<1x4x8x16xbf16> to vector<4x8x16xbf16>
    %20 = vector.shape_cast %17 : vector<4x8x16xbf16> to vector<1x4x8x16xbf16>
    tpu.vector_store %arg10[%c0_13, %c0_14, %c0_15, %c0_16], %20 {strides = array<i32>} : memref<1x4x8x16xbf16, #tpu.memory_space<vmem>>, vector<1x4x8x16xbf16>,
    %c0_17 = arith.constant 0 : index
    %c0_18 = arith.constant 0 : index
    %c0_19 = arith.constant 0 : index
    %21 = vector.load %arg7[%c0_17, %c0_18, %c0_19] : memref<4x64x16xbf16, #tpu.memory_space<vmem>>, vector<4x64x16xbf16>
    %c0_20 = arith.constant 0 : index
    %c0_21 = arith.constant 0 : index
    %c0_22 = arith.constant 0 : index
    %22 = vector.load %arg8[%c0_20, %c0_21, %c0_22] : memref<4x1x16xf32, #tpu.memory_space<vmem>>, vector<4x1x16xf32>
    "tpu.trace_start"() <{level = 10 : i32, message = "hld,hdf->hlf"}> : () -> ()
    %cst_23 = arith.constant dense<0.000000e+00> : vector<4x8x16xf32>
    %23 = tpu.matmul %11, %21, %cst_23 {dimension_numbers = #tpu.dot_dimension_numbers<[2], [1], [1], [2], [0, 0, 0, 1, 1, 2], [0], [0]>} : vector<4x8x64xbf16>, vector<4x64x16xbf16>, vector<4x8x16xf32> -> vector<4x8x16xf32>
    "tpu.trace_stop"() : () -> ()
    %24 = vector.broadcast %22 : vector<4x1x16xf32> to vector<4x8x16xf32>
    %25 = arith.addf %23, %24 : vector<4x8x16xf32>
    %26 = arith.truncf %25 : vector<4x8x16xf32> to vector<4x8x16xbf16>
    %c0_24 = arith.constant 0 : index
    %c0_25 = arith.constant 0 : index
    %c0_26 = arith.constant 0 : index
    %c0_27 = arith.constant 0 : index
    %27 = vector.load %arg11[%c0_24, %c0_25, %c0_26, %c0_27] : memref<1x4x8x16xbf16, #tpu.memory_space<vmem>>, vector<1x4x8x16xbf16>
    %28 = vector.shape_cast %27 : vector<1x4x8x16xbf16> to vector<4x8x16xbf16>
    %29 = vector.shape_cast %26 : vector<4x8x16xbf16> to vector<1x4x8x16xbf16>
    tpu.vector_store %arg11[%c0_24, %c0_25, %c0_26, %c0_27], %29 {strides = array<i32>} : memref<1x4x8x16xbf16, #tpu.memory_space<vmem>>, vector<1x4x8x16xbf16>,
    %c0_28 = arith.constant 0 : index
    %c0_29 = arith.constant 0 : index
    %c0_30 = arith.constant 0 : index
    %30 = vector.load %arg2[%c0_28, %c0_29, %c0_30] : memref<1x1x8xf32, #tpu.memory_space<vmem>>, vector<1x1x8xf32>
    %31 = vector.shape_cast %30 : vector<1x1x8xf32> to vector<1x8xf32>
    %32 = arith.truncf %31 : vector<1x8xf32> to vector<1x8xbf16>
    %c0_31 = arith.constant 0 : index
    %c0_32 = arith.constant 0 : index
    %33 = vector.load %arg9[%c0_31, %c0_32] : memref<8x64xbf16, #tpu.memory_space<vmem>>, vector<8x64xbf16>
    %cst_33 = arith.constant dense<0.000000e+00> : vector<1x64xf32>
    %34 = tpu.matmul %32, %33, %cst_33 {dimension_numbers = #tpu.dot_dimension_numbers<[1], [0], [0], [1], [0, 0, 1, 1], [], []>} : vector<1x8xbf16>, vector<8x64xbf16>, vector<1x64xf32> -> vector<1x64xf32>
    %c0_34 = arith.constant 0 : index
    %c0_35 = arith.constant 0 : index
    %c0_36 = arith.constant 0 : index
    %35 = vector.load %arg12[%c0_34, %c0_35, %c0_36] : memref<1x1x64xf32, #tpu.memory_space<vmem>>, vector<1x1x64xf32>
    %36 = vector.shape_cast %35 : vector<1x1x64xf32> to vector<1x64xf32>
    %37 = vector.shape_cast %34 : vector<1x64xf32> to vector<1x1x64xf32>
    tpu.vector_store %arg12[%c0_34, %c0_35, %c0_36], %37 {strides = array<i32>} : memref<1x1x64xf32, #tpu.memory_space<vmem>>, vector<1x1x64xf32>,
    return
  }
  func.func @transform_0(%arg0: i32) -> (i32, i32, i32) {
    %c0_i32 = arith.constant 0 : i32
    %c0_i32_0 = arith.constant 0 : i32
    %c0_i32_1 = arith.constant 0 : i32
    return %arg0, %c0_i32, %c0_i32_0 : i32, i32, i32
  }
  func.func @transform_1(%arg0: i32) -> (i32, i32, i32) {
    %c0_i32 = arith.constant 0 : i32
    %c0_i32_0 = arith.constant 0 : i32
    %c0_i32_1 = arith.constant 0 : i32
    return %arg0, %c0_i32, %c0_i32_0 : i32, i32, i32
  }
  func.func @transform_2(%arg0: i32) -> (i32, i32) {
    %c0_i32 = arith.constant 0 : i32
    %c0_i32_0 = arith.constant 0 : i32
    %c0_i32_1 = arith.constant 0 : i32
    return %c0_i32, %c0_i32_0 : i32, i32
  }
  func.func @transform_3(%arg0: i32) -> (i32, i32) {
    %c0_i32 = arith.constant 0 : i32
    %c0_i32_0 = arith.constant 0 : i32
    %c0_i32_1 = arith.constant 0 : i32
    return %c0_i32, %c0_i32_0 : i32, i32
  }
  func.func @transform_4(%arg0: i32) -> (i32, i32, i32) {
    %c0_i32 = arith.constant 0 : i32
    %c0_i32_0 = arith.constant 0 : i32
    %c0_i32_1 = arith.constant 0 : i32
    %c0_i32_2 = arith.constant 0 : i32
    return %c0_i32, %c0_i32_0, %c0_i32_1 : i32, i32, i32
  }
  func.func @transform_5(%arg0: i32) -> (i32, i32, i32) {
    %c0_i32 = arith.constant 0 : i32
    %c0_i32_0 = arith.constant 0 : i32
    %c0_i32_1 = arith.constant 0 : i32
    %c0_i32_2 = arith.constant 0 : i32
    return %c0_i32, %c0_i32_0, %c0_i32_1 : i32, i32, i32
  }
  func.func @transform_6(%arg0: i32) -> (i32, i32, i32) {
    %c0_i32 = arith.constant 0 : i32
    %c0_i32_0 = arith.constant 0 : i32
    %c0_i32_1 = arith.constant 0 : i32
    %c0_i32_2 = arith.constant 0 : i32
    return %c0_i32, %c0_i32_0, %c0_i32_1 : i32, i32, i32
  }
  func.func @transform_7(%arg0: i32) -> (i32, i32, i32) {
    %c0_i32 = arith.constant 0 : i32
    %c0_i32_0 = arith.constant 0 : i32
    %c0_i32_1 = arith.constant 0 : i32
    %c0_i32_2 = arith.constant 0 : i32
    return %c0_i32, %c0_i32_0, %c0_i32_1 : i32, i32, i32
  }
  func.func @transform_8(%arg0: i32) -> (i32, i32) {
    %c0_i32 = arith.constant 0 : i32
    %c0_i32_0 = arith.constant 0 : i32
    %c0_i32_1 = arith.constant 0 : i32
    return %c0_i32, %c0_i32_0 : i32, i32
  }
  func.func @transform_9(%arg0: i32) -> (i32, i32, i32, i32) {
    %c0_i32 = arith.constant 0 : i32
    %c0_i32_0 = arith.constant 0 : i32
    %c0_i32_1 = arith.constant 0 : i32
    %c0_i32_2 = arith.constant 0 : i32
    return %arg0, %c0_i32, %c0_i32_0, %c0_i32_1 : i32, i32, i32, i32
  }
  func.func @transform_10(%arg0: i32) -> (i32, i32, i32, i32) {
    %c0_i32 = arith.constant 0 : i32
    %c0_i32_0 = arith.constant 0 : i32
    %c0_i32_1 = arith.constant 0 : i32
    %c0_i32_2 = arith.constant 0 : i32
    return %arg0, %c0_i32, %c0_i32_0, %c0_i32_1 : i32, i32, i32, i32
  }
  func.func @transform_11(%arg0: i32) -> (i32, i32, i32) {
    %c0_i32 = arith.constant 0 : i32
    %c0_i32_0 = arith.constant 0 : i32
    %c0_i32_1 = arith.constant 0 : i32
    return %arg0, %c0_i32, %c0_i32_0 : i32, i32, i32
  }
}

module attributes {stable_mosaic.version = 11 : i64} {
  func.func @motion_decoder_kernel(%arg0: i32, %arg1: i32, %arg2: memref<1x8x64xf32, #tpu.memory_space<vmem>>, %arg3: memref<1x1x64xf32, #tpu.memory_space<vmem>>, %arg4: memref<1x1x128xf32, #tpu.memory_space<vmem>>, %arg5: memref<64x128xbf16, #tpu.memory_space<vmem>>, %arg6: memref<1x128xf32, #tpu.memory_space<vmem>>, %arg7: memref<1x8x128xf32, #tpu.memory_space<vmem>>) attributes {dimension_semantics = [#tpu.dimension_semantics<parallel>, #tpu.dimension_semantics<parallel>], iteration_bounds = array<i64: 2, 1>, scalar_prefetch = 0 : i64, scratch_operands = 0 : i64, tpu.core_type = #tpu.core_type<tc>, window_params = [{transform_indices = @transform_0, window_bounds = array<i64: 1, 8, 64>}, {transform_indices = @transform_1, window_bounds = array<i64: 1, 1, 64>}, {transform_indices = @transform_2, window_bounds = array<i64: 1, 1, 128>}, {transform_indices = @transform_3, window_bounds = array<i64: 64, 128>}, {transform_indices = @transform_4, window_bounds = array<i64: 1, 128>}, {transform_indices = @transform_5, window_bounds = array<i64: 1, 8, 128>}]} {
    %c0 = arith.constant 0 : index
    %c0_0 = arith.constant 0 : index
    %c0_1 = arith.constant 0 : index
    %0 = vector.load %arg2[%c0, %c0_0, %c0_1] : memref<1x8x64xf32, #tpu.memory_space<vmem>>, vector<1x8x64xf32>
    %1 = vector.shape_cast %0 : vector<1x8x64xf32> to vector<8x64xf32>
    %c0_2 = arith.constant 0 : index
    %c0_3 = arith.constant 0 : index
    %c0_4 = arith.constant 0 : index
    %2 = vector.load %arg3[%c0_2, %c0_3, %c0_4] : memref<1x1x64xf32, #tpu.memory_space<vmem>>, vector<1x1x64xf32>
    %3 = vector.shape_cast %2 : vector<1x1x64xf32> to vector<1x64xf32>
    %4 = vector.broadcast %3 : vector<1x64xf32> to vector<8x64xf32>
    %5 = arith.addf %1, %4 : vector<8x64xf32>
    %6 = arith.truncf %5 : vector<8x64xf32> to vector<8x64xbf16>
    %c0_5 = arith.constant 0 : index
    %c0_6 = arith.constant 0 : index
    %7 = vector.load %arg5[%c0_5, %c0_6] : memref<64x128xbf16, #tpu.memory_space<vmem>>, vector<64x128xbf16>
    %cst = arith.constant dense<0.000000e+00> : vector<8x128xf32>
    %8 = tpu.matmul %6, %7, %cst {dimension_numbers = #tpu.dot_dimension_numbers<[1], [0], [0], [1], [0, 0, 1, 1], [], []>} : vector<8x64xbf16>, vector<64x128xbf16>, vector<8x128xf32> -> vector<8x128xf32>
    %c0_7 = arith.constant 0 : index
    %c0_8 = arith.constant 0 : index
    %9 = vector.load %arg6[%c0_7, %c0_8] : memref<1x128xf32, #tpu.memory_space<vmem>>, vector<1x128xf32>
    %10 = vector.broadcast %9 : vector<1x128xf32> to vector<8x128xf32>
    %11 = arith.addf %8, %10 : vector<8x128xf32>
    %c0_9 = arith.constant 0 : index
    %c0_10 = arith.constant 0 : index
    %c0_11 = arith.constant 0 : index
    %12 = vector.load %arg4[%c0_9, %c0_10, %c0_11] : memref<1x1x128xf32, #tpu.memory_space<vmem>>, vector<1x1x128xf32>
    %13 = vector.shape_cast %12 : vector<1x1x128xf32> to vector<1x128xf32>
    %14 = vector.broadcast %13 : vector<1x128xf32> to vector<8x128xf32>
    %15 = arith.addf %11, %14 : vector<8x128xf32>
    %c0_12 = arith.constant 0 : index
    %c0_13 = arith.constant 0 : index
    %c0_14 = arith.constant 0 : index
    %16 = vector.load %arg7[%c0_12, %c0_13, %c0_14] : memref<1x8x128xf32, #tpu.memory_space<vmem>>, vector<1x8x128xf32>
    %17 = vector.shape_cast %16 : vector<1x8x128xf32> to vector<8x128xf32>
    %18 = vector.shape_cast %15 : vector<8x128xf32> to vector<1x8x128xf32>
    tpu.vector_store %arg7[%c0_12, %c0_13, %c0_14], %18 {strides = array<i32>} : memref<1x8x128xf32, #tpu.memory_space<vmem>>, vector<1x8x128xf32>,
    return
  }
  func.func @transform_0(%arg0: i32, %arg1: i32) -> (i32, i32, i32) {
    %c0_i32 = arith.constant 0 : i32
    %c0_i32_0 = arith.constant 0 : i32
    %c0_i32_1 = arith.constant 0 : i32
    return %arg0, %c0_i32, %c0_i32_0 : i32, i32, i32
  }
  func.func @transform_1(%arg0: i32, %arg1: i32) -> (i32, i32, i32) {
    %c0_i32 = arith.constant 0 : i32
    %c0_i32_0 = arith.constant 0 : i32
    %c0_i32_1 = arith.constant 0 : i32
    return %arg0, %c0_i32, %c0_i32_0 : i32, i32, i32
  }
  func.func @transform_2(%arg0: i32, %arg1: i32) -> (i32, i32, i32) {
    %c0_i32 = arith.constant 0 : i32
    %c0_i32_0 = arith.constant 0 : i32
    return %arg0, %c0_i32, %arg1 : i32, i32, i32
  }
  func.func @transform_3(%arg0: i32, %arg1: i32) -> (i32, i32) {
    %c0_i32 = arith.constant 0 : i32
    %c0_i32_0 = arith.constant 0 : i32
    return %c0_i32, %arg1 : i32, i32
  }
  func.func @transform_4(%arg0: i32, %arg1: i32) -> (i32, i32) {
    %c0_i32 = arith.constant 0 : i32
    %c0_i32_0 = arith.constant 0 : i32
    return %c0_i32, %arg1 : i32, i32
  }
  func.func @transform_5(%arg0: i32, %arg1: i32) -> (i32, i32, i32) {
    %c0_i32 = arith.constant 0 : i32
    %c0_i32_0 = arith.constant 0 : i32
    return %arg0, %c0_i32, %arg1 : i32, i32, i32
  }
}

module attributes {stable_mosaic.version = 11 : i64} {
  func.func @decode_step_kernel(%arg0: i32, %arg1: i32, %arg2: memref<1x1x64xf32, #tpu.memory_space<vmem>>, %arg3: memref<1x1x64xf32, #tpu.memory_space<vmem>>, %arg4: memref<1x4x8x16xbf16, #tpu.memory_space<vmem>>, %arg5: memref<1x4x8x16xbf16, #tpu.memory_space<vmem>>, %arg6: memref<8x8xf32, #tpu.memory_space<vmem>>, %arg7: memref<8x8xf32, #tpu.memory_space<vmem>>, %arg8: memref<4x64x16xbf16, #tpu.memory_space<vmem>>, %arg9: memref<4x64x16xbf16, #tpu.memory_space<vmem>>, %arg10: memref<4x64x16xbf16, #tpu.memory_space<vmem>>, %arg11: memref<4x1x16xf32, #tpu.memory_space<vmem>>, %arg12: memref<4x1x16xf32, #tpu.memory_space<vmem>>, %arg13: memref<4x1x16xf32, #tpu.memory_space<vmem>>, %arg14: memref<4x16x64xbf16, #tpu.memory_space<vmem>>, %arg15: memref<1x64xf32, #tpu.memory_space<vmem>>, %arg16: memref<4x64x16xbf16, #tpu.memory_space<vmem>>, %arg17: memref<4x1x16xf32, #tpu.memory_space<vmem>>, %arg18: memref<4x16x64xbf16, #tpu.memory_space<vmem>>, %arg19: memref<1x64xf32, #tpu.memory_space<vmem>>, %arg20: memref<64x128xbf16, #tpu.memory_space<vmem>>, %arg21: memref<1x128xf32, #tpu.memory_space<vmem>>, %arg22: memref<128x64xbf16, #tpu.memory_space<vmem>>, %arg23: memref<1x64xf32, #tpu.memory_space<vmem>>, %arg24: memref<1x64xf32, #tpu.memory_space<vmem>>, %arg25: memref<1x64xf32, #tpu.memory_space<vmem>>, %arg26: memref<1x64xf32, #tpu.memory_space<vmem>>, %arg27: memref<1x64xf32, #tpu.memory_space<vmem>>, %arg28: memref<1x64xf32, #tpu.memory_space<vmem>>, %arg29: memref<1x64xf32, #tpu.memory_space<vmem>>, %arg30: memref<1x8x64xf32, #tpu.memory_space<vmem>>, %arg31: memref<8x64xf32, #tpu.memory_space<vmem>>) attributes {dimension_semantics = [#tpu.dimension_semantics<parallel>, #tpu.dimension_semantics<arbitrary>], iteration_bounds = array<i64: 2, 8>, scalar_prefetch = 0 : i64, scratch_operands = 1 : i64, tpu.core_type = #tpu.core_type<tc>, window_params = [{transform_indices = @transform_0, window_bounds = array<i64: 1, 1, 64>}, {transform_indices = @transform_1, window_bounds = array<i64: 1, 1, 64>}, {transform_indices = @transform_2, window_bounds = array<i64: 1, 4, 8, 16>}, {transform_indices = @transform_3, window_bounds = array<i64: 1, 4, 8, 16>}, {pipeline_mode = #tpu.pipeline_mode<synchronous>, transform_indices = @transform_4, window_bounds = array<i64: 8, 8>}, {pipeline_mode = #tpu.pipeline_mode<synchronous>, transform_indices = @transform_5, window_bounds = array<i64: 8, 8>}, {pipeline_mode = #tpu.pipeline_mode<synchronous>, transform_indices = @transform_6, window_bounds = array<i64: 4, 64, 16>}, {pipeline_mode = #tpu.pipeline_mode<synchronous>, transform_indices = @transform_7, window_bounds = array<i64: 4, 64, 16>}, {pipeline_mode = #tpu.pipeline_mode<synchronous>, transform_indices = @transform_8, window_bounds = array<i64: 4, 64, 16>}, {pipeline_mode = #tpu.pipeline_mode<synchronous>, transform_indices = @transform_9, window_bounds = array<i64: 4, 1, 16>}, {pipeline_mode = #tpu.pipeline_mode<synchronous>, transform_indices = @transform_10, window_bounds = array<i64: 4, 1, 16>}, {pipeline_mode = #tpu.pipeline_mode<synchronous>, transform_indices = @transform_11, window_bounds = array<i64: 4, 1, 16>}, {pipeline_mode = #tpu.pipeline_mode<synchronous>, transform_indices = @transform_12, window_bounds = array<i64: 4, 16, 64>}, {pipeline_mode = #tpu.pipeline_mode<synchronous>, transform_indices = @transform_13, window_bounds = array<i64: 1, 64>}, {pipeline_mode = #tpu.pipeline_mode<synchronous>, transform_indices = @transform_14, window_bounds = array<i64: 4, 64, 16>}, {pipeline_mode = #tpu.pipeline_mode<synchronous>, transform_indices = @transform_15, window_bounds = array<i64: 4, 1, 16>}, {pipeline_mode = #tpu.pipeline_mode<synchronous>, transform_indices = @transform_16, window_bounds = array<i64: 4, 16, 64>}, {pipeline_mode = #tpu.pipeline_mode<synchronous>, transform_indices = @transform_17, window_bounds = array<i64: 1, 64>}, {pipeline_mode = #tpu.pipeline_mode<synchronous>, transform_indices = @transform_18, window_bounds = array<i64: 64, 128>}, {pipeline_mode = #tpu.pipeline_mode<synchronous>, transform_indices = @transform_19, window_bounds = array<i64: 1, 128>}, {pipeline_mode = #tpu.pipeline_mode<synchronous>, transform_indices = @transform_20, window_bounds = array<i64: 128, 64>}, {pipeline_mode = #tpu.pipeline_mode<synchronous>, transform_indices = @transform_21, window_bounds = array<i64: 1, 64>}, {pipeline_mode = #tpu.pipeline_mode<synchronous>, transform_indices = @transform_22, window_bounds = array<i64: 1, 64>}, {pipeline_mode = #tpu.pipeline_mode<synchronous>, transform_indices = @transform_23, window_bounds = array<i64: 1, 64>}, {pipeline_mode = #tpu.pipeline_mode<synchronous>, transform_indices = @transform_24, window_bounds = array<i64: 1, 64>}, {pipeline_mode = #tpu.pipeline_mode<synchronous>, transform_indices = @transform_25, window_bounds = array<i64: 1, 64>}, {pipeline_mode = #tpu.pipeline_mode<synchronous>, transform_indices = @transform_26, window_bounds = array<i64: 1, 64>}, {pipeline_mode = #tpu.pipeline_mode<synchronous>, transform_indices = @transform_27, window_bounds = array<i64: 1, 64>}, {transform_indices = @transform_28, window_bounds = array<i64: 1, 8, 64>}]} {
    %c0_i32 = arith.constant 0 : i32
    %0 = arith.cmpi eq, %arg1, %c0_i32 : i32
    %1 = arith.extui %0 : i1 to i32
    %c0_i32_0 = arith.constant 0 : i32
    %2 = arith.cmpi ne, %1, %c0_i32_0 : i32
    scf.if %2 {
      %cst_112 = arith.constant 0.000000e+00 : f32
      %195 = vector.broadcast %cst_112 : f32 to vector<8x64xf32>
      %c0_113 = arith.constant 0 : index
      %c0_114 = arith.constant 0 : index
      %196 = vector.load %arg31[%c0_113, %c0_114] : memref<8x64xf32, #tpu.memory_space<vmem>>, vector<8x64xf32>
      tpu.vector_store %arg31[%c0_113, %c0_114], %195 {strides = array<i32>} : memref<8x64xf32, #tpu.memory_space<vmem>>, vector<8x64xf32>,
    } else {
    }
    %c0 = arith.constant 0 : index
    %c0_1 = arith.constant 0 : index
    %3 = vector.load %arg31[%c0, %c0_1] : memref<8x64xf32, #tpu.memory_space<vmem>>, vector<8x64xf32>
    %c0_2 = arith.constant 0 : index
    %c0_3 = arith.constant 0 : index
    %c0_4 = arith.constant 0 : index
    %4 = vector.load %arg2[%c0_2, %c0_3, %c0_4] : memref<1x1x64xf32, #tpu.memory_space<vmem>>, vector<1x1x64xf32>
    %5 = vector.shape_cast %4 : vector<1x1x64xf32> to vector<1x64xf32>
    %6 = vector.broadcast %5 : vector<1x64xf32> to vector<8x64xf32>
    %7 = arith.addf %3, %6 : vector<8x64xf32>
    %c0_i32_5 = arith.constant 0 : i32
    %8 = arith.cmpi eq, %arg1, %c0_i32_5 : i32
    %9 = arith.extui %8 : i1 to i32
    %c0_i32_6 = arith.constant 0 : i32
    %10 = arith.cmpi ne, %9, %c0_i32_6 : i32
    scf.if %10 {
      %c0_112 = arith.constant 0 : index
      %c0_113 = arith.constant 0 : index
      %c0_114 = arith.constant 0 : index
      %195 = vector.load %arg3[%c0_112, %c0_113, %c0_114] : memref<1x1x64xf32, #tpu.memory_space<vmem>>, vector<1x1x64xf32>
      %196 = vector.shape_cast %195 : vector<1x1x64xf32> to vector<1x64xf32>
      %c0_115 = arith.constant 0 : index
      %c0_116 = arith.constant 0 : index
      %197 = vector.load %arg31[%c0_115, %c0_116] : memref<8x64xf32, #tpu.memory_space<vmem>>, vector<1x64xf32>
      tpu.vector_store %arg31[%c0_115, %c0_116], %196 {strides = array<i32>} : memref<8x64xf32, #tpu.memory_space<vmem>>, vector<1x64xf32>,
    } else {
    }
    %11 = arith.truncf %7 : vector<8x64xf32> to vector<8x64xbf16>
    %12 = vector.shape_cast %11 : vector<8x64xbf16> to vector<1x8x64xbf16>
    %13 = vector.shape_cast %12 : vector<1x8x64xbf16> to vector<1x8x64xbf16>
    %14 = vector.broadcast %13 : vector<1x8x64xbf16> to vector<4x8x64xbf16>
    %c0_7 = arith.constant 0 : index
    %c0_8 = arith.constant 0 : index
    %c0_9 = arith.constant 0 : index
    %15 = vector.load %arg8[%c0_7, %c0_8, %c0_9] : memref<4x64x16xbf16, #tpu.memory_space<vmem>>, vector<4x64x16xbf16>
    %c0_10 = arith.constant 0 : index
    %c0_11 = arith.constant 0 : index
    %c0_12 = arith.constant 0 : index
    %16 = vector.load %arg11[%c0_10, %c0_11, %c0_12] : memref<4x1x16xf32, #tpu.memory_space<vmem>>, vector<4x1x16xf32>
    "tpu.trace_start"() <{level = 10 : i32, message = "hld,hdf->hlf"}> : () -> ()
    %cst = arith.constant dense<0.000000e+00> : vector<4x8x16xf32>
    %17 = tpu.matmul %14, %15, %cst {dimension_numbers = #tpu.dot_dimension_numbers<[2], [1], [1], [2], [0, 0, 0, 1, 1, 2], [0], [0]>} : vector<4x8x64xbf16>, vector<4x64x16xbf16>, vector<4x8x16xf32> -> vector<4x8x16xf32>
    "tpu.trace_stop"() : () -> ()
    %18 = vector.broadcast %16 : vector<4x1x16xf32> to vector<4x8x16xf32>
    %19 = arith.addf %17, %18 : vector<4x8x16xf32>
    %c0_13 = arith.constant 0 : index
    %c0_14 = arith.constant 0 : index
    %c0_15 = arith.constant 0 : index
    %20 = vector.load %arg9[%c0_13, %c0_14, %c0_15] : memref<4x64x16xbf16, #tpu.memory_space<vmem>>, vector<4x64x16xbf16>
    %c0_16 = arith.constant 0 : index
    %c0_17 = arith.constant 0 : index
    %c0_18 = arith.constant 0 : index
    %21 = vector.load %arg12[%c0_16, %c0_17, %c0_18] : memref<4x1x16xf32, #tpu.memory_space<vmem>>, vector<4x1x16xf32>
    "tpu.trace_start"() <{level = 10 : i32, message = "hld,hdf->hlf"}> : () -> ()
    %cst_19 = arith.constant dense<0.000000e+00> : vector<4x8x16xf32>
    %22 = tpu.matmul %14, %20, %cst_19 {dimension_numbers = #tpu.dot_dimension_numbers<[2], [1], [1], [2], [0, 0, 0, 1, 1, 2], [0], [0]>} : vector<4x8x64xbf16>, vector<4x64x16xbf16>, vector<4x8x16xf32> -> vector<4x8x16xf32>
    "tpu.trace_stop"() : () -> ()
    %23 = vector.broadcast %21 : vector<4x1x16xf32> to vector<4x8x16xf32>
    %24 = arith.addf %22, %23 : vector<4x8x16xf32>
    %c0_20 = arith.constant 0 : index
    %c0_21 = arith.constant 0 : index
    %c0_22 = arith.constant 0 : index
    %25 = vector.load %arg10[%c0_20, %c0_21, %c0_22] : memref<4x64x16xbf16, #tpu.memory_space<vmem>>, vector<4x64x16xbf16>
    %c0_23 = arith.constant 0 : index
    %c0_24 = arith.constant 0 : index
    %c0_25 = arith.constant 0 : index
    %26 = vector.load %arg13[%c0_23, %c0_24, %c0_25] : memref<4x1x16xf32, #tpu.memory_space<vmem>>, vector<4x1x16xf32>
    "tpu.trace_start"() <{level = 10 : i32, message = "hld,hdf->hlf"}> : () -> ()
    %cst_26 = arith.constant dense<0.000000e+00> : vector<4x8x16xf32>
    %27 = tpu.matmul %14, %25, %cst_26 {dimension_numbers = #tpu.dot_dimension_numbers<[2], [1], [1], [2], [0, 0, 0, 1, 1, 2], [0], [0]>} : vector<4x8x64xbf16>, vector<4x64x16xbf16>, vector<4x8x16xf32> -> vector<4x8x16xf32>
    "tpu.trace_stop"() : () -> ()
    %28 = vector.broadcast %26 : vector<4x1x16xf32> to vector<4x8x16xf32>
    %29 = arith.addf %27, %28 : vector<4x8x16xf32>
    %c0_27 = arith.constant 0 : index
    %c0_28 = arith.constant 0 : index
    %30 = vector.load %arg6[%c0_27, %c0_28] : memref<8x8xf32, #tpu.memory_space<vmem>>, vector<8x8xf32>
    %31 = arith.truncf %19 : vector<4x8x16xf32> to vector<4x8x16xbf16>
    %32 = arith.truncf %24 : vector<4x8x16xf32> to vector<4x8x16xbf16>
    "tpu.trace_start"() <{level = 10 : i32, message = "hqf,hkf->hqk"}> : () -> ()
    %cst_29 = arith.constant dense<0.000000e+00> : vector<4x8x8xf32>
    %33 = tpu.matmul %31, %32, %cst_29 {dimension_numbers = #tpu.dot_dimension_numbers<[2], [2], [1], [1], [0, 0, 0, 1, 1, 1], [0], [0]>} : vector<4x8x16xbf16>, vector<4x8x16xbf16>, vector<4x8x8xf32> -> vector<4x8x8xf32>
    "tpu.trace_stop"() : () -> ()
    %cst_30 = arith.constant 2.500000e-01 : f32
    %34 = vector.broadcast %cst_30 : f32 to vector<4x8x8xf32>
    %35 = arith.mulf %33, %34 : vector<4x8x8xf32>
    %36 = vector.shape_cast %30 : vector<8x8xf32> to vector<1x8x8xf32>
    %37 = vector.broadcast %36 : vector<1x8x8xf32> to vector<4x8x8xf32>
    %38 = arith.addf %35, %37 : vector<4x8x8xf32>
    %cst_31 = arith.constant dense<0xFF800000> : vector<4x8xf32>
    %39 = vector.multi_reduction <maximumf>, %38, %cst_31 [2] : vector<4x8x8xf32> to vector<4x8xf32>
    %40 = vector.shape_cast %39 : vector<4x8xf32> to vector<4x8x1xf32>
    %41 = vector.broadcast %40 : vector<4x8x1xf32> to vector<4x8x8xf32>
    %42 = arith.subf %38, %41 : vector<4x8x8xf32>
    %43 = math.exp %42 : vector<4x8x8xf32>
    %cst_32 = arith.constant dense<0.000000e+00> : vector<4x8xf32>
    %44 = vector.multi_reduction <add>, %43, %cst_32 [2] : vector<4x8x8xf32> to vector<4x8xf32>
    %45 = vector.shape_cast %44 : vector<4x8xf32> to vector<4x8x1xf32>
    %46 = tpu.reciprocal %45 {approx = true} : vector<4x8x1xf32> -> vector<4x8x1xf32>
    %47 = vector.broadcast %46 : vector<4x8x1xf32> to vector<4x8x8xf32>
    %48 = arith.mulf %43, %47 : vector<4x8x8xf32>
    %49 = arith.truncf %48 : vector<4x8x8xf32> to vector<4x8x8xbf16>
    %50 = arith.truncf %29 : vector<4x8x16xf32> to vector<4x8x16xbf16>
    "tpu.trace_start"() <{level = 10 : i32, message = "hqk,hkf->hqf"}> : () -> ()
    %cst_33 = arith.constant dense<0.000000e+00> : vector<4x8x16xf32>
    %51 = tpu.matmul %49, %50, %cst_33 {dimension_numbers = #tpu.dot_dimension_numbers<[2], [1], [1], [2], [0, 0, 0, 1, 1, 2], [0], [0]>} : vector<4x8x8xbf16>, vector<4x8x16xbf16>, vector<4x8x16xf32> -> vector<4x8x16xf32>
    "tpu.trace_stop"() : () -> ()
    %c0_34 = arith.constant 0 : index
    %c0_35 = arith.constant 0 : index
    %c0_36 = arith.constant 0 : index
    %52 = vector.load %arg14[%c0_34, %c0_35, %c0_36] : memref<4x16x64xbf16, #tpu.memory_space<vmem>>, vector<4x16x64xbf16>
    %c0_37 = arith.constant 0 : index
    %c0_38 = arith.constant 0 : index
    %53 = vector.load %arg15[%c0_37, %c0_38] : memref<1x64xf32, #tpu.memory_space<vmem>>, vector<1x64xf32>
    %54 = arith.truncf %51 : vector<4x8x16xf32> to vector<4x8x16xbf16>
    "tpu.trace_start"() <{level = 10 : i32, message = "hlf,hfd->hld"}> : () -> ()
    %cst_39 = arith.constant dense<0.000000e+00> : vector<4x8x64xf32>
    %55 = tpu.matmul %54, %52, %cst_39 {dimension_numbers = #tpu.dot_dimension_numbers<[2], [1], [1], [2], [0, 0, 0, 1, 1, 2], [0], [0]>} : vector<4x8x16xbf16>, vector<4x16x64xbf16>, vector<4x8x64xf32> -> vector<4x8x64xf32>
    "tpu.trace_stop"() : () -> ()
    %cst_40 = arith.constant dense<0.000000e+00> : vector<8x64xf32>
    %56 = vector.multi_reduction <add>, %55, %cst_40 [0] : vector<4x8x64xf32> to vector<8x64xf32>
    %57 = vector.broadcast %53 : vector<1x64xf32> to vector<8x64xf32>
    %58 = arith.addf %56, %57 : vector<8x64xf32>
    %59 = arith.addf %7, %58 : vector<8x64xf32>
    %c0_41 = arith.constant 0 : index
    %c0_42 = arith.constant 0 : index
    %60 = vector.load %arg24[%c0_41, %c0_42] : memref<1x64xf32, #tpu.memory_space<vmem>>, vector<1x64xf32>
    %c0_43 = arith.constant 0 : index
    %c0_44 = arith.constant 0 : index
    %61 = vector.load %arg25[%c0_43, %c0_44] : memref<1x64xf32, #tpu.memory_space<vmem>>, vector<1x64xf32>
    %cst_45 = arith.constant dense<0.000000e+00> : vector<8xf32>
    %62 = vector.multi_reduction <add>, %59, %cst_45 [1] : vector<8x64xf32> to vector<8xf32>
    %63 = vector.shape_cast %62 : vector<8xf32> to vector<8x1xf32>
    %cst_46 = arith.constant 6.400000e+01 : f32
    %64 = vector.broadcast %cst_46 : f32 to vector<8x1xf32>
    %65 = arith.divf %63, %64 : vector<8x1xf32>
    %66 = vector.broadcast %65 : vector<8x1xf32> to vector<8x64xf32>
    %67 = arith.subf %59, %66 : vector<8x64xf32>
    %68 = arith.mulf %67, %67 : vector<8x64xf32>
    %cst_47 = arith.constant dense<0.000000e+00> : vector<8xf32>
    %69 = vector.multi_reduction <add>, %68, %cst_47 [1] : vector<8x64xf32> to vector<8xf32>
    %70 = vector.shape_cast %69 : vector<8xf32> to vector<8x1xf32>
    %cst_48 = arith.constant 6.400000e+01 : f32
    %71 = vector.broadcast %cst_48 : f32 to vector<8x1xf32>
    %72 = arith.divf %70, %71 : vector<8x1xf32>
    %73 = vector.broadcast %65 : vector<8x1xf32> to vector<8x64xf32>
    %74 = arith.subf %59, %73 : vector<8x64xf32>
    %cst_49 = arith.constant 9.99999974E-6 : f32
    %75 = vector.broadcast %cst_49 : f32 to vector<8x1xf32>
    %76 = arith.addf %72, %75 : vector<8x1xf32>
    %77 = math.rsqrt %76 : vector<8x1xf32>
    %78 = vector.broadcast %77 : vector<8x1xf32> to vector<8x64xf32>
    %79 = arith.mulf %74, %78 : vector<8x64xf32>
    %80 = vector.broadcast %60 : vector<1x64xf32> to vector<8x64xf32>
    %81 = arith.mulf %79, %80 : vector<8x64xf32>
    %82 = vector.broadcast %61 : vector<1x64xf32> to vector<8x64xf32>
    %83 = arith.addf %81, %82 : vector<8x64xf32>
    %84 = arith.truncf %83 : vector<8x64xf32> to vector<8x64xbf16>
    %85 = vector.shape_cast %84 : vector<8x64xbf16> to vector<1x8x64xbf16>
    %86 = vector.shape_cast %85 : vector<1x8x64xbf16> to vector<1x8x64xbf16>
    %87 = vector.broadcast %86 : vector<1x8x64xbf16> to vector<4x8x64xbf16>
    %c0_50 = arith.constant 0 : index
    %c0_51 = arith.constant 0 : index
    %c0_52 = arith.constant 0 : index
    %88 = vector.load %arg16[%c0_50, %c0_51, %c0_52] : memref<4x64x16xbf16, #tpu.memory_space<vmem>>, vector<4x64x16xbf16>
    %c0_53 = arith.constant 0 : index
    %c0_54 = arith.constant 0 : index
    %c0_55 = arith.constant 0 : index
    %89 = vector.load %arg17[%c0_53, %c0_54, %c0_55] : memref<4x1x16xf32, #tpu.memory_space<vmem>>, vector<4x1x16xf32>
    "tpu.trace_start"() <{level = 10 : i32, message = "hld,hdf->hlf"}> : () -> ()
    %cst_56 = arith.constant dense<0.000000e+00> : vector<4x8x16xf32>
    %90 = tpu.matmul %87, %88, %cst_56 {dimension_numbers = #tpu.dot_dimension_numbers<[2], [1], [1], [2], [0, 0, 0, 1, 1, 2], [0], [0]>} : vector<4x8x64xbf16>, vector<4x64x16xbf16>, vector<4x8x16xf32> -> vector<4x8x16xf32>
    "tpu.trace_stop"() : () -> ()
    %91 = vector.broadcast %89 : vector<4x1x16xf32> to vector<4x8x16xf32>
    %92 = arith.addf %90, %91 : vector<4x8x16xf32>
    %c0_57 = arith.constant 0 : index
    %c0_58 = arith.constant 0 : index
    %c0_59 = arith.constant 0 : index
    %c0_60 = arith.constant 0 : index
    %93 = vector.load %arg4[%c0_57, %c0_58, %c0_59, %c0_60] : memref<1x4x8x16xbf16, #tpu.memory_space<vmem>>, vector<1x4x8x16xbf16>
    %94 = vector.shape_cast %93 : vector<1x4x8x16xbf16> to vector<4x8x16xbf16>
    %c0_61 = arith.constant 0 : index
    %c0_62 = arith.constant 0 : index
    %c0_63 = arith.constant 0 : index
    %c0_64 = arith.constant 0 : index
    %95 = vector.load %arg5[%c0_61, %c0_62, %c0_63, %c0_64] : memref<1x4x8x16xbf16, #tpu.memory_space<vmem>>, vector<1x4x8x16xbf16>
    %96 = vector.shape_cast %95 : vector<1x4x8x16xbf16> to vector<4x8x16xbf16>
    %c0_65 = arith.constant 0 : index
    %c0_66 = arith.constant 0 : index
    %97 = vector.load %arg7[%c0_65, %c0_66] : memref<8x8xf32, #tpu.memory_space<vmem>>, vector<8x8xf32>
    %98 = arith.truncf %92 : vector<4x8x16xf32> to vector<4x8x16xbf16>
    "tpu.trace_start"() <{level = 10 : i32, message = "hqf,hkf->hqk"}> : () -> ()
    %cst_67 = arith.constant dense<0.000000e+00> : vector<4x8x8xf32>
    %99 = tpu.matmul %98, %94, %cst_67 {dimension_numbers = #tpu.dot_dimension_numbers<[2], [2], [1], [1], [0, 0, 0, 1, 1, 1], [0], [0]>} : vector<4x8x16xbf16>, vector<4x8x16xbf16>, vector<4x8x8xf32> -> vector<4x8x8xf32>
    "tpu.trace_stop"() : () -> ()
    %cst_68 = arith.constant 2.500000e-01 : f32
    %100 = vector.broadcast %cst_68 : f32 to vector<4x8x8xf32>
    %101 = arith.mulf %99, %100 : vector<4x8x8xf32>
    %102 = vector.shape_cast %97 : vector<8x8xf32> to vector<1x8x8xf32>
    %103 = vector.broadcast %102 : vector<1x8x8xf32> to vector<4x8x8xf32>
    %104 = arith.addf %101, %103 : vector<4x8x8xf32>
    %cst_69 = arith.constant dense<0xFF800000> : vector<4x8xf32>
    %105 = vector.multi_reduction <maximumf>, %104, %cst_69 [2] : vector<4x8x8xf32> to vector<4x8xf32>
    %106 = vector.shape_cast %105 : vector<4x8xf32> to vector<4x8x1xf32>
    %107 = vector.broadcast %106 : vector<4x8x1xf32> to vector<4x8x8xf32>
    %108 = arith.subf %104, %107 : vector<4x8x8xf32>
    %109 = math.exp %108 : vector<4x8x8xf32>
    %cst_70 = arith.constant dense<0.000000e+00> : vector<4x8xf32>
    %110 = vector.multi_reduction <add>, %109, %cst_70 [2] : vector<4x8x8xf32> to vector<4x8xf32>
    %111 = vector.shape_cast %110 : vector<4x8xf32> to vector<4x8x1xf32>
    %112 = tpu.reciprocal %111 {approx = true} : vector<4x8x1xf32> -> vector<4x8x1xf32>
    %113 = vector.broadcast %112 : vector<4x8x1xf32> to vector<4x8x8xf32>
    %114 = arith.mulf %109, %113 : vector<4x8x8xf32>
    %115 = arith.truncf %114 : vector<4x8x8xf32> to vector<4x8x8xbf16>
    "tpu.trace_start"() <{level = 10 : i32, message = "hqk,hkf->hqf"}> : () -> ()
    %cst_71 = arith.constant dense<0.000000e+00> : vector<4x8x16xf32>
    %116 = tpu.matmul %115, %96, %cst_71 {dimension_numbers = #tpu.dot_dimension_numbers<[2], [1], [1], [2], [0, 0, 0, 1, 1, 2], [0], [0]>} : vector<4x8x8xbf16>, vector<4x8x16xbf16>, vector<4x8x16xf32> -> vector<4x8x16xf32>
    "tpu.trace_stop"() : () -> ()
    %c0_72 = arith.constant 0 : index
    %c0_73 = arith.constant 0 : index
    %c0_74 = arith.constant 0 : index
    %117 = vector.load %arg18[%c0_72, %c0_73, %c0_74] : memref<4x16x64xbf16, #tpu.memory_space<vmem>>, vector<4x16x64xbf16>
    %c0_75 = arith.constant 0 : index
    %c0_76 = arith.constant 0 : index
    %118 = vector.load %arg19[%c0_75, %c0_76] : memref<1x64xf32, #tpu.memory_space<vmem>>, vector<1x64xf32>
    %119 = arith.truncf %116 : vector<4x8x16xf32> to vector<4x8x16xbf16>
    "tpu.trace_start"() <{level = 10 : i32, message = "hlf,hfd->hld"}> : () -> ()
    %cst_77 = arith.constant dense<0.000000e+00> : vector<4x8x64xf32>
    %120 = tpu.matmul %119, %117, %cst_77 {dimension_numbers = #tpu.dot_dimension_numbers<[2], [1], [1], [2], [0, 0, 0, 1, 1, 2], [0], [0]>} : vector<4x8x16xbf16>, vector<4x16x64xbf16>, vector<4x8x64xf32> -> vector<4x8x64xf32>
    "tpu.trace_stop"() : () -> ()
    %cst_78 = arith.constant dense<0.000000e+00> : vector<8x64xf32>
    %121 = vector.multi_reduction <add>, %120, %cst_78 [0] : vector<4x8x64xf32> to vector<8x64xf32>
    %122 = vector.broadcast %118 : vector<1x64xf32> to vector<8x64xf32>
    %123 = arith.addf %121, %122 : vector<8x64xf32>
    %124 = arith.addf %83, %123 : vector<8x64xf32>
    %c0_79 = arith.constant 0 : index
    %c0_80 = arith.constant 0 : index
    %125 = vector.load %arg26[%c0_79, %c0_80] : memref<1x64xf32, #tpu.memory_space<vmem>>, vector<1x64xf32>
    %c0_81 = arith.constant 0 : index
    %c0_82 = arith.constant 0 : index
    %126 = vector.load %arg27[%c0_81, %c0_82] : memref<1x64xf32, #tpu.memory_space<vmem>>, vector<1x64xf32>
    %cst_83 = arith.constant dense<0.000000e+00> : vector<8xf32>
    %127 = vector.multi_reduction <add>, %124, %cst_83 [1] : vector<8x64xf32> to vector<8xf32>
    %128 = vector.shape_cast %127 : vector<8xf32> to vector<8x1xf32>
    %cst_84 = arith.constant 6.400000e+01 : f32
    %129 = vector.broadcast %cst_84 : f32 to vector<8x1xf32>
    %130 = arith.divf %128, %129 : vector<8x1xf32>
    %131 = vector.broadcast %130 : vector<8x1xf32> to vector<8x64xf32>
    %132 = arith.subf %124, %131 : vector<8x64xf32>
    %133 = arith.mulf %132, %132 : vector<8x64xf32>
    %cst_85 = arith.constant dense<0.000000e+00> : vector<8xf32>
    %134 = vector.multi_reduction <add>, %133, %cst_85 [1] : vector<8x64xf32> to vector<8xf32>
    %135 = vector.shape_cast %134 : vector<8xf32> to vector<8x1xf32>
    %cst_86 = arith.constant 6.400000e+01 : f32
    %136 = vector.broadcast %cst_86 : f32 to vector<8x1xf32>
    %137 = arith.divf %135, %136 : vector<8x1xf32>
    %138 = vector.broadcast %130 : vector<8x1xf32> to vector<8x64xf32>
    %139 = arith.subf %124, %138 : vector<8x64xf32>
    %cst_87 = arith.constant 9.99999974E-6 : f32
    %140 = vector.broadcast %cst_87 : f32 to vector<8x1xf32>
    %141 = arith.addf %137, %140 : vector<8x1xf32>
    %142 = math.rsqrt %141 : vector<8x1xf32>
    %143 = vector.broadcast %142 : vector<8x1xf32> to vector<8x64xf32>
    %144 = arith.mulf %139, %143 : vector<8x64xf32>
    %145 = vector.broadcast %125 : vector<1x64xf32> to vector<8x64xf32>
    %146 = arith.mulf %144, %145 : vector<8x64xf32>
    %147 = vector.broadcast %126 : vector<1x64xf32> to vector<8x64xf32>
    %148 = arith.addf %146, %147 : vector<8x64xf32>
    %149 = arith.truncf %148 : vector<8x64xf32> to vector<8x64xbf16>
    %c0_88 = arith.constant 0 : index
    %c0_89 = arith.constant 0 : index
    %150 = vector.load %arg20[%c0_88, %c0_89] : memref<64x128xbf16, #tpu.memory_space<vmem>>, vector<64x128xbf16>
    %cst_90 = arith.constant dense<0.000000e+00> : vector<8x128xf32>
    %151 = tpu.matmul %149, %150, %cst_90 {dimension_numbers = #tpu.dot_dimension_numbers<[1], [0], [0], [1], [0, 0, 1, 1], [], []>} : vector<8x64xbf16>, vector<64x128xbf16>, vector<8x128xf32> -> vector<8x128xf32>
    %c0_91 = arith.constant 0 : index
    %c0_92 = arith.constant 0 : index
    %152 = vector.load %arg21[%c0_91, %c0_92] : memref<1x128xf32, #tpu.memory_space<vmem>>, vector<1x128xf32>
    %153 = vector.broadcast %152 : vector<1x128xf32> to vector<8x128xf32>
    %154 = arith.addf %151, %153 : vector<8x128xf32>
    %cst_93 = arith.constant 0.000000e+00 : f32
    %155 = vector.broadcast %cst_93 : f32 to vector<8x128xf32>
    %156 = arith.maximumf %154, %155 : vector<8x128xf32>
    %157 = arith.truncf %156 : vector<8x128xf32> to vector<8x128xbf16>
    %c0_94 = arith.constant 0 : index
    %c0_95 = arith.constant 0 : index
    %158 = vector.load %arg22[%c0_94, %c0_95] : memref<128x64xbf16, #tpu.memory_space<vmem>>, vector<128x64xbf16>
    %cst_96 = arith.constant dense<0.000000e+00> : vector<8x64xf32>
    %159 = tpu.matmul %157, %158, %cst_96 {dimension_numbers = #tpu.dot_dimension_numbers<[1], [0], [0], [1], [0, 0, 1, 1], [], []>} : vector<8x128xbf16>, vector<128x64xbf16>, vector<8x64xf32> -> vector<8x64xf32>
    %c0_97 = arith.constant 0 : index
    %c0_98 = arith.constant 0 : index
    %160 = vector.load %arg23[%c0_97, %c0_98] : memref<1x64xf32, #tpu.memory_space<vmem>>, vector<1x64xf32>
    %161 = vector.broadcast %160 : vector<1x64xf32> to vector<8x64xf32>
    %162 = arith.addf %159, %161 : vector<8x64xf32>
    %163 = arith.addf %148, %162 : vector<8x64xf32>
    %c0_99 = arith.constant 0 : index
    %c0_100 = arith.constant 0 : index
    %164 = vector.load %arg28[%c0_99, %c0_100] : memref<1x64xf32, #tpu.memory_space<vmem>>, vector<1x64xf32>
    %c0_101 = arith.constant 0 : index
    %c0_102 = arith.constant 0 : index
    %165 = vector.load %arg29[%c0_101, %c0_102] : memref<1x64xf32, #tpu.memory_space<vmem>>, vector<1x64xf32>
    %cst_103 = arith.constant dense<0.000000e+00> : vector<8xf32>
    %166 = vector.multi_reduction <add>, %163, %cst_103 [1] : vector<8x64xf32> to vector<8xf32>
    %167 = vector.shape_cast %166 : vector<8xf32> to vector<8x1xf32>
    %cst_104 = arith.constant 6.400000e+01 : f32
    %168 = vector.broadcast %cst_104 : f32 to vector<8x1xf32>
    %169 = arith.divf %167, %168 : vector<8x1xf32>
    %170 = vector.broadcast %169 : vector<8x1xf32> to vector<8x64xf32>
    %171 = arith.subf %163, %170 : vector<8x64xf32>
    %172 = arith.mulf %171, %171 : vector<8x64xf32>
    %cst_105 = arith.constant dense<0.000000e+00> : vector<8xf32>
    %173 = vector.multi_reduction <add>, %172, %cst_105 [1] : vector<8x64xf32> to vector<8xf32>
    %174 = vector.shape_cast %173 : vector<8xf32> to vector<8x1xf32>
    %cst_106 = arith.constant 6.400000e+01 : f32
    %175 = vector.broadcast %cst_106 : f32 to vector<8x1xf32>
    %176 = arith.divf %174, %175 : vector<8x1xf32>
    %177 = vector.broadcast %169 : vector<8x1xf32> to vector<8x64xf32>
    %178 = arith.subf %163, %177 : vector<8x64xf32>
    %cst_107 = arith.constant 9.99999974E-6 : f32
    %179 = vector.broadcast %cst_107 : f32 to vector<8x1xf32>
    %180 = arith.addf %176, %179 : vector<8x1xf32>
    %181 = math.rsqrt %180 : vector<8x1xf32>
    %182 = vector.broadcast %181 : vector<8x1xf32> to vector<8x64xf32>
    %183 = arith.mulf %178, %182 : vector<8x64xf32>
    %184 = vector.broadcast %164 : vector<1x64xf32> to vector<8x64xf32>
    %185 = arith.mulf %183, %184 : vector<8x64xf32>
    %186 = vector.broadcast %165 : vector<1x64xf32> to vector<8x64xf32>
    %187 = arith.addf %185, %186 : vector<8x64xf32>
    %c0_108 = arith.constant 0 : index
    %c0_109 = arith.constant 0 : index
    %c0_110 = arith.constant 0 : index
    %188 = vector.load %arg30[%c0_108, %c0_109, %c0_110] : memref<1x8x64xf32, #tpu.memory_space<vmem>>, vector<1x8x64xf32>
    %189 = vector.shape_cast %188 : vector<1x8x64xf32> to vector<8x64xf32>
    %190 = vector.shape_cast %187 : vector<8x64xf32> to vector<1x8x64xf32>
    tpu.vector_store %arg30[%c0_108, %c0_109, %c0_110], %190 {strides = array<i32>} : memref<1x8x64xf32, #tpu.memory_space<vmem>>, vector<1x8x64xf32>,
    %c1_i32 = arith.constant 1 : i32
    %191 = arith.addi %arg1, %c1_i32 : i32
    %c8_i32 = arith.constant 8 : i32
    %192 = arith.cmpi slt, %191, %c8_i32 : i32
    %193 = arith.extui %192 : i1 to i32
    %c0_i32_111 = arith.constant 0 : i32
    %194 = arith.cmpi ne, %193, %c0_i32_111 : i32
    scf.if %194 {
      %c0_112 = arith.constant 0 : index
      %195 = arith.index_cast %arg1 : i32 to index
      %c0_113 = arith.constant 0 : index
      %196 = vector.load %arg30[%c0_112, %195, %c0_113] : memref<1x8x64xf32, #tpu.memory_space<vmem>>, vector<1x1x64xf32>
      %197 = vector.shape_cast %196 : vector<1x1x64xf32> to vector<1x64xf32>
      %c1_i32_114 = arith.constant 1 : i32
      %198 = arith.addi %arg1, %c1_i32_114 : i32
      %199 = arith.index_cast %198 : i32 to index
      %c0_115 = arith.constant 0 : index
      %200 = vector.load %arg31[%199, %c0_115] : memref<8x64xf32, #tpu.memory_space<vmem>>, vector<1x64xf32>
      tpu.vector_store %arg31[%199, %c0_115], %197 {strides = array<i32>} : memref<8x64xf32, #tpu.memory_space<vmem>>, vector<1x64xf32>,
    } else {
    }
    return
  }
  func.func @transform_0(%arg0: i32, %arg1: i32) -> (i32, i32, i32) {
    %c0_i32 = arith.constant 0 : i32
    %c0_i32_0 = arith.constant 0 : i32
    %c0_i32_1 = arith.constant 0 : i32
    return %arg0, %c0_i32, %c0_i32_0 : i32, i32, i32
  }
  func.func @transform_1(%arg0: i32, %arg1: i32) -> (i32, i32, i32) {
    %c0_i32 = arith.constant 0 : i32
    %c0_i32_0 = arith.constant 0 : i32
    %c0_i32_1 = arith.constant 0 : i32
    return %arg0, %c0_i32, %c0_i32_0 : i32, i32, i32
  }
  func.func @transform_2(%arg0: i32, %arg1: i32) -> (i32, i32, i32, i32) {
    %c0_i32 = arith.constant 0 : i32
    %c0_i32_0 = arith.constant 0 : i32
    %c0_i32_1 = arith.constant 0 : i32
    %c0_i32_2 = arith.constant 0 : i32
    return %arg0, %c0_i32, %c0_i32_0, %c0_i32_1 : i32, i32, i32, i32
  }
  func.func @transform_3(%arg0: i32, %arg1: i32) -> (i32, i32, i32, i32) {
    %c0_i32 = arith.constant 0 : i32
    %c0_i32_0 = arith.constant 0 : i32
    %c0_i32_1 = arith.constant 0 : i32
    %c0_i32_2 = arith.constant 0 : i32
    return %arg0, %c0_i32, %c0_i32_0, %c0_i32_1 : i32, i32, i32, i32
  }
  func.func @transform_4(%arg0: i32, %arg1: i32) -> (i32, i32) {
    %c0_i32 = arith.constant 0 : i32
    %c0_i32_0 = arith.constant 0 : i32
    %c0_i32_1 = arith.constant 0 : i32
    return %c0_i32, %c0_i32_0 : i32, i32
  }
  func.func @transform_5(%arg0: i32, %arg1: i32) -> (i32, i32) {
    %c0_i32 = arith.constant 0 : i32
    %c0_i32_0 = arith.constant 0 : i32
    %c0_i32_1 = arith.constant 0 : i32
    return %c0_i32, %c0_i32_0 : i32, i32
  }
  func.func @transform_6(%arg0: i32, %arg1: i32) -> (i32, i32, i32) {
    %c0_i32 = arith.constant 0 : i32
    %c0_i32_0 = arith.constant 0 : i32
    %c0_i32_1 = arith.constant 0 : i32
    %c0_i32_2 = arith.constant 0 : i32
    return %c0_i32, %c0_i32_0, %c0_i32_1 : i32, i32, i32
  }
  func.func @transform_7(%arg0: i32, %arg1: i32) -> (i32, i32, i32) {
    %c0_i32 = arith.constant 0 : i32
    %c0_i32_0 = arith.constant 0 : i32
    %c0_i32_1 = arith.constant 0 : i32
    %c0_i32_2 = arith.constant 0 : i32
    return %c0_i32, %c0_i32_0, %c0_i32_1 : i32, i32, i32
  }
  func.func @transform_8(%arg0: i32, %arg1: i32) -> (i32, i32, i32) {
    %c0_i32 = arith.constant 0 : i32
    %c0_i32_0 = arith.constant 0 : i32
    %c0_i32_1 = arith.constant 0 : i32
    %c0_i32_2 = arith.constant 0 : i32
    return %c0_i32, %c0_i32_0, %c0_i32_1 : i32, i32, i32
  }
  func.func @transform_9(%arg0: i32, %arg1: i32) -> (i32, i32, i32) {
    %c0_i32 = arith.constant 0 : i32
    %c0_i32_0 = arith.constant 0 : i32
    %c0_i32_1 = arith.constant 0 : i32
    %c0_i32_2 = arith.constant 0 : i32
    return %c0_i32, %c0_i32_0, %c0_i32_1 : i32, i32, i32
  }
  func.func @transform_10(%arg0: i32, %arg1: i32) -> (i32, i32, i32) {
    %c0_i32 = arith.constant 0 : i32
    %c0_i32_0 = arith.constant 0 : i32
    %c0_i32_1 = arith.constant 0 : i32
    %c0_i32_2 = arith.constant 0 : i32
    return %c0_i32, %c0_i32_0, %c0_i32_1 : i32, i32, i32
  }
  func.func @transform_11(%arg0: i32, %arg1: i32) -> (i32, i32, i32) {
    %c0_i32 = arith.constant 0 : i32
    %c0_i32_0 = arith.constant 0 : i32
    %c0_i32_1 = arith.constant 0 : i32
    %c0_i32_2 = arith.constant 0 : i32
    return %c0_i32, %c0_i32_0, %c0_i32_1 : i32, i32, i32
  }
  func.func @transform_12(%arg0: i32, %arg1: i32) -> (i32, i32, i32) {
    %c0_i32 = arith.constant 0 : i32
    %c0_i32_0 = arith.constant 0 : i32
    %c0_i32_1 = arith.constant 0 : i32
    %c0_i32_2 = arith.constant 0 : i32
    return %c0_i32, %c0_i32_0, %c0_i32_1 : i32, i32, i32
  }
  func.func @transform_13(%arg0: i32, %arg1: i32) -> (i32, i32) {
    %c0_i32 = arith.constant 0 : i32
    %c0_i32_0 = arith.constant 0 : i32
    %c0_i32_1 = arith.constant 0 : i32
    return %c0_i32, %c0_i32_0 : i32, i32
  }
  func.func @transform_14(%arg0: i32, %arg1: i32) -> (i32, i32, i32) {
    %c0_i32 = arith.constant 0 : i32
    %c0_i32_0 = arith.constant 0 : i32
    %c0_i32_1 = arith.constant 0 : i32
    %c0_i32_2 = arith.constant 0 : i32
    return %c0_i32, %c0_i32_0, %c0_i32_1 : i32, i32, i32
  }
  func.func @transform_15(%arg0: i32, %arg1: i32) -> (i32, i32, i32) {
    %c0_i32 = arith.constant 0 : i32
    %c0_i32_0 = arith.constant 0 : i32
    %c0_i32_1 = arith.constant 0 : i32
    %c0_i32_2 = arith.constant 0 : i32
    return %c0_i32, %c0_i32_0, %c0_i32_1 : i32, i32, i32
  }
  func.func @transform_16(%arg0: i32, %arg1: i32) -> (i32, i32, i32) {
    %c0_i32 = arith.constant 0 : i32
    %c0_i32_0 = arith.constant 0 : i32
    %c0_i32_1 = arith.constant 0 : i32
    %c0_i32_2 = arith.constant 0 : i32
    return %c0_i32, %c0_i32_0, %c0_i32_1 : i32, i32, i32
  }
  func.func @transform_17(%arg0: i32, %arg1: i32) -> (i32, i32) {
    %c0_i32 = arith.constant 0 : i32
    %c0_i32_0 = arith.constant 0 : i32
    %c0_i32_1 = arith.constant 0 : i32
    return %c0_i32, %c0_i32_0 : i32, i32
  }
  func.func @transform_18(%arg0: i32, %arg1: i32) -> (i32, i32) {
    %c0_i32 = arith.constant 0 : i32
    %c0_i32_0 = arith.constant 0 : i32
    %c0_i32_1 = arith.constant 0 : i32
    return %c0_i32, %c0_i32_0 : i32, i32
  }
  func.func @transform_19(%arg0: i32, %arg1: i32) -> (i32, i32) {
    %c0_i32 = arith.constant 0 : i32
    %c0_i32_0 = arith.constant 0 : i32
    %c0_i32_1 = arith.constant 0 : i32
    return %c0_i32, %c0_i32_0 : i32, i32
  }
  func.func @transform_20(%arg0: i32, %arg1: i32) -> (i32, i32) {
    %c0_i32 = arith.constant 0 : i32
    %c0_i32_0 = arith.constant 0 : i32
    %c0_i32_1 = arith.constant 0 : i32
    return %c0_i32, %c0_i32_0 : i32, i32
  }
  func.func @transform_21(%arg0: i32, %arg1: i32) -> (i32, i32) {
    %c0_i32 = arith.constant 0 : i32
    %c0_i32_0 = arith.constant 0 : i32
    %c0_i32_1 = arith.constant 0 : i32
    return %c0_i32, %c0_i32_0 : i32, i32
  }
  func.func @transform_22(%arg0: i32, %arg1: i32) -> (i32, i32) {
    %c0_i32 = arith.constant 0 : i32
    %c0_i32_0 = arith.constant 0 : i32
    %c0_i32_1 = arith.constant 0 : i32
    return %c0_i32, %c0_i32_0 : i32, i32
  }
  func.func @transform_23(%arg0: i32, %arg1: i32) -> (i32, i32) {
    %c0_i32 = arith.constant 0 : i32
    %c0_i32_0 = arith.constant 0 : i32
    %c0_i32_1 = arith.constant 0 : i32
    return %c0_i32, %c0_i32_0 : i32, i32
  }
  func.func @transform_24(%arg0: i32, %arg1: i32) -> (i32, i32) {
    %c0_i32 = arith.constant 0 : i32
    %c0_i32_0 = arith.constant 0 : i32
    %c0_i32_1 = arith.constant 0 : i32
    return %c0_i32, %c0_i32_0 : i32, i32
  }
  func.func @transform_25(%arg0: i32, %arg1: i32) -> (i32, i32) {
    %c0_i32 = arith.constant 0 : i32
    %c0_i32_0 = arith.constant 0 : i32
    %c0_i32_1 = arith.constant 0 : i32
    return %c0_i32, %c0_i32_0 : i32, i32
  }
  func.func @transform_26(%arg0: i32, %arg1: i32) -> (i32, i32) {
    %c0_i32 = arith.constant 0 : i32
    %c0_i32_0 = arith.constant 0 : i32
    %c0_i32_1 = arith.constant 0 : i32
    return %c0_i32, %c0_i32_0 : i32, i32
  }
  func.func @transform_27(%arg0: i32, %arg1: i32) -> (i32, i32) {
    %c0_i32 = arith.constant 0 : i32
    %c0_i32_0 = arith.constant 0 : i32
    %c0_i32_1 = arith.constant 0 : i32
    return %c0_i32, %c0_i32_0 : i32, i32
  }
  func.func @transform_28(%arg0: i32, %arg1: i32) -> (i32, i32, i32) {
    %c0_i32 = arith.constant 0 : i32
    %c0_i32_0 = arith.constant 0 : i32
    %c0_i32_1 = arith.constant 0 : i32
    return %arg0, %c0_i32, %c0_i32_0 : i32, i32, i32
  }
}

</mosaic_0001>

<llo_original>
// kernel: imitator_forward.5
$region0: #{imitator_forward.5}
  #allocation0 [shape = 'u32[]', space=smem, size = 0x4, offset = 0x4, fixed_abs, tag = 'smem constant byte address 0x4 - core index']
  #allocation1 [shape = 'u32[72,128]{1,0:T(1,128)}', space=vmem, size = 0x9000, scoped, tag = 'internal scratch']
  %s0 = inlined_call_operand.vmem [shape: f32[2,8,64], index: 0, kind: input, shape index: {}]
  %s1 = inlined_call_operand.vmem [shape: f32[2,1,64], index: 1, kind: input, shape index: {}]
  %s2 = inlined_call_operand.vmem [shape: f32[2,1,128], index: 2, kind: input, shape index: {}]
  %s3 = inlined_call_operand.vmem [shape: bf16[64,128], index: 3, kind: input, shape index: {}]
  %s4 = inlined_call_operand.vmem [shape: f32[1,128], index: 4, kind: input, shape index: {}]
  %s5 = inlined_call_operand.vmem [shape: f32[2,8,128], index: 5, kind: output, shape index: {}]
  %s6 = sld [smem:[#allocation0]]
  $region53: #{imitator_forward.5} parent=0
    _
  %s8 = ssub.s32 1, %s6
  %s9 = scalar_select 0, %s8, %s6
  loop: start=0, step=1, limit=4
  $region2: #{imitator_forward.5} parent=0 // loop_pre_header
    _
  $region3: #{imitator_forward.5} parent=0 // loop_header
    %s11 = sphi 0, %s15
    %p12 = scmp.ge.s32.totalorder %s11, 4
    %s18 = sphi 0, %s30
    %s19 = sphi 0, %s26
    %s20 = sphi 0, %s18
    %s21 = sphi 0, %s19
    %s22 = sphi 0, %s20
    %s23 = sphi 0, %s21
    %s33 = sphi 0, %s35
    %s36 = sphi 0, %s33
    %s37 = sphi 0, %s36
    %s53 = sphi 0, %s37
    %s59 = sphi 0, %s61
    %s62 = sphi 0, %s59
    %s63 = sphi 0, %s62
    %s79 = sphi 0, %s63
    %s87 = sphi 0, %s89
    %s90 = sphi 0, %s87
    %s91 = sphi 0, %s90
    %s107 = sphi 0, %s91
    %s113 = sphi 0, %s115
    %s116 = sphi 0, %s113
    %s117 = sphi 0, %s116
    %s133 = sphi 0, %s117
    %s139 = sphi 0, %s141
    %s142 = sphi 0, %s139
    %s143 = sphi 0, %s142
    %s159 = sphi 0, %s143
    %s167 = sphi 0, %s169
    %s170 = sphi 0, %s167
    %s171 = sphi 0, %s170
    %s187 = sphi 0, %s171
  $region4: #{imitator_forward.5} parent=0 // loop_header_branch
    %14 = sbr.rel (%p12) target = $region8
  $region5: #{imitator_forward.5} parent=0 // loop_body
    %s16 = ssub.s32 %s11, 1
    %s17 = ssub.s32 %s11, 2
    %s24 = sadd.s32 1, %s19
    %p25 = scmp.ge.s32.totalorder %s24, 1
    %s26 = scalar_select %p25, 0, %s24
    %s27 = sadd.s32 1, %s18
    %s28 = scalar_select %p25, %s27, %s18
    %p29 = scmp.ge.s32.totalorder %s28, 2
    %s30 = scalar_select %p29, 0, %s28
    %s31 = ssub.s32 %s18, %s30
    %p32 = scmp.eq.s32.totalorder %s31, 0
    %s34 = sadd.s32 %s33, 1
    %s35 = scalar_select %p32, %s33, %s34
    %p38 = pneg %p32
    %p39 = scmp.eq.s32.totalorder %s11, 1
    %p40 = por %p38, %p39
    %p41 = scmp.ne.s32.totalorder %s33, %s36
    %p42 = scmp.eq.s32.totalorder %s11, 0
    %p43 = por %p41, %p42
    %p44 = scmp.ne.s32.totalorder %s33, %s36
    %p45 = scmp.eq.s32.totalorder %s16, 1
    %p46 = por %p44, %p45
    %p47 = scmp.ne.s32.totalorder %s36, %s37
    %p48 = scmp.eq.s32.totalorder %s16, 0
    %p49 = por %p47, %p48
    %p50 = scmp.ne.s32.totalorder %s36, %s37
    %p51 = scmp.eq.s32.totalorder %s17, 1
    %p52 = por %p50, %p51
    %p54 = scmp.ne.s32.totalorder %s37, %s53
    %p55 = scmp.eq.s32.totalorder %s17, 0
    %p56 = por %p54, %p55
    %s57 = ssub.s32 %s18, %s30
    %p58 = scmp.eq.s32.totalorder %s57, 0
    %s60 = sadd.s32 %s59, 1
    %s61 = scalar_select %p58, %s59, %s60
    %p64 = pneg %p58
    %p65 = scmp.eq.s32.totalorder %s11, 1
    %p66 = por %p64, %p65
    %p67 = scmp.ne.s32.totalorder %s59, %s62
    %p68 = scmp.eq.s32.totalorder %s11, 0
    %p69 = por %p67, %p68
    %p70 = scmp.ne.s32.totalorder %s59, %s62
    %p71 = scmp.eq.s32.totalorder %s16, 1
    %p72 = por %p70, %p71
    %p73 = scmp.ne.s32.totalorder %s62, %s63
    %p74 = scmp.eq.s32.totalorder %s16, 0
    %p75 = por %p73, %p74
    %p76 = scmp.ne.s32.totalorder %s62, %s63
    %p77 = scmp.eq.s32.totalorder %s17, 1
    %p78 = por %p76, %p77
    %p80 = scmp.ne.s32.totalorder %s63, %s79
    %p81 = scmp.eq.s32.totalorder %s17, 0
    %p82 = por %p80, %p81
    %s83 = ssub.s32 %s18, %s30
    %s84 = ssub.s32 %s19, %s26
    %s85 = sor.u32 %s83, %s84
    %p86 = scmp.eq.s32.totalorder %s85, 0
    %s88 = sadd.s32 %s87, 1
    %s89 = scalar_select %p86, %s87, %s88
    %p92 = pneg %p86
    %p93 = scmp.eq.s32.totalorder %s11, 1
    %p94 = por %p92, %p93
    %p95 = scmp.ne.s32.totalorder %s87, %s90
    %p96 = scmp.eq.s32.totalorder %s11, 0
    %p97 = por %p95, %p96
    %p98 = scmp.ne.s32.totalorder %s87, %s90
    %p99 = scmp.eq.s32.totalorder %s16, 1
    %p100 = por %p98, %p99
    %p101 = scmp.ne.s32.totalorder %s90, %s91
    %p102 = scmp.eq.s32.totalorder %s16, 0
    %p103 = por %p101, %p102
    %p104 = scmp.ne.s32.totalorder %s90, %s91
    %p105 = scmp.eq.s32.totalorder %s17, 1
    %p106 = por %p104, %p105
    %p108 = scmp.ne.s32.totalorder %s91, %s107
    %p109 = scmp.eq.s32.totalorder %s17, 0
    %p110 = por %p108, %p109
    %s111 = ssub.s32 %s19, %s26
    %p112 = scmp.eq.s32.totalorder %s111, 0
    %s114 = sadd.s32 %s113, 1
    %s115 = scalar_select %p112, %s113, %s114
    %p118 = pneg %p112
    %p119 = scmp.eq.s32.totalorder %s11, 1
    %p120 = por %p118, %p119
    %p121 = scmp.ne.s32.totalorder %s113, %s116
    %p122 = scmp.eq.s32.totalorder %s11, 0
    %p123 = por %p121, %p122
    %p124 = scmp.ne.s32.totalorder %s113, %s116
    %p125 = scmp.eq.s32.totalorder %s16, 1
    %p126 = por %p124, %p125
    %p127 = scmp.ne.s32.totalorder %s116, %s117
    %p128 = scmp.eq.s32.totalorder %s16, 0
    %p129 = por %p127, %p128
    %p130 = scmp.ne.s32.totalorder %s116, %s117
    %p131 = scmp.eq.s32.totalorder %s17, 1
    %p132 = por %p130, %p131
    %p134 = scmp.ne.s32.totalorder %s117, %s133
    %p135 = scmp.eq.s32.totalorder %s17, 0
    %p136 = por %p134, %p135
    %s137 = ssub.s32 %s19, %s26
    %p138 = scmp.eq.s32.totalorder %s137, 0
    %s140 = sadd.s32 %s139, 1
    %s141 = scalar_select %p138, %s139, %s140
    %p144 = pneg %p138
    %p145 = scmp.eq.s32.totalorder %s11, 1
    %p146 = por %p144, %p145
    %p147 = scmp.ne.s32.totalorder %s139, %s142
    %p148 = scmp.eq.s32.totalorder %s11, 0
    %p149 = por %p147, %p148
    %p150 = scmp.ne.s32.totalorder %s139, %s142
    %p151 = scmp.eq.s32.totalorder %s16, 1
    %p152 = por %p150, %p151
    %p153 = scmp.ne.s32.totalorder %s142, %s143
    %p154 = scmp.eq.s32.totalorder %s16, 0
    %p155 = por %p153, %p154
    %p156 = scmp.ne.s32.totalorder %s142, %s143
    %p157 = scmp.eq.s32.totalorder %s17, 1
    %p158 = por %p156, %p157
    %p160 = scmp.ne.s32.totalorder %s143, %s159
    %p161 = scmp.eq.s32.totalorder %s17, 0
    %p162 = por %p160, %p161
    %s163 = ssub.s32 %s18, %s30
    %s164 = ssub.s32 %s19, %s26
    %s165 = sor.u32 %s163, %s164
    %p166 = scmp.eq.s32.totalorder %s165, 0
    %s168 = sadd.s32 %s167, 1
    %s169 = scalar_select %p166, %s167, %s168
    %p172 = pneg %p166
    %p173 = scmp.eq.s32.totalorder %s11, 1
    %p174 = por %p172, %p173
    %p175 = scmp.ne.s32.totalorder %s167, %s170
    %p176 = scmp.eq.s32.totalorder %s11, 0
    %p177 = por %p175, %p176
    %p178 = scmp.ne.s32.totalorder %s167, %s170
    %p179 = scmp.eq.s32.totalorder %s16, 1
    %p180 = por %p178, %p179
    %p181 = scmp.ne.s32.totalorder %s170, %s171
    %p182 = scmp.eq.s32.totalorder %s16, 0
    %p183 = por %p181, %p182
    %p184 = scmp.ne.s32.totalorder %s170, %s171
    %p185 = scmp.eq.s32.totalorder %s17, 1
    %p186 = por %p184, %p185
    %p188 = scmp.ne.s32.totalorder %s171, %s187
    %p189 = scmp.eq.s32.totalorder %s17, 0
    %p190 = por %p188, %p189
    %p191 = scmp.le.s32.totalorder 1, %s11
    %p192 = scmp.lt.s32.totalorder %s11, 3
    %p193 = pnand %p191, %p192
    %p194 = pneg %p193
    // Predicated region
    $region9: #{imitator_forward.5} parent=5 // pred_check
      _
    $region10: #{imitator_forward.5} parent=5 // pred_check_branch
      %196 = sbr.rel (%p193) target = $region12
    $region11: #{imitator_forward.5} parent=5 // pred_region
      %s197 = ssub.s32 %s11, 1
      // Predicated region
      $region13: #{imitator_forward.5} parent=11 // pred_check
        %p198 = pneg %p129
      $region14: #{imitator_forward.5} parent=11 // pred_check_branch
        %200 = sbr.rel (%p198) target = $region16
      $region15: #{imitator_forward.5} parent=11 // pred_region
        %p201 = scmp.lt.s32.totalorder %s21, 0
        %s202 = scalar_select %p201, %s21, 0
        %s203 = smul.addr %s202, 4
        %s204 = scalar_lea.vmem %s3, %s203
      $region16: #{imitator_forward.5} parent=11 // pred_fallthru
        _
      // Predicated region
      $region17: #{imitator_forward.5} parent=11 // pred_check
        %p205 = pneg %p155
      $region18: #{imitator_forward.5} parent=11 // pred_check_branch
        %207 = sbr.rel (%p205) target = $region20
      $region19: #{imitator_forward.5} parent=11 // pred_region
        %p208 = scmp.lt.s32.totalorder %s21, 0
        %s209 = scalar_select %p208, %s21, 0
        %s210 = scalar_lea.vmem %s4, %s209
      $region20: #{imitator_forward.5} parent=11 // pred_fallthru
        _
    $region12: #{imitator_forward.5} parent=5 // pred_fallthru
      _
    %p211 = scmp.lt.s32.totalorder %s11, 2
    // Predicated region
    $region21: #{imitator_forward.5} parent=5 // pred_check
      %p212 = pneg %p211
    $region22: #{imitator_forward.5} parent=5 // pred_check_branch
      %214 = sbr.rel (%p212) target = $region24
    $region23: #{imitator_forward.5} parent=5 // pred_region
      // Predicated region
      $region25: #{imitator_forward.5} parent=23 // pred_check
        %p215 = pneg %p43
      $region26: #{imitator_forward.5} parent=23 // pred_check_branch
        %217 = sbr.rel (%p215) target = $region28
      $region27: #{imitator_forward.5} parent=23 // pred_region
        %p218 = scmp.lt.s32.totalorder %s18, 1
        %s219 = scalar_select %p218, %s18, 1
        %s220 = smul.addr %s219, 8
        %s221 = scalar_lea.vmem %s0, %s220
      $region28: #{imitator_forward.5} parent=23 // pred_fallthru
        _
      // Predicated region
      $region29: #{imitator_forward.5} parent=23 // pred_check
        %p222 = pneg %p69
      $region30: #{imitator_forward.5} parent=23 // pred_check_branch
        %224 = sbr.rel (%p222) target = $region32
      $region31: #{imitator_forward.5} parent=23 // pred_region
        %p225 = scmp.lt.s32.totalorder %s18, 1
        %s226 = scalar_select %p225, %s18, 1
        %s227 = scalar_lea.vmem %s1, %s226
      $region32: #{imitator_forward.5} parent=23 // pred_fallthru
        _
      // Predicated region
      $region33: #{imitator_forward.5} parent=23 // pred_check
        %p228 = pneg %p97
      $region34: #{imitator_forward.5} parent=23 // pred_check_branch
        %230 = sbr.rel (%p228) target = $region36
      $region35: #{imitator_forward.5} parent=23 // pred_region
        %p231 = scmp.lt.s32.totalorder %s18, 1
        %s232 = scalar_select %p231, %s18, 1
        %p233 = scmp.lt.s32.totalorder %s19, 0
        %s234 = scalar_select %p233, %s19, 0
        %s235 = sadd.s32 %s234, %s232
        %s236 = scalar_lea.vmem %s2, %s235
      $region36: #{imitator_forward.5} parent=23 // pred_fallthru
        _
    $region24: #{imitator_forward.5} parent=5 // pred_fallthru
      _
    %p237 = scmp.le.s32.totalorder 1, %s11
    %p238 = scmp.lt.s32.totalorder %s11, 3
    %p239 = pnand %p237, %p238
    %p240 = pneg %p239
    // Predicated region
    $region37: #{imitator_forward.5} parent=5 // pred_check
      _
    $region38: #{imitator_forward.5} parent=5 // pred_check_branch
      %242 = sbr.rel (%p239) target = $region40
    $region39: #{imitator_forward.5} parent=5 // pred_region
      %s243 = ssub.s32 %s11, 1
      %p244 = scmp.lt.s32.totalorder %s20, 1
      %s245 = scalar_select %p244, %s20, 1
      %s246 = smul.addr %s245, 8
      %s247 = scalar_lea.vmem %s0, %s246
      %p248 = pneg %p49
      %p249 = pneg %p46
      %p250 = scmp.lt.s32.totalorder %s20, 1
      %s251 = scalar_select %p250, %s20, 1
      %s252 = scalar_lea.vmem %s1, %s251
      %p253 = pneg %p75
      %p254 = pneg %p72
      %p255 = scmp.lt.s32.totalorder %s20, 1
      %s256 = scalar_select %p255, %s20, 1
      %p257 = scmp.lt.s32.totalorder %s21, 0
      %s258 = scalar_select %p257, %s21, 0
      %s259 = sadd.s32 %s258, %s256
      %s260 = scalar_lea.vmem %s2, %s259
      %p261 = pneg %p103
      %p262 = pneg %p100
      %p263 = scmp.lt.s32.totalorder %s21, 0
      %s264 = scalar_select %p263, %s21, 0
      %s265 = smul.addr %s264, 4
      %s266 = scalar_lea.vmem %s3, %s265
      %p267 = pneg %p129
      %p268 = pneg %p126
      %p269 = scmp.lt.s32.totalorder %s21, 0
      %s270 = scalar_select %p269, %s21, 0
      %s271 = scalar_lea.vmem %s4, %s270
      %p272 = pneg %p155
      %p273 = pneg %p152
      %p274 = pneg %p183
      %p275 = pneg %p180
      %p276 = scmp.lt.s32.totalorder %s20, 1
      %s277 = scalar_select %p276, %s20, 1
      %p278 = scmp.lt.s32.totalorder %s21, 0
      %s279 = scalar_select %p278, %s21, 0
      %s280 = sadd.s32 %s279, %s277
      %s281 = smul.addr %s280, 8
      %s282 = scalar_lea.vmem %s5, %s281
      %p283 = scmp.lt.s32.totalorder %s20, 1
      %s284 = scalar_select %p283, %s20, 1
      %s285 = smul.addr %s284, 8
      %s286 = scalar_lea.vmem %s0, %s285
      %p287 = scmp.lt.s32.totalorder %s20, 1
      %s288 = scalar_select %p287, %s20, 1
      %s289 = scalar_lea.vmem %s1, %s288
      %p290 = scmp.lt.s32.totalorder %s20, 1
      %s291 = scalar_select %p290, %s20, 1
      %p292 = scmp.lt.s32.totalorder %s21, 0
      %s293 = scalar_select %p292, %s21, 0
      %s294 = sadd.s32 %s293, %s291
      %s295 = scalar_lea.vmem %s2, %s294
      %p296 = scmp.lt.s32.totalorder %s21, 0
      %s297 = scalar_select %p296, %s21, 0
      %s298 = smul.addr %s297, 4
      %s299 = scalar_lea.vmem %s3, %s298
      %p300 = scmp.lt.s32.totalorder %s21, 0
      %s301 = scalar_select %p300, %s21, 0
      %s302 = scalar_lea.vmem %s4, %s301
      %p303 = scmp.lt.s32.totalorder %s20, 1
      %s304 = scalar_select %p303, %s20, 1
      %p305 = scmp.lt.s32.totalorder %s21, 0
      %s306 = scalar_select %p305, %s21, 0
      %s307 = sadd.s32 %s306, %s304
      %s308 = smul.addr %s307, 8
      %s309 = scalar_lea.vmem %s5, %s308
      %v311 = vld [vmem:[%s286] sm:$0xff]
      %v312 = vld [vmem:[%s289] sm:$0x1]
      %v314 = vperm.slane %v312, 0
      %v316 = vadd.f32 %v311, %v314
      %v317 = vpack.c.bf16 %v316, %v316
      %v318 = vld [vmem:[%s299] sm:$0xf]
      %v319 = vld [vmem:[%s299 + $0x4] sm:$0xf]
      %v320 = vld [vmem:[%s299 + $0x8] sm:$0xf]
      %v321 = vld [vmem:[%s299 + $0xc] sm:$0xf]
      %v322 = vld [vmem:[%s299 + $0x10] sm:$0xf]
      %v323 = vld [vmem:[%s299 + $0x14] sm:$0xf]
      %v324 = vld [vmem:[%s299 + $0x18] sm:$0xf]
      %v325 = vld [vmem:[%s299 + $0x1c] sm:$0xf]
      %v326 = vld [vmem:[%s302] sm:$0x1]
      %v328 = vperm.slane %v326, 0
      %v338 = vunpack.c.l.b16 %v318
      %v339 = vunpack.c.l.b16 %v319
      %v340 = vunpack.c.l.b16 %v320
      %v341 = vunpack.c.l.b16 %v321
      %v342 = vunpack.c.l.b16 %v322
      %v343 = vunpack.c.l.b16 %v323
      %v344 = vunpack.c.l.b16 %v324
      %v345 = vunpack.c.l.b16 %v325
      %v346 = vpack.c.b16 %v339, %v338
      %v347 = vpack.c.b16 %v341, %v340
      %v348 = vpack.c.b16 %v343, %v342
      %v349 = vpack.c.b16 %v345, %v344
      %vm354 = vcmask 523264
      %v356 = vsel %vm354, %v317, 0
      %358 = vmatpush.bf16.msra.mxu0 0
      %359 = vmatpush.bf16.msra.mxu0 0
      %360 = vmatpush.bf16.msra.mxu0 0
      %361 = vmatpush.bf16.msra.mxu0 0
      %362 = vmatpush.bf16.msra.mxu0 %v349
      %363 = vmatpush.bf16.msra.mxu0 %v348
      %364 = vmatpush.bf16.msra.mxu0 %v347
      %365 = vmatpush.bf16.msra.mxu0 %v346
      %366 = vmatmul.bf16.gmra.mxu0 %v356
      %v367 = vpop.f32.mrf.mxu0
      %v368 = vadd.f32 %v328, %v367
      %v369 = vpop.f32.mrf.mxu0
      %370 = vdwg.mxu0
      %v371 = vld [vmem:[%s295] sm:$0x1]
      %v373 = vperm.slane %v371, 0
      %v375 = vadd.f32 %v368, %v373
      %376 = vst [vmem:[%s309] sm:$0xff] %v375
      %p377 = scmp.lt.s32.totalorder %s20, 1
      %s378 = scalar_select %p377, %s20, 1
      %p379 = scmp.lt.s32.totalorder %s21, 0
      %s380 = scalar_select %p379, %s21, 0
      %s381 = sadd.s32 %s380, %s378
      %s382 = smul.addr %s381, 8
      %s383 = scalar_lea.vmem %s5, %s382
      // Predicated region
      $region41: #{imitator_forward.5} parent=39 // pred_check
        %p384 = pneg %p180
      $region42: #{imitator_forward.5} parent=39 // pred_check_branch
        %386 = sbr.rel (%p384) target = $region44
      $region43: #{imitator_forward.5} parent=39 // pred_region
        _
      $region44: #{imitator_forward.5} parent=39 // pred_fallthru
        _
    $region40: #{imitator_forward.5} parent=5 // pred_fallthru
      _
    %p387 = scmp.le.s32.totalorder 2, %s11
    // Predicated region
    $region45: #{imitator_forward.5} parent=5 // pred_check
      %p388 = pneg %p387
    $region46: #{imitator_forward.5} parent=5 // pred_check_branch
      %390 = sbr.rel (%p388) target = $region48
    $region47: #{imitator_forward.5} parent=5 // pred_region
      %s391 = ssub.s32 %s11, 2
      // Predicated region
      $region49: #{imitator_forward.5} parent=47 // pred_check
        %p392 = pneg %p186
      $region50: #{imitator_forward.5} parent=47 // pred_check_branch
        %394 = sbr.rel (%p392) target = $region52
      $region51: #{imitator_forward.5} parent=47 // pred_region
        %p395 = scmp.lt.s32.totalorder %s22, 1
        %s396 = scalar_select %p395, %s22, 1
        %p397 = scmp.lt.s32.totalorder %s23, 0
        %s398 = scalar_select %p397, %s23, 0
        %s399 = sadd.s32 %s398, %s396
        %s400 = smul.addr %s399, 8
        %s401 = scalar_lea.vmem %s5, %s400
      $region52: #{imitator_forward.5} parent=47 // pred_fallthru
        _
    $region48: #{imitator_forward.5} parent=5 // pred_fallthru
      _
  $region6: #{imitator_forward.5} parent=0 // loop_footer
    %s15 = sadd.s32 1, %s11
  $region7: #{imitator_forward.5} parent=0 // loop_footer_branch
    %10 = sbr.rel target = $region3
  $region8: #{imitator_forward.5} parent=0 // loop_exit
    _

// kernel: imitator_forward.3
$region0: #{imitator_forward.3}
  #allocation0 [shape = 'u32[]', space=smem, size = 0x4, offset = 0x4, fixed_abs, tag = 'smem constant byte address 0x4 - core index']
  #allocation1 [shape = 'u32[72,128]{1,0:T(1,128)}', space=vmem, size = 0x9000, scoped, tag = 'internal scratch']
  %s0 = inlined_call_operand.vmem [shape: f32[2,8,768], index: 0, kind: input, shape index: {}]
  %s1 = inlined_call_operand.vmem [shape: f32[2,1,8], index: 1, kind: input, shape index: {}]
  %s2 = inlined_call_operand.vmem [shape: bf16[768,64], index: 2, kind: input, shape index: {}]
  %s3 = inlined_call_operand.vmem [shape: f32[1,64], index: 3, kind: input, shape index: {}]
  %s4 = inlined_call_operand.vmem [shape: bf16[4,64,16], index: 4, kind: input, shape index: {}]
  %s5 = inlined_call_operand.vmem [shape: f32[4,1,16], index: 5, kind: input, shape index: {}]
  %s6 = inlined_call_operand.vmem [shape: bf16[4,64,16], index: 6, kind: input, shape index: {}]
  %s7 = inlined_call_operand.vmem [shape: f32[4,1,16], index: 7, kind: input, shape index: {}]
  %s8 = inlined_call_operand.vmem [shape: bf16[8,64], index: 8, kind: input, shape index: {}]
  %s9 = inlined_call_operand.vmem [shape: bf16[2,4,8,16], index: 9, kind: output, shape index: {0}]
  %s10 = inlined_call_operand.vmem [shape: bf16[2,4,8,16], index: 10, kind: output, shape index: {1}]
  %s11 = inlined_call_operand.vmem [shape: f32[2,1,64], index: 11, kind: output, shape index: {2}]
  %12 = xla_tuple %s9, %s10, %s11
  %s13 = sld [smem:[#allocation0]]
  $region85: #{imitator_forward.3} parent=0
    _
  %s15 = ssub.s32 1, %s13
  %s16 = scalar_select 0, %s15, %s13
  loop: start=0, step=1, limit=4
  $region2: #{imitator_forward.3} parent=0 // loop_pre_header
    _
  $region3: #{imitator_forward.3} parent=0 // loop_header
    %s18 = sphi 0, %s22
    %p19 = scmp.ge.s32.totalorder %s18, 4
    %s28 = sphi 0, %s30
    %s31 = sphi 0, %s28
    %s32 = sphi 0, %s31
    %s48 = sphi 0, %s32
    %s54 = sphi 0, %s56
    %s57 = sphi 0, %s54
    %s58 = sphi 0, %s57
    %s74 = sphi 0, %s58
    %s78 = sphi 0, %s78
    %s80 = sphi 0, %s78
    %s81 = sphi 0, %s80
    %s95 = sphi 0, %s81
    %s99 = sphi 0, %s99
    %s101 = sphi 0, %s99
    %s102 = sphi 0, %s101
    %s116 = sphi 0, %s102
    %s120 = sphi 0, %s120
    %s122 = sphi 0, %s120
    %s123 = sphi 0, %s122
    %s137 = sphi 0, %s123
    %s141 = sphi 0, %s141
    %s143 = sphi 0, %s141
    %s144 = sphi 0, %s143
    %s158 = sphi 0, %s144
    %s162 = sphi 0, %s162
    %s164 = sphi 0, %s162
    %s165 = sphi 0, %s164
    %s179 = sphi 0, %s165
    %s183 = sphi 0, %s183
    %s185 = sphi 0, %s183
    %s186 = sphi 0, %s185
    %s200 = sphi 0, %s186
    %s204 = sphi 0, %s204
    %s206 = sphi 0, %s204
    %s207 = sphi 0, %s206
    %s221 = sphi 0, %s207
    %s227 = sphi 0, %s229
    %s230 = sphi 0, %s227
    %s231 = sphi 0, %s230
    %s247 = sphi 0, %s231
    %s253 = sphi 0, %s255
    %s256 = sphi 0, %s253
    %s257 = sphi 0, %s256
    %s273 = sphi 0, %s257
    %s279 = sphi 0, %s281
    %s282 = sphi 0, %s279
    %s283 = sphi 0, %s282
    %s299 = sphi 0, %s283
  $region4: #{imitator_forward.3} parent=0 // loop_header_branch
    %21 = sbr.rel (%p19) target = $region8
  $region5: #{imitator_forward.3} parent=0 // loop_body
    %s23 = ssub.s32 %s18, 1
    %s24 = ssub.s32 %s18, 2
    %s25 = sadd.s32 %s18, 1
    %s26 = ssub.s32 %s18, %s25
    %p27 = scmp.eq.s32.totalorder %s26, 0
    %s29 = sadd.s32 %s28, 1
    %s30 = scalar_select %p27, %s28, %s29
    %p33 = pneg %p27
    %p34 = scmp.eq.s32.totalorder %s18, 1
    %p35 = por %p33, %p34
    %p36 = scmp.ne.s32.totalorder %s28, %s31
    %p37 = scmp.eq.s32.totalorder %s18, 0
    %p38 = por %p36, %p37
    %p39 = scmp.ne.s32.totalorder %s28, %s31
    %p40 = scmp.eq.s32.totalorder %s23, 1
    %p41 = por %p39, %p40
    %p42 = scmp.ne.s32.totalorder %s31, %s32
    %p43 = scmp.eq.s32.totalorder %s23, 0
    %p44 = por %p42, %p43
    %p45 = scmp.ne.s32.totalorder %s31, %s32
    %p46 = scmp.eq.s32.totalorder %s24, 1
    %p47 = por %p45, %p46
    %p49 = scmp.ne.s32.totalorder %s32, %s48
    %p50 = scmp.eq.s32.totalorder %s24, 0
    %p51 = por %p49, %p50
    %s52 = ssub.s32 %s18, %s25
    %p53 = scmp.eq.s32.totalorder %s52, 0
    %s55 = sadd.s32 %s54, 1
    %s56 = scalar_select %p53, %s54, %s55
    %p59 = pneg %p53
    %p60 = scmp.eq.s32.totalorder %s18, 1
    %p61 = por %p59, %p60
    %p62 = scmp.ne.s32.totalorder %s54, %s57
    %p63 = scmp.eq.s32.totalorder %s18, 0
    %p64 = por %p62, %p63
    %p65 = scmp.ne.s32.totalorder %s54, %s57
    %p66 = scmp.eq.s32.totalorder %s23, 1
    %p67 = por %p65, %p66
    %p68 = scmp.ne.s32.totalorder %s57, %s58
    %p69 = scmp.eq.s32.totalorder %s23, 0
    %p70 = por %p68, %p69
    %p71 = scmp.ne.s32.totalorder %s57, %s58
    %p72 = scmp.eq.s32.totalorder %s24, 1
    %p73 = por %p71, %p72
    %p75 = scmp.ne.s32.totalorder %s58, %s74
    %p76 = scmp.eq.s32.totalorder %s24, 0
    %p77 = por %p75, %p76
    %s79 = sadd.s32 %s78, 1
    %p82 = scmp.eq.s32.totalorder %s18, 1
    %p83 = scmp.ne.s32.totalorder %s78, %s80
    %p84 = scmp.eq.s32.totalorder %s18, 0
    %p85 = por %p83, %p84
    %p86 = scmp.ne.s32.totalorder %s78, %s80
    %p87 = scmp.eq.s32.totalorder %s23, 1
    %p88 = por %p86, %p87
    %p89 = scmp.ne.s32.totalorder %s80, %s81
    %p90 = scmp.eq.s32.totalorder %s23, 0
    %p91 = por %p89, %p90
    %p92 = scmp.ne.s32.totalorder %s80, %s81
    %p93 = scmp.eq.s32.totalorder %s24, 1
    %p94 = por %p92, %p93
    %p96 = scmp.ne.s32.totalorder %s81, %s95
    %p97 = scmp.eq.s32.totalorder %s24, 0
    %p98 = por %p96, %p97
    %s100 = sadd.s32 %s99, 1
    %p103 = scmp.eq.s32.totalorder %s18, 1
    %p104 = scmp.ne.s32.totalorder %s99, %s101
    %p105 = scmp.eq.s32.totalorder %s18, 0
    %p106 = por %p104, %p105
    %p107 = scmp.ne.s32.totalorder %s99, %s101
    %p108 = scmp.eq.s32.totalorder %s23, 1
    %p109 = por %p107, %p108
    %p110 = scmp.ne.s32.totalorder %s101, %s102
    %p111 = scmp.eq.s32.totalorder %s23, 0
    %p112 = por %p110, %p111
    %p113 = scmp.ne.s32.totalorder %s101, %s102
    %p114 = scmp.eq.s32.totalorder %s24, 1
    %p115 = por %p113, %p114
    %p117 = scmp.ne.s32.totalorder %s102, %s116
    %p118 = scmp.eq.s32.totalorder %s24, 0
    %p119 = por %p117, %p118
    %s121 = sadd.s32 %s120, 1
    %p124 = scmp.eq.s32.totalorder %s18, 1
    %p125 = scmp.ne.s32.totalorder %s120, %s122
    %p126 = scmp.eq.s32.totalorder %s18, 0
    %p127 = por %p125, %p126
    %p128 = scmp.ne.s32.totalorder %s120, %s122
    %p129 = scmp.eq.s32.totalorder %s23, 1
    %p130 = por %p128, %p129
    %p131 = scmp.ne.s32.totalorder %s122, %s123
    %p132 = scmp.eq.s32.totalorder %s23, 0
    %p133 = por %p131, %p132
    %p134 = scmp.ne.s32.totalorder %s122, %s123
    %p135 = scmp.eq.s32.totalorder %s24, 1
    %p136 = por %p134, %p135
    %p138 = scmp.ne.s32.totalorder %s123, %s137
    %p139 = scmp.eq.s32.totalorder %s24, 0
    %p140 = por %p138, %p139
    %s142 = sadd.s32 %s141, 1
    %p145 = scmp.eq.s32.totalorder %s18, 1
    %p146 = scmp.ne.s32.totalorder %s141, %s143
    %p147 = scmp.eq.s32.totalorder %s18, 0
    %p148 = por %p146, %p147
    %p149 = scmp.ne.s32.totalorder %s141, %s143
    %p150 = scmp.eq.s32.totalorder %s23, 1
    %p151 = por %p149, %p150
    %p152 = scmp.ne.s32.totalorder %s143, %s144
    %p153 = scmp.eq.s32.totalorder %s23, 0
    %p154 = por %p152, %p153
    %p155 = scmp.ne.s32.totalorder %s143, %s144
    %p156 = scmp.eq.s32.totalorder %s24, 1
    %p157 = por %p155, %p156
    %p159 = scmp.ne.s32.totalorder %s144, %s158
    %p160 = scmp.eq.s32.totalorder %s24, 0
    %p161 = por %p159, %p160
    %s163 = sadd.s32 %s162, 1
    %p166 = scmp.eq.s32.totalorder %s18, 1
    %p167 = scmp.ne.s32.totalorder %s162, %s164
    %p168 = scmp.eq.s32.totalorder %s18, 0
    %p169 = por %p167, %p168
    %p170 = scmp.ne.s32.totalorder %s162, %s164
    %p171 = scmp.eq.s32.totalorder %s23, 1
    %p172 = por %p170, %p171
    %p173 = scmp.ne.s32.totalorder %s164, %s165
    %p174 = scmp.eq.s32.totalorder %s23, 0
    %p175 = por %p173, %p174
    %p176 = scmp.ne.s32.totalorder %s164, %s165
    %p177 = scmp.eq.s32.totalorder %s24, 1
    %p178 = por %p176, %p177
    %p180 = scmp.ne.s32.totalorder %s165, %s179
    %p181 = scmp.eq.s32.totalorder %s24, 0
    %p182 = por %p180, %p181
    %s184 = sadd.s32 %s183, 1
    %p187 = scmp.eq.s32.totalorder %s18, 1
    %p188 = scmp.ne.s32.totalorder %s183, %s185
    %p189 = scmp.eq.s32.totalorder %s18, 0
    %p190 = por %p188, %p189
    %p191 = scmp.ne.s32.totalorder %s183, %s185
    %p192 = scmp.eq.s32.totalorder %s23, 1
    %p193 = por %p191, %p192
    %p194 = scmp.ne.s32.totalorder %s185, %s186
    %p195 = scmp.eq.s32.totalorder %s23, 0
    %p196 = por %p194, %p195
    %p197 = scmp.ne.s32.totalorder %s185, %s186
    %p198 = scmp.eq.s32.totalorder %s24, 1
    %p199 = por %p197, %p198
    %p201 = scmp.ne.s32.totalorder %s186, %s200
    %p202 = scmp.eq.s32.totalorder %s24, 0
    %p203 = por %p201, %p202
    %s205 = sadd.s32 %s204, 1
    %p208 = scmp.eq.s32.totalorder %s18, 1
    %p209 = scmp.ne.s32.totalorder %s204, %s206
    %p210 = scmp.eq.s32.totalorder %s18, 0
    %p211 = por %p209, %p210
    %p212 = scmp.ne.s32.totalorder %s204, %s206
    %p213 = scmp.eq.s32.totalorder %s23, 1
    %p214 = por %p212, %p213
    %p215 = scmp.ne.s32.totalorder %s206, %s207
    %p216 = scmp.eq.s32.totalorder %s23, 0
    %p217 = por %p215, %p216
    %p218 = scmp.ne.s32.totalorder %s206, %s207
    %p219 = scmp.eq.s32.totalorder %s24, 1
    %p220 = por %p218, %p219
    %p222 = scmp.ne.s32.totalorder %s207, %s221
    %p223 = scmp.eq.s32.totalorder %s24, 0
    %p224 = por %p222, %p223
    %s225 = ssub.s32 %s18, %s25
    %p226 = scmp.eq.s32.totalorder %s225, 0
    %s228 = sadd.s32 %s227, 1
    %s229 = scalar_select %p226, %s227, %s228
    %p232 = pneg %p226
    %p233 = scmp.eq.s32.totalorder %s18, 1
    %p234 = por %p232, %p233
    %p235 = scmp.ne.s32.totalorder %s227, %s230
    %p236 = scmp.eq.s32.totalorder %s18, 0
    %p237 = por %p235, %p236
    %p238 = scmp.ne.s32.totalorder %s227, %s230
    %p239 = scmp.eq.s32.totalorder %s23, 1
    %p240 = por %p238, %p239
    %p241 = scmp.ne.s32.totalorder %s230, %s231
    %p242 = scmp.eq.s32.totalorder %s23, 0
    %p243 = por %p241, %p242
    %p244 = scmp.ne.s32.totalorder %s230, %s231
    %p245 = scmp.eq.s32.totalorder %s24, 1
    %p246 = por %p244, %p245
    %p248 = scmp.ne.s32.totalorder %s231, %s247
    %p249 = scmp.eq.s32.totalorder %s24, 0
    %p250 = por %p248, %p249
    %s251 = ssub.s32 %s18, %s25
    %p252 = scmp.eq.s32.totalorder %s251, 0
    %s254 = sadd.s32 %s253, 1
    %s255 = scalar_select %p252, %s253, %s254
    %p258 = pneg %p252
    %p259 = scmp.eq.s32.totalorder %s18, 1
    %p260 = por %p258, %p259
    %p261 = scmp.ne.s32.totalorder %s253, %s256
    %p262 = scmp.eq.s32.totalorder %s18, 0
    %p263 = por %p261, %p262
    %p264 = scmp.ne.s32.totalorder %s253, %s256
    %p265 = scmp.eq.s32.totalorder %s23, 1
    %p266 = por %p264, %p265
    %p267 = scmp.ne.s32.totalorder %s256, %s257
    %p268 = scmp.eq.s32.totalorder %s23, 0
    %p269 = por %p267, %p268
    %p270 = scmp.ne.s32.totalorder %s256, %s257
    %p271 = scmp.eq.s32.totalorder %s24, 1
    %p272 = por %p270, %p271
    %p274 = scmp.ne.s32.totalorder %s257, %s273
    %p275 = scmp.eq.s32.totalorder %s24, 0
    %p276 = por %p274, %p275
    %s277 = ssub.s32 %s18, %s25
    %p278 = scmp.eq.s32.totalorder %s277, 0
    %s280 = sadd.s32 %s279, 1
    %s281 = scalar_select %p278, %s279, %s280
    %p284 = pneg %p278
    %p285 = scmp.eq.s32.totalorder %s18, 1
    %p286 = por %p284, %p285
    %p287 = scmp.ne.s32.totalorder %s279, %s282
    %p288 = scmp.eq.s32.totalorder %s18, 0
    %p289 = por %p287, %p288
    %p290 = scmp.ne.s32.totalorder %s279, %s282
    %p291 = scmp.eq.s32.totalorder %s23, 1
    %p292 = por %p290, %p291
    %p293 = scmp.ne.s32.totalorder %s282, %s283
    %p294 = scmp.eq.s32.totalorder %s23, 0
    %p295 = por %p293, %p294
    %p296 = scmp.ne.s32.totalorder %s282, %s283
    %p297 = scmp.eq.s32.totalorder %s24, 1
    %p298 = por %p296, %p297
    %p300 = scmp.ne.s32.totalorder %s283, %s299
    %p301 = scmp.eq.s32.totalorder %s24, 0
    %p302 = por %p300, %p301
    %p303 = scmp.le.s32.totalorder 1, %s18
    %p304 = scmp.lt.s32.totalorder %s18, 3
    %p305 = pnand %p303, %p304
    %p306 = pneg %p305
    // Predicated region
    $region9: #{imitator_forward.3} parent=5 // pred_check
      _
    $region10: #{imitator_forward.3} parent=5 // pred_check_branch
      %308 = sbr.rel (%p305) target = $region12
    $region11: #{imitator_forward.3} parent=5 // pred_region
      %s309 = ssub.s32 %s18, 1
      // Predicated region
      $region13: #{imitator_forward.3} parent=11 // pred_check
        %p310 = pneg %p91
      $region14: #{imitator_forward.3} parent=11 // pred_check_branch
        %312 = sbr.rel (%p310) target = $region16
      $region15: #{imitator_forward.3} parent=11 // pred_region
        _
      $region16: #{imitator_forward.3} parent=11 // pred_fallthru
        _
      // Predicated region
      $region17: #{imitator_forward.3} parent=11 // pred_check
        %p313 = pneg %p112
      $region18: #{imitator_forward.3} parent=11 // pred_check_branch
        %315 = sbr.rel (%p313) target = $region20
      $region19: #{imitator_forward.3} parent=11 // pred_region
        _
      $region20: #{imitator_forward.3} parent=11 // pred_fallthru
        _
      // Predicated region
      $region21: #{imitator_forward.3} parent=11 // pred_check
        %p316 = pneg %p133
      $region22: #{imitator_forward.3} parent=11 // pred_check_branch
        %318 = sbr.rel (%p316) target = $region24
      $region23: #{imitator_forward.3} parent=11 // pred_region
        _
      $region24: #{imitator_forward.3} parent=11 // pred_fallthru
        _
      // Predicated region
      $region25: #{imitator_forward.3} parent=11 // pred_check
        %p319 = pneg %p154
      $region26: #{imitator_forward.3} parent=11 // pred_check_branch
        %321 = sbr.rel (%p319) target = $region28
      $region27: #{imitator_forward.3} parent=11 // pred_region
        _
      $region28: #{imitator_forward.3} parent=11 // pred_fallthru
        _
      // Predicated region
      $region29: #{imitator_forward.3} parent=11 // pred_check
        %p322 = pneg %p175
      $region30: #{imitator_forward.3} parent=11 // pred_check_branch
        %324 = sbr.rel (%p322) target = $region32
      $region31: #{imitator_forward.3} parent=11 // pred_region
        _
      $region32: #{imitator_forward.3} parent=11 // pred_fallthru
        _
      // Predicated region
      $region33: #{imitator_forward.3} parent=11 // pred_check
        %p325 = pneg %p196
      $region34: #{imitator_forward.3} parent=11 // pred_check_branch
        %327 = sbr.rel (%p325) target = $region36
      $region35: #{imitator_forward.3} parent=11 // pred_region
        _
      $region36: #{imitator_forward.3} parent=11 // pred_fallthru
        _
      // Predicated region
      $region37: #{imitator_forward.3} parent=11 // pred_check
        %p328 = pneg %p217
      $region38: #{imitator_forward.3} parent=11 // pred_check_branch
        %330 = sbr.rel (%p328) target = $region40
      $region39: #{imitator_forward.3} parent=11 // pred_region
        _
      $region40: #{imitator_forward.3} parent=11 // pred_fallthru
        _
    $region12: #{imitator_forward.3} parent=5 // pred_fallthru
      _
    %p331 = scmp.lt.s32.totalorder %s18, 2
    // Predicated region
    $region41: #{imitator_forward.3} parent=5 // pred_check
      %p332 = pneg %p331
    $region42: #{imitator_forward.3} parent=5 // pred_check_branch
      %334 = sbr.rel (%p332) target = $region44
    $region43: #{imitator_forward.3} parent=5 // pred_region
      // Predicated region
      $region45: #{imitator_forward.3} parent=43 // pred_check
        %p335 = pneg %p38
      $region46: #{imitator_forward.3} parent=43 // pred_check_branch
        %337 = sbr.rel (%p335) target = $region48
      $region47: #{imitator_forward.3} parent=43 // pred_region
        %p338 = scmp.lt.s32.totalorder %s18, 1
        %s339 = scalar_select %p338, %s18, 1
        %s340 = smul.addr %s339, 6
        %s341 = smul.addr %s340, 8
        %s342 = scalar_lea.vmem %s0, %s341
      $region48: #{imitator_forward.3} parent=43 // pred_fallthru
        _
      // Predicated region
      $region49: #{imitator_forward.3} parent=43 // pred_check
        %p343 = pneg %p64
      $region50: #{imitator_forward.3} parent=43 // pred_check_branch
        %345 = sbr.rel (%p343) target = $region52
      $region51: #{imitator_forward.3} parent=43 // pred_region
        %p346 = scmp.lt.s32.totalorder %s18, 1
        %s347 = scalar_select %p346, %s18, 1
        %s348 = scalar_lea.vmem %s1, %s347
      $region52: #{imitator_forward.3} parent=43 // pred_fallthru
        _
    $region44: #{imitator_forward.3} parent=5 // pred_fallthru
      _
    %p349 = scmp.le.s32.totalorder 1, %s18
    %p350 = scmp.lt.s32.totalorder %s18, 3
    %p351 = pnand %p349, %p350
    %p352 = pneg %p351
    // Predicated region
    $region53: #{imitator_forward.3} parent=5 // pred_check
      _
    $region54: #{imitator_forward.3} parent=5 // pred_check_branch
      %354 = sbr.rel (%p351) target = $region56
    $region55: #{imitator_forward.3} parent=5 // pred_region
      %s355 = ssub.s32 %s18, 1
      %p356 = scmp.lt.s32.totalorder %s23, 1
      %s357 = scalar_select %p356, %s23, 1
      %s358 = smul.addr %s357, 6
      %s359 = smul.addr %s358, 8
      %s360 = scalar_lea.vmem %s0, %s359
      %p361 = pneg %p44
      %p362 = pneg %p41
      %p363 = scmp.lt.s32.totalorder %s23, 1
      %s364 = scalar_select %p363, %s23, 1
      %s365 = scalar_lea.vmem %s1, %s364
      %p366 = pneg %p70
      %p367 = pneg %p67
      %p368 = pneg %p91
      %p369 = pneg %p88
      %p370 = pneg %p112
      %p371 = pneg %p109
      %p372 = pneg %p133
      %p373 = pneg %p130
      %p374 = pneg %p154
      %p375 = pneg %p151
      %p376 = pneg %p175
      %p377 = pneg %p172
      %p378 = pneg %p196
      %p379 = pneg %p193
      %p380 = pneg %p217
      %p381 = pneg %p214
      %p382 = pneg %p243
      %p383 = pneg %p240
      %p384 = scmp.lt.s32.totalorder %s23, 1
      %s385 = scalar_select %p384, %s23, 1
      %s386 = smul.addr %s385, 4
      %s387 = smul.addr %s386, 4
      %s388 = scalar_lea.vmem %s9, %s387
      %p389 = pneg %p269
      %p390 = pneg %p266
      %p391 = scmp.lt.s32.totalorder %s23, 1
      %s392 = scalar_select %p391, %s23, 1
      %s393 = smul.addr %s392, 4
      %s394 = smul.addr %s393, 4
      %s395 = scalar_lea.vmem %s10, %s394
      %p396 = pneg %p295
      %p397 = pneg %p292
      %p398 = scmp.lt.s32.totalorder %s23, 1
      %s399 = scalar_select %p398, %s23, 1
      %s400 = scalar_lea.vmem %s11, %s399
      %p401 = scmp.lt.s32.totalorder %s23, 1
      %s402 = scalar_select %p401, %s23, 1
      %s403 = smul.addr %s402, 6
      %s404 = smul.addr %s403, 8
      %s405 = scalar_lea.vmem %s0, %s404
      %p406 = scmp.lt.s32.totalorder %s23, 1
      %s407 = scalar_select %p406, %s23, 1
      %s408 = scalar_lea.vmem %s1, %s407
      %p409 = scmp.lt.s32.totalorder %s23, 1
      %s410 = scalar_select %p409, %s23, 1
      %s411 = smul.addr %s410, 4
      %s412 = smul.addr %s411, 4
      %s413 = scalar_lea.vmem %s9, %s412
      %p414 = scmp.lt.s32.totalorder %s23, 1
      %s415 = scalar_select %p414, %s23, 1
      %s416 = smul.addr %s415, 4
      %s417 = smul.addr %s416, 4
      %s418 = scalar_lea.vmem %s10, %s417
      %p419 = scmp.lt.s32.totalorder %s23, 1
      %s420 = scalar_select %p419, %s23, 1
      %s421 = scalar_lea.vmem %s11, %s420
      %v423 = vld [vmem:[%s405] sm:$0xff]
      %v424 = vld [vmem:[%s405 + $0x8] sm:$0xff]
      %v425 = vld [vmem:[%s405 + $0x10] sm:$0xff]
      %v426 = vld [vmem:[%s405 + $0x18] sm:$0xff]
      %v427 = vld [vmem:[%s405 + $0x20] sm:$0xff]
      %v428 = vld [vmem:[%s405 + $0x28] sm:$0xff]
      %v429 = vpack.c.bf16 %v423, %v423
      %v430 = vpack.c.bf16 %v424, %v424
      %v431 = vpack.c.bf16 %v425, %v425
      %v432 = vpack.c.bf16 %v426, %v426
      %v433 = vpack.c.bf16 %v427, %v427
      %v434 = vpack.c.bf16 %v428, %v428
      %v435 = vld [vmem:[%s2] sm:$0xf]
      %v436 = vld [vmem:[%s2 + $0x4] sm:$0xf]
      %v437 = vld [vmem:[%s2 + $0x8] sm:$0xf]
      %v438 = vld [vmem:[%s2 + $0xc] sm:$0xf]
      %v439 = vld [vmem:[%s2 + $0x10] sm:$0xf]
      %v440 = vld [vmem:[%s2 + $0x14] sm:$0xf]
      %v441 = vld [vmem:[%s2 + $0x18] sm:$0xf]
      %v442 = vld [vmem:[%s2 + $0x1c] sm:$0xf]
      %v443 = vld [vmem:[%s2 + $0x20] sm:$0xf]
      %v444 = vld [vmem:[%s2 + $0x24] sm:$0xf]
      %v445 = vld [vmem:[%s2 + $0x28] sm:$0xf]
      %v446 = vld [vmem:[%s2 + $0x2c] sm:$0xf]
      %v447 = vld [vmem:[%s2 + $0x30] sm:$0xf]
      %v448 = vld [vmem:[%s2 + $0x34] sm:$0xf]
      %v449 = vld [vmem:[%s2 + $0x38] sm:$0xf]
      %v450 = vld [vmem:[%s2 + $0x3c] sm:$0xf]
      %v451 = vld [vmem:[%s2 + $0x40] sm:$0xf]
      %v452 = vld [vmem:[%s2 + $0x44] sm:$0xf]
      %v453 = vld [vmem:[%s2 + $0x48] sm:$0xf]
      %v454 = vld [vmem:[%s2 + $0x4c] sm:$0xf]
      %v455 = vld [vmem:[%s2 + $0x50] sm:$0xf]
      %v456 = vld [vmem:[%s2 + $0x54] sm:$0xf]
      %v457 = vld [vmem:[%s2 + $0x58] sm:$0xf]
      %v458 = vld [vmem:[%s2 + $0x5c] sm:$0xf]
      %v459 = vld [vmem:[%s2 + $0x60] sm:$0xf]
      %v460 = vld [vmem:[%s2 + $0x64] sm:$0xf]
      %v461 = vld [vmem:[%s2 + $0x68] sm:$0xf]
      %v462 = vld [vmem:[%s2 + $0x6c] sm:$0xf]
      %v463 = vld [vmem:[%s2 + $0x70] sm:$0xf]
      %v464 = vld [vmem:[%s2 + $0x74] sm:$0xf]
      %v465 = vld [vmem:[%s2 + $0x78] sm:$0xf]
      %v466 = vld [vmem:[%s2 + $0x7c] sm:$0xf]
      %v467 = vld [vmem:[%s2 + $0x80] sm:$0xf]
      %v468 = vld [vmem:[%s2 + $0x84] sm:$0xf]
      %v469 = vld [vmem:[%s2 + $0x88] sm:$0xf]
      %v470 = vld [vmem:[%s2 + $0x8c] sm:$0xf]
      %v471 = vld [vmem:[%s2 + $0x90] sm:$0xf]
      %v472 = vld [vmem:[%s2 + $0x94] sm:$0xf]
      %v473 = vld [vmem:[%s2 + $0x98] sm:$0xf]
      %v474 = vld [vmem:[%s2 + $0x9c] sm:$0xf]
      %v475 = vld [vmem:[%s2 + $0xa0] sm:$0xf]
      %v476 = vld [vmem:[%s2 + $0xa4] sm:$0xf]
      %v477 = vld [vmem:[%s2 + $0xa8] sm:$0xf]
      %v478 = vld [vmem:[%s2 + $0xac] sm:$0xf]
      %v479 = vld [vmem:[%s2 + $0xb0] sm:$0xf]
      %v480 = vld [vmem:[%s2 + $0xb4] sm:$0xf]
      %v481 = vld [vmem:[%s2 + $0xb8] sm:$0xf]
      %v482 = vld [vmem:[%s2 + $0xbc] sm:$0xf]
      %v483 = vld [vmem:[%s2 + $0xc0] sm:$0xf]
      %v484 = vld [vmem:[%s2 + $0xc4] sm:$0xf]
      %v485 = vld [vmem:[%s2 + $0xc8] sm:$0xf]
      %v486 = vld [vmem:[%s2 + $0xcc] sm:$0xf]
      %v487 = vld [vmem:[%s2 + $0xd0] sm:$0xf]
      %v488 = vld [vmem:[%s2 + $0xd4] sm:$0xf]
      %v489 = vld [vmem:[%s2 + $0xd8] sm:$0xf]
      %v490 = vld [vmem:[%s2 + $0xdc] sm:$0xf]
      %v491 = vld [vmem:[%s2 + $0xe0] sm:$0xf]
      %v492 = vld [vmem:[%s2 + $0xe4] sm:$0xf]
      %v493 = vld [vmem:[%s2 + $0xe8] sm:$0xf]
      %v494 = vld [vmem:[%s2 + $0xec] sm:$0xf]
      %v495 = vld [vmem:[%s2 + $0xf0] sm:$0xf]
      %v496 = vld [vmem:[%s2 + $0xf4] sm:$0xf]
      %v497 = vld [vmem:[%s2 + $0xf8] sm:$0xf]
      %v498 = vld [vmem:[%s2 + $0xfc] sm:$0xf]
      %v499 = vld [vmem:[%s2 + $0x100] sm:$0xf]
      %v500 = vld [vmem:[%s2 + $0x104] sm:$0xf]
      %v501 = vld [vmem:[%s2 + $0x108] sm:$0xf]
      %v502 = vld [vmem:[%s2 + $0x10c] sm:$0xf]
      %v503 = vld [vmem:[%s2 + $0x110] sm:$0xf]
      %v504 = vld [vmem:[%s2 + $0x114] sm:$0xf]
      %v505 = vld [vmem:[%s2 + $0x118] sm:$0xf]
      %v506 = vld [vmem:[%s2 + $0x11c] sm:$0xf]
      %v507 = vld [vmem:[%s2 + $0x120] sm:$0xf]
      %v508 = vld [vmem:[%s2 + $0x124] sm:$0xf]
      %v509 = vld [vmem:[%s2 + $0x128] sm:$0xf]
      %v510 = vld [vmem:[%s2 + $0x12c] sm:$0xf]
      %v511 = vld [vmem:[%s2 + $0x130] sm:$0xf]
      %v512 = vld [vmem:[%s2 + $0x134] sm:$0xf]
      %v513 = vld [vmem:[%s2 + $0x138] sm:$0xf]
      %v514 = vld [vmem:[%s2 + $0x13c] sm:$0xf]
      %v515 = vld [vmem:[%s2 + $0x140] sm:$0xf]
      %v516 = vld [vmem:[%s2 + $0x144] sm:$0xf]
      %v517 = vld [vmem:[%s2 + $0x148] sm:$0xf]
      %v518 = vld [vmem:[%s2 + $0x14c] sm:$0xf]
      %v519 = vld [vmem:[%s2 + $0x150] sm:$0xf]
      %v520 = vld [vmem:[%s2 + $0x154] sm:$0xf]
      %v521 = vld [vmem:[%s2 + $0x158] sm:$0xf]
      %v522 = vld [vmem:[%s2 + $0x15c] sm:$0xf]
      %v523 = vld [vmem:[%s2 + $0x160] sm:$0xf]
      %v524 = vld [vmem:[%s2 + $0x164] sm:$0xf]
      %v525 = vld [vmem:[%s2 + $0x168] sm:$0xf]
      %v526 = vld [vmem:[%s2 + $0x16c] sm:$0xf]
      %v527 = vld [vmem:[%s2 + $0x170] sm:$0xf]
      %v528 = vld [vmem:[%s2 + $0x174] sm:$0xf]
      %v529 = vld [vmem:[%s2 + $0x178] sm:$0xf]
      %v530 = vld [vmem:[%s2 + $0x17c] sm:$0xf]
      %v531 = vld [vmem:[%s3] sm:$0x1]
      %v533 = vperm.slane %v531, 0
      %v631 = vunpack.c.l.b16 %v435
      %v632 = vunpack.c.l.b16 %v436
      %v633 = vunpack.c.l.b16 %v437
      %v634 = vunpack.c.l.b16 %v438
      %v635 = vunpack.c.l.b16 %v439
      %v636 = vunpack.c.l.b16 %v440
      %v637 = vunpack.c.l.b16 %v441
      %v638 = vunpack.c.l.b16 %v442
      %v639 = vunpack.c.l.b16 %v443
      %v640 = vunpack.c.l.b16 %v444
      %v641 = vunpack.c.l.b16 %v445
      %v642 = vunpack.c.l.b16 %v446
      %v643 = vunpack.c.l.b16 %v447
      %v644 = vunpack.c.l.b16 %v448
      %v645 = vunpack.c.l.b16 %v449
      %v646 = vunpack.c.l.b16 %v450
      %v647 = vunpack.c.l.b16 %v451
      %v648 = vunpack.c.l.b16 %v452
      %v649 = vunpack.c.l.b16 %v453
      %v650 = vunpack.c.l.b16 %v454
      %v651 = vunpack.c.l.b16 %v455
      %v652 = vunpack.c.l.b16 %v456
      %v653 = vunpack.c.l.b16 %v457
      %v654 = vunpack.c.l.b16 %v458
      %v655 = vunpack.c.l.b16 %v459
      %v656 = vunpack.c.l.b16 %v460
      %v657 = vunpack.c.l.b16 %v461
      %v658 = vunpack.c.l.b16 %v462
      %v659 = vunpack.c.l.b16 %v463
      %v660 = vunpack.c.l.b16 %v464
      %v661 = vunpack.c.l.b16 %v465
      %v662 = vunpack.c.l.b16 %v466
      %v663 = vunpack.c.l.b16 %v467
      %v664 = vunpack.c.l.b16 %v468
      %v665 = vunpack.c.l.b16 %v469
      %v666 = vunpack.c.l.b16 %v470
      %v667 = vunpack.c.l.b16 %v471
      %v668 = vunpack.c.l.b16 %v472
      %v669 = vunpack.c.l.b16 %v473
      %v670 = vunpack.c.l.b16 %v474
      %v671 = vunpack.c.l.b16 %v475
      %v672 = vunpack.c.l.b16 %v476
      %v673 = vunpack.c.l.b16 %v477
      %v674 = vunpack.c.l.b16 %v478
      %v675 = vunpack.c.l.b16 %v479
      %v676 = vunpack.c.l.b16 %v480
      %v677 = vunpack.c.l.b16 %v481
      %v678 = vunpack.c.l.b16 %v482
      %v679 = vunpack.c.l.b16 %v483
      %v680 = vunpack.c.l.b16 %v484
      %v681 = vunpack.c.l.b16 %v485
      %v682 = vunpack.c.l.b16 %v486
      %v683 = vunpack.c.l.b16 %v487
      %v684 = vunpack.c.l.b16 %v488
      %v685 = vunpack.c.l.b16 %v489
      %v686 = vunpack.c.l.b16 %v490
      %v687 = vunpack.c.l.b16 %v491
      %v688 = vunpack.c.l.b16 %v492
      %v689 = vunpack.c.l.b16 %v493
      %v690 = vunpack.c.l.b16 %v494
      %v691 = vunpack.c.l.b16 %v495
      %v692 = vunpack.c.l.b16 %v496
      %v693 = vunpack.c.l.b16 %v497
      %v694 = vunpack.c.l.b16 %v498
      %v695 = vunpack.c.l.b16 %v499
      %v696 = vunpack.c.l.b16 %v500
      %v697 = vunpack.c.l.b16 %v501
      %v698 = vunpack.c.l.b16 %v502
      %v699 = vunpack.c.l.b16 %v503
      %v700 = vunpack.c.l.b16 %v504
      %v701 = vunpack.c.l.b16 %v505
      %v702 = vunpack.c.l.b16 %v506
      %v703 = vunpack.c.l.b16 %v507
      %v704 = vunpack.c.l.b16 %v508
      %v705 = vunpack.c.l.b16 %v509
      %v706 = vunpack.c.l.b16 %v510
      %v707 = vunpack.c.l.b16 %v511
      %v708 = vunpack.c.l.b16 %v512
      %v709 = vunpack.c.l.b16 %v513
      %v710 = vunpack.c.l.b16 %v514
      %v711 = vunpack.c.l.b16 %v515
      %v712 = vunpack.c.l.b16 %v516
      %v713 = vunpack.c.l.b16 %v517
      %v714 = vunpack.c.l.b16 %v518
      %v715 = vunpack.c.l.b16 %v519
      %v716 = vunpack.c.l.b16 %v520
      %v717 = vunpack.c.l.b16 %v521
      %v718 = vunpack.c.l.b16 %v522
      %v719 = vunpack.c.l.b16 %v523
      %v720 = vunpack.c.l.b16 %v524
      %v721 = vunpack.c.l.b16 %v525
      %v722 = vunpack.c.l.b16 %v526
      %v723 = vunpack.c.l.b16 %v527
      %v724 = vunpack.c.l.b16 %v528
      %v725 = vunpack.c.l.b16 %v529
      %v726 = vunpack.c.l.b16 %v530
      %v727 = vpack.c.b16 %v632, %v631
      %v728 = vpack.c.b16 %v634, %v633
      %v729 = vpack.c.b16 %v636, %v635
      %v730 = vpack.c.b16 %v638, %v637
      %v731 = vpack.c.b16 %v640, %v639
      %v732 = vpack.c.b16 %v642, %v641
      %v733 = vpack.c.b16 %v644, %v643
      %v734 = vpack.c.b16 %v646, %v645
      %v735 = vpack.c.b16 %v648, %v647
      %v736 = vpack.c.b16 %v650, %v649
      %v737 = vpack.c.b16 %v652, %v651
      %v738 = vpack.c.b16 %v654, %v653
      %v739 = vpack.c.b16 %v656, %v655
      %v740 = vpack.c.b16 %v658, %v657
      %v741 = vpack.c.b16 %v660, %v659
      %v742 = vpack.c.b16 %v662, %v661
      %v743 = vpack.c.b16 %v664, %v663
      %v744 = vpack.c.b16 %v666, %v665
      %v745 = vpack.c.b16 %v668, %v667
      %v746 = vpack.c.b16 %v670, %v669
      %v747 = vpack.c.b16 %v672, %v671
      %v748 = vpack.c.b16 %v674, %v673
      %v749 = vpack.c.b16 %v676, %v675
      %v750 = vpack.c.b16 %v678, %v677
      %v751 = vpack.c.b16 %v680, %v679
      %v752 = vpack.c.b16 %v682, %v681
      %v753 = vpack.c.b16 %v684, %v683
      %v754 = vpack.c.b16 %v686, %v685
      %v755 = vpack.c.b16 %v688, %v687
      %v756 = vpack.c.b16 %v690, %v689
      %v757 = vpack.c.b16 %v692, %v691
      %v758 = vpack.c.b16 %v694, %v693
      %v759 = vpack.c.b16 %v696, %v695
      %v760 = vpack.c.b16 %v698, %v697
      %v761 = vpack.c.b16 %v700, %v699
      %v762 = vpack.c.b16 %v702, %v701
      %v763 = vpack.c.b16 %v704, %v703
      %v764 = vpack.c.b16 %v706, %v705
      %v765 = vpack.c.b16 %v708, %v707
      %v766 = vpack.c.b16 %v710, %v709
      %v767 = vpack.c.b16 %v712, %v711
      %v768 = vpack.c.b16 %v714, %v713
      %v769 = vpack.c.b16 %v716, %v715
      %v770 = vpack.c.b16 %v718, %v717
      %v771 = vpack.c.b16 %v720, %v719
      %v772 = vpack.c.b16 %v722, %v721
      %v773 = vpack.c.b16 %v724, %v723
      %v774 = vpack.c.b16 %v726, %v725
      %823 = vmatpush.bf16.msra.mxu0 %v734
      %824 = vmatpush.bf16.msra.mxu0 %v733
      %825 = vmatpush.bf16.msra.mxu0 %v732
      %826 = vmatpush.bf16.msra.mxu0 %v731
      %827 = vmatpush.bf16.msra.mxu0 %v730
      %828 = vmatpush.bf16.msra.mxu0 %v729
      %829 = vmatpush.bf16.msra.mxu0 %v728
      %830 = vmatpush.bf16.msra.mxu0 %v727
      %831 = vmatmul.bf16.gmra.mxu0 %v429
      %v832 = vpop.f32.mrf.mxu0
      %v833 = vadd.f32 %v533, %v832
      %v834 = vpop.f32.mrf.mxu0
      %835 = vdwg.mxu0
      %836 = vmatpush.bf16.msra.mxu0 %v742
      %837 = vmatpush.bf16.msra.mxu0 %v741
      %838 = vmatpush.bf16.msra.mxu0 %v740
      %839 = vmatpush.bf16.msra.mxu0 %v739
      %840 = vmatpush.bf16.msra.mxu0 %v738
      %841 = vmatpush.bf16.msra.mxu0 %v737
      %842 = vmatpush.bf16.msra.mxu0 %v736
      %843 = vmatpush.bf16.msra.mxu0 %v735
      %844 = vmatmul.bf16.gmra.mxu0 %v430
      %v845 = vpop.f32.mrf.mxu0
      %v846 = vadd.f32 %v833, %v845
      %v847 = vpop.f32.mrf.mxu0
      %848 = vdwg.mxu0
      %849 = vmatpush.bf16.msra.mxu0 %v750
      %850 = vmatpush.bf16.msra.mxu0 %v749
      %851 = vmatpush.bf16.msra.mxu0 %v748
      %852 = vmatpush.bf16.msra.mxu0 %v747
      %853 = vmatpush.bf16.msra.mxu0 %v746
      %854 = vmatpush.bf16.msra.mxu0 %v745
      %855 = vmatpush.bf16.msra.mxu0 %v744
      %856 = vmatpush.bf16.msra.mxu0 %v743
      %857 = vmatmul.bf16.gmra.mxu0 %v431
      %v858 = vpop.f32.mrf.mxu0
      %v859 = vadd.f32 %v846, %v858
      %v860 = vpop.f32.mrf.mxu0
      %861 = vdwg.mxu0
      %862 = vmatpush.bf16.msra.mxu0 %v758
      %863 = vmatpush.bf16.msra.mxu0 %v757
      %864 = vmatpush.bf16.msra.mxu0 %v756
      %865 = vmatpush.bf16.msra.mxu0 %v755
      %866 = vmatpush.bf16.msra.mxu0 %v754
      %867 = vmatpush.bf16.msra.mxu0 %v753
      %868 = vmatpush.bf16.msra.mxu0 %v752
      %869 = vmatpush.bf16.msra.mxu0 %v751
      %870 = vmatmul.bf16.gmra.mxu0 %v432
      %v871 = vpop.f32.mrf.mxu0
      %v872 = vadd.f32 %v859, %v871
      %v873 = vpop.f32.mrf.mxu0
      %874 = vdwg.mxu0
      %875 = vmatpush.bf16.msra.mxu0 %v766
      %876 = vmatpush.bf16.msra.mxu0 %v765
      %877 = vmatpush.bf16.msra.mxu0 %v764
      %878 = vmatpush.bf16.msra.mxu0 %v763
      %879 = vmatpush.bf16.msra.mxu0 %v762
      %880 = vmatpush.bf16.msra.mxu0 %v761
      %881 = vmatpush.bf16.msra.mxu0 %v760
      %882 = vmatpush.bf16.msra.mxu0 %v759
      %883 = vmatmul.bf16.gmra.mxu0 %v433
      %v884 = vpop.f32.mrf.mxu0
      %v885 = vadd.f32 %v872, %v884
      %v886 = vpop.f32.mrf.mxu0
      %887 = vdwg.mxu0
      %888 = vmatpush.bf16.msra.mxu0 %v774
      %889 = vmatpush.bf16.msra.mxu0 %v773
      %890 = vmatpush.bf16.msra.mxu0 %v772
      %891 = vmatpush.bf16.msra.mxu0 %v771
      %892 = vmatpush.bf16.msra.mxu0 %v770
      %893 = vmatpush.bf16.msra.mxu0 %v769
      %894 = vmatpush.bf16.msra.mxu0 %v768
      %895 = vmatpush.bf16.msra.mxu0 %v767
      %896 = vmatmul.bf16.gmra.mxu0 %v434
      %v897 = vpop.f32.mrf.mxu0
      %v898 = vadd.f32 %v885, %v897
      %v899 = vpop.f32.mrf.mxu0
      %900 = vdwg.mxu0
      %v901 = vpack.c.bf16 %v898, %v898
      %v902 = vld [vmem:[%s4] sm:$0xf]
      %v903 = vld [vmem:[%s4 + $0x4] sm:$0xf]
      %v904 = vld [vmem:[%s4 + $0x8] sm:$0xf]
      %v905 = vld [vmem:[%s4 + $0xc] sm:$0xf]
      %v906 = vld [vmem:[%s4 + $0x10] sm:$0xf]
      %v907 = vld [vmem:[%s4 + $0x14] sm:$0xf]
      %v908 = vld [vmem:[%s4 + $0x18] sm:$0xf]
      %v909 = vld [vmem:[%s4 + $0x1c] sm:$0xf]
      %v910 = vld [vmem:[%s4 + $0x20] sm:$0xf]
      %v911 = vld [vmem:[%s4 + $0x24] sm:$0xf]
      %v912 = vld [vmem:[%s4 + $0x28] sm:$0xf]
      %v913 = vld [vmem:[%s4 + $0x2c] sm:$0xf]
      %v914 = vld [vmem:[%s4 + $0x30] sm:$0xf]
      %v915 = vld [vmem:[%s4 + $0x34] sm:$0xf]
      %v916 = vld [vmem:[%s4 + $0x38] sm:$0xf]
      %v917 = vld [vmem:[%s4 + $0x3c] sm:$0xf]
      %v918 = vld [vmem:[%s4 + $0x40] sm:$0xf]
      %v919 = vld [vmem:[%s4 + $0x44] sm:$0xf]
      %v920 = vld [vmem:[%s4 + $0x48] sm:$0xf]
      %v921 = vld [vmem:[%s4 + $0x4c] sm:$0xf]
      %v922 = vld [vmem:[%s4 + $0x50] sm:$0xf]
      %v923 = vld [vmem:[%s4 + $0x54] sm:$0xf]
      %v924 = vld [vmem:[%s4 + $0x58] sm:$0xf]
      %v925 = vld [vmem:[%s4 + $0x5c] sm:$0xf]
      %v926 = vld [vmem:[%s4 + $0x60] sm:$0xf]
      %v927 = vld [vmem:[%s4 + $0x64] sm:$0xf]
      %v928 = vld [vmem:[%s4 + $0x68] sm:$0xf]
      %v929 = vld [vmem:[%s4 + $0x6c] sm:$0xf]
      %v930 = vld [vmem:[%s4 + $0x70] sm:$0xf]
      %v931 = vld [vmem:[%s4 + $0x74] sm:$0xf]
      %v932 = vld [vmem:[%s4 + $0x78] sm:$0xf]
      %v933 = vld [vmem:[%s4 + $0x7c] sm:$0xf]
      %v934 = vld [vmem:[%s5] sm:$0x1]
      %v935 = vld [vmem:[%s5 + $0x1] sm:$0x1]
      %v936 = vld [vmem:[%s5 + $0x2] sm:$0x1]
      %v937 = vld [vmem:[%s5 + $0x3] sm:$0x1]
      %v942 = vperm.slane %v934, 0
      %v943 = vperm.slane %v935, 0
      %v944 = vperm.slane %v936, 0
      %v945 = vperm.slane %v937, 0
      %v958 = vunpack.c.l.b16 %v902
      %v959 = vunpack.c.l.b16 %v903
      %v960 = vunpack.c.l.b16 %v904
      %v961 = vunpack.c.l.b16 %v905
      %v962 = vunpack.c.l.b16 %v906
      %v963 = vunpack.c.l.b16 %v907
      %v964 = vunpack.c.l.b16 %v908
      %v965 = vunpack.c.l.b16 %v909
      %v966 = vpack.c.b16 %v959, %v958
      %v967 = vpack.c.b16 %v961, %v960
      %v968 = vpack.c.b16 %v963, %v962
      %v969 = vpack.c.b16 %v965, %v964
      %vm974 = vcmask 523264
      %v976 = vsel %vm974, %v901, 0
      %978 = vmatpush.bf16.msra.mxu0 0
      %979 = vmatpush.bf16.msra.mxu0 0
      %980 = vmatpush.bf16.msra.mxu0 0
      %981 = vmatpush.bf16.msra.mxu0 0
      %982 = vmatpush.bf16.msra.mxu0 %v969
      %983 = vmatpush.bf16.msra.mxu0 %v968
      %984 = vmatpush.bf16.msra.mxu0 %v967
      %985 = vmatpush.bf16.msra.mxu0 %v966
      %986 = vmatmul.bf16.gmra.mxu0 %v976
      %v987 = vpop.f32.mrf.mxu0
      %v988 = vadd.f32 %v942, %v987
      %v989 = vpop.f32.mrf.mxu0
      %990 = vdwg.mxu0
      %v999 = vunpack.c.l.b16 %v910
      %v1000 = vunpack.c.l.b16 %v911
      %v1001 = vunpack.c.l.b16 %v912
      %v1002 = vunpack.c.l.b16 %v913
      %v1003 = vunpack.c.l.b16 %v914
      %v1004 = vunpack.c.l.b16 %v915
      %v1005 = vunpack.c.l.b16 %v916
      %v1006 = vunpack.c.l.b16 %v917
      %v1007 = vpack.c.b16 %v1000, %v999
      %v1008 = vpack.c.b16 %v1002, %v1001
      %v1009 = vpack.c.b16 %v1004, %v1003
      %v1010 = vpack.c.b16 %v1006, %v1005
      %1015 = vmatpush.bf16.msra.mxu0 0
      %1016 = vmatpush.bf16.msra.mxu0 0
      %1017 = vmatpush.bf16.msra.mxu0 0
      %1018 = vmatpush.bf16.msra.mxu0 0
      %1019 = vmatpush.bf16.msra.mxu0 %v1010
      %1020 = vmatpush.bf16.msra.mxu0 %v1009
      %1021 = vmatpush.bf16.msra.mxu0 %v1008
      %1022 = vmatpush.bf16.msra.mxu0 %v1007
      %1023 = vmatmul.bf16.gmra.mxu0 %v976
      %v1024 = vpop.f32.mrf.mxu0
      %v1025 = vadd.f32 %v943, %v1024
      %v1026 = vpop.f32.mrf.mxu0
      %1027 = vdwg.mxu0
      %v1036 = vunpack.c.l.b16 %v918
      %v1037 = vunpack.c.l.b16 %v919
      %v1038 = vunpack.c.l.b16 %v920
      %v1039 = vunpack.c.l.b16 %v921
      %v1040 = vunpack.c.l.b16 %v922
      %v1041 = vunpack.c.l.b16 %v923
      %v1042 = vunpack.c.l.b16 %v924
      %v1043 = vunpack.c.l.b16 %v925
      %v1044 = vpack.c.b16 %v1037, %v1036
      %v1045 = vpack.c.b16 %v1039, %v1038
      %v1046 = vpack.c.b16 %v1041, %v1040
      %v1047 = vpack.c.b16 %v1043, %v1042
      %1052 = vmatpush.bf16.msra.mxu0 0
      %1053 = vmatpush.bf16.msra.mxu0 0
      %1054 = vmatpush.bf16.msra.mxu0 0
      %1055 = vmatpush.bf16.msra.mxu0 0
      %1056 = vmatpush.bf16.msra.mxu0 %v1047
      %1057 = vmatpush.bf16.msra.mxu0 %v1046
      %1058 = vmatpush.bf16.msra.mxu0 %v1045
      %1059 = vmatpush.bf16.msra.mxu0 %v1044
      %1060 = vmatmul.bf16.gmra.mxu0 %v976
      %v1061 = vpop.f32.mrf.mxu0
      %v1062 = vadd.f32 %v944, %v1061
      %v1063 = vpop.f32.mrf.mxu0
      %1064 = vdwg.mxu0
      %v1073 = vunpack.c.l.b16 %v926
      %v1074 = vunpack.c.l.b16 %v927
      %v1075 = vunpack.c.l.b16 %v928
      %v1076 = vunpack.c.l.b16 %v929
      %v1077 = vunpack.c.l.b16 %v930
      %v1078 = vunpack.c.l.b16 %v931
      %v1079 = vunpack.c.l.b16 %v932
      %v1080 = vunpack.c.l.b16 %v933
      %v1081 = vpack.c.b16 %v1074, %v1073
      %v1082 = vpack.c.b16 %v1076, %v1075
      %v1083 = vpack.c.b16 %v1078, %v1077
      %v1084 = vpack.c.b16 %v1080, %v1079
      %1089 = vmatpush.bf16.msra.mxu0 0
      %1090 = vmatpush.bf16.msra.mxu0 0
      %1091 = vmatpush.bf16.msra.mxu0 0
      %1092 = vmatpush.bf16.msra.mxu0 0
      %1093 = vmatpush.bf16.msra.mxu0 %v1084
      %1094 = vmatpush.bf16.msra.mxu0 %v1083
      %1095 = vmatpush.bf16.msra.mxu0 %v1082
      %1096 = vmatpush.bf16.msra.mxu0 %v1081
      %1097 = vmatmul.bf16.gmra.mxu0 %v976
      %v1098 = vpop.f32.mrf.mxu0
      %v1099 = vadd.f32 %v945, %v1098
      %v1100 = vpop.f32.mrf.mxu0
      %1101 = vdwg.mxu0
      %v1102 = vpack.c.bf16 %v988, %v988
      %v1103 = vpack.c.bf16 %v1025, %v1025
      %v1104 = vpack.c.bf16 %v1062, %v1062
      %v1105 = vpack.c.bf16 %v1099, %v1099
      %vm1106 = vcmask 125952
      %1107 = vst.msk [vmem:[%s413] sm:$0xf] %vm1106, %v1102
      %1108 = vst.msk [vmem:[%s413 + $0x4] sm:$0xf] %vm1106, %v1103
      %1109 = vst.msk [vmem:[%s413 + $0x8] sm:$0xf] %vm1106, %v1104
      %1110 = vst.msk [vmem:[%s413 + $0xc] sm:$0xf] %vm1106, %v1105
      %v1111 = vld [vmem:[%s6] sm:$0xf]
      %v1112 = vld [vmem:[%s6 + $0x4] sm:$0xf]
      %v1113 = vld [vmem:[%s6 + $0x8] sm:$0xf]
      %v1114 = vld [vmem:[%s6 + $0xc] sm:$0xf]
      %v1115 = vld [vmem:[%s6 + $0x10] sm:$0xf]
      %v1116 = vld [vmem:[%s6 + $0x14] sm:$0xf]
      %v1117 = vld [vmem:[%s6 + $0x18] sm:$0xf]
      %v1118 = vld [vmem:[%s6 + $0x1c] sm:$0xf]
      %v1119 = vld [vmem:[%s6 + $0x20] sm:$0xf]
      %v1120 = vld [vmem:[%s6 + $0x24] sm:$0xf]
      %v1121 = vld [vmem:[%s6 + $0x28] sm:$0xf]
      %v1122 = vld [vmem:[%s6 + $0x2c] sm:$0xf]
      %v1123 = vld [vmem:[%s6 + $0x30] sm:$0xf]
      %v1124 = vld [vmem:[%s6 + $0x34] sm:$0xf]
      %v1125 = vld [vmem:[%s6 + $0x38] sm:$0xf]
      %v1126 = vld [vmem:[%s6 + $0x3c] sm:$0xf]
      %v1127 = vld [vmem:[%s6 + $0x40] sm:$0xf]
      %v1128 = vld [vmem:[%s6 + $0x44] sm:$0xf]
      %v1129 = vld [vmem:[%s6 + $0x48] sm:$0xf]
      %v1130 = vld [vmem:[%s6 + $0x4c] sm:$0xf]
      %v1131 = vld [vmem:[%s6 + $0x50] sm:$0xf]
      %v1132 = vld [vmem:[%s6 + $0x54] sm:$0xf]
      %v1133 = vld [vmem:[%s6 + $0x58] sm:$0xf]
      %v1134 = vld [vmem:[%s6 + $0x5c] sm:$0xf]
      %v1135 = vld [vmem:[%s6 + $0x60] sm:$0xf]
      %v1136 = vld [vmem:[%s6 + $0x64] sm:$0xf]
      %v1137 = vld [vmem:[%s6 + $0x68] sm:$0xf]
      %v1138 = vld [vmem:[%s6 + $0x6c] sm:$0xf]
      %v1139 = vld [vmem:[%s6 + $0x70] sm:$0xf]
      %v1140 = vld [vmem:[%s6 + $0x74] sm:$0xf]
      %v1141 = vld [vmem:[%s6 + $0x78] sm:$0xf]
      %v1142 = vld [vmem:[%s6 + $0x7c] sm:$0xf]
      %v1143 = vld [vmem:[%s7] sm:$0x1]
      %v1144 = vld [vmem:[%s7 + $0x1] sm:$0x1]
      %v1145 = vld [vmem:[%s7 + $0x2] sm:$0x1]
      %v1146 = vld [vmem:[%s7 + $0x3] sm:$0x1]
      %v1151 = vperm.slane %v1143, 0
      %v1152 = vperm.slane %v1144, 0
      %v1153 = vperm.slane %v1145, 0
      %v1154 = vperm.slane %v1146, 0
      %v1167 = vunpack.c.l.b16 %v1111
      %v1168 = vunpack.c.l.b16 %v1112
      %v1169 = vunpack.c.l.b16 %v1113
      %v1170 = vunpack.c.l.b16 %v1114
      %v1171 = vunpack.c.l.b16 %v1115
      %v1172 = vunpack.c.l.b16 %v1116
      %v1173 = vunpack.c.l.b16 %v1117
      %v1174 = vunpack.c.l.b16 %v1118
      %v1175 = vpack.c.b16 %v1168, %v1167
      %v1176 = vpack.c.b16 %v1170, %v1169
      %v1177 = vpack.c.b16 %v1172, %v1171
      %v1178 = vpack.c.b16 %v1174, %v1173
      %1183 = vmatpush.bf16.msra.mxu0 0
      %1184 = vmatpush.bf16.msra.mxu0 0
      %1185 = vmatpush.bf16.msra.mxu0 0
      %1186 = vmatpush.bf16.msra.mxu0 0
      %1187 = vmatpush.bf16.msra.mxu0 %v1178
      %1188 = vmatpush.bf16.msra.mxu0 %v1177
      %1189 = vmatpush.bf16.msra.mxu0 %v1176
      %1190 = vmatpush.bf16.msra.mxu0 %v1175
      %1191 = vmatmul.bf16.gmra.mxu0 %v976
      %v1192 = vpop.f32.mrf.mxu0
      %v1193 = vadd.f32 %v1151, %v1192
      %v1194 = vpop.f32.mrf.mxu0
      %1195 = vdwg.mxu0
      %v1204 = vunpack.c.l.b16 %v1119
      %v1205 = vunpack.c.l.b16 %v1120
      %v1206 = vunpack.c.l.b16 %v1121
      %v1207 = vunpack.c.l.b16 %v1122
      %v1208 = vunpack.c.l.b16 %v1123
      %v1209 = vunpack.c.l.b16 %v1124
      %v1210 = vunpack.c.l.b16 %v1125
      %v1211 = vunpack.c.l.b16 %v1126
      %v1212 = vpack.c.b16 %v1205, %v1204
      %v1213 = vpack.c.b16 %v1207, %v1206
      %v1214 = vpack.c.b16 %v1209, %v1208
      %v1215 = vpack.c.b16 %v1211, %v1210
      %1220 = vmatpush.bf16.msra.mxu0 0
      %1221 = vmatpush.bf16.msra.mxu0 0
      %1222 = vmatpush.bf16.msra.mxu0 0
      %1223 = vmatpush.bf16.msra.mxu0 0
      %1224 = vmatpush.bf16.msra.mxu0 %v1215
      %1225 = vmatpush.bf16.msra.mxu0 %v1214
      %1226 = vmatpush.bf16.msra.mxu0 %v1213
      %1227 = vmatpush.bf16.msra.mxu0 %v1212
      %1228 = vmatmul.bf16.gmra.mxu0 %v976
      %v1229 = vpop.f32.mrf.mxu0
      %v1230 = vadd.f32 %v1152, %v1229
      %v1231 = vpop.f32.mrf.mxu0
      %1232 = vdwg.mxu0
      %v1241 = vunpack.c.l.b16 %v1127
      %v1242 = vunpack.c.l.b16 %v1128
      %v1243 = vunpack.c.l.b16 %v1129
      %v1244 = vunpack.c.l.b16 %v1130
      %v1245 = vunpack.c.l.b16 %v1131
      %v1246 = vunpack.c.l.b16 %v1132
      %v1247 = vunpack.c.l.b16 %v1133
      %v1248 = vunpack.c.l.b16 %v1134
      %v1249 = vpack.c.b16 %v1242, %v1241
      %v1250 = vpack.c.b16 %v1244, %v1243
      %v1251 = vpack.c.b16 %v1246, %v1245
      %v1252 = vpack.c.b16 %v1248, %v1247
      %1257 = vmatpush.bf16.msra.mxu0 0
      %1258 = vmatpush.bf16.msra.mxu0 0
      %1259 = vmatpush.bf16.msra.mxu0 0
      %1260 = vmatpush.bf16.msra.mxu0 0
      %1261 = vmatpush.bf16.msra.mxu0 %v1252
      %1262 = vmatpush.bf16.msra.mxu0 %v1251
      %1263 = vmatpush.bf16.msra.mxu0 %v1250
      %1264 = vmatpush.bf16.msra.mxu0 %v1249
      %1265 = vmatmul.bf16.gmra.mxu0 %v976
      %v1266 = vpop.f32.mrf.mxu0
      %v1267 = vadd.f32 %v1153, %v1266
      %v1268 = vpop.f32.mrf.mxu0
      %1269 = vdwg.mxu0
      %v1278 = vunpack.c.l.b16 %v1135
      %v1279 = vunpack.c.l.b16 %v1136
      %v1280 = vunpack.c.l.b16 %v1137
      %v1281 = vunpack.c.l.b16 %v1138
      %v1282 = vunpack.c.l.b16 %v1139
      %v1283 = vunpack.c.l.b16 %v1140
      %v1284 = vunpack.c.l.b16 %v1141
      %v1285 = vunpack.c.l.b16 %v1142
      %v1286 = vpack.c.b16 %v1279, %v1278
      %v1287 = vpack.c.b16 %v1281, %v1280
      %v1288 = vpack.c.b16 %v1283, %v1282
      %v1289 = vpack.c.b16 %v1285, %v1284
      %1294 = vmatpush.bf16.msra.mxu0 0
      %1295 = vmatpush.bf16.msra.mxu0 0
      %1296 = vmatpush.bf16.msra.mxu0 0
      %1297 = vmatpush.bf16.msra.mxu0 0
      %1298 = vmatpush.bf16.msra.mxu0 %v1289
      %1299 = vmatpush.bf16.msra.mxu0 %v1288
      %1300 = vmatpush.bf16.msra.mxu0 %v1287
      %1301 = vmatpush.bf16.msra.mxu0 %v1286
      %1302 = vmatmul.bf16.gmra.mxu0 %v976
      %v1303 = vpop.f32.mrf.mxu0
      %v1304 = vadd.f32 %v1154, %v1303
      %v1305 = vpop.f32.mrf.mxu0
      %1306 = vdwg.mxu0
      %v1307 = vpack.c.bf16 %v1193, %v1193
      %v1308 = vpack.c.bf16 %v1230, %v1230
      %v1309 = vpack.c.bf16 %v1267, %v1267
      %v1310 = vpack.c.bf16 %v1304, %v1304
      %1311 = vst.msk [vmem:[%s418] sm:$0xf] %vm1106, %v1307
      %1312 = vst.msk [vmem:[%s418 + $0x4] sm:$0xf] %vm1106, %v1308
      %1313 = vst.msk [vmem:[%s418 + $0x8] sm:$0xf] %vm1106, %v1309
      %1314 = vst.msk [vmem:[%s418 + $0xc] sm:$0xf] %vm1106, %v1310
      %v1315 = vld [vmem:[%s408] sm:$0x1]
      %v1316 = vpack.c.bf16 %v1315, %v1315
      %v1317 = vld [vmem:[%s8] sm:$0xf]
      %vm1318 = vcmask 64512
      %v1320 = vsel %vm1318, %v1316, 0
      %vm1322 = vcmask 1043456
      %v1324 = vsel %vm1322, %v1317, 0
      %1326 = vmatpush.bf16.msra.mxu0 0
      %1327 = vmatpush.bf16.msra.mxu0 0
      %1328 = vmatpush.bf16.msra.mxu0 0
      %1329 = vmatpush.bf16.msra.mxu0 0
      %1330 = vmatpush.bf16.msra.mxu0 0
      %1331 = vmatpush.bf16.msra.mxu0 0
      %1332 = vmatpush.bf16.msra.mxu0 0
      %1333 = vmatpush.bf16.msra.mxu0 %v1324
      %1334 = vmatmul.bf16.gmra.mxu0 %v1320
      %v1335 = vpop.f32.mrf.mxu0
      %v1336 = vadd.f32 0.0, %v1335
      %v1337 = vpop.f32.mrf.mxu0
      %1338 = vdwg.mxu0
      %vm1339 = vcmask 516096
      %1340 = vst.msk [vmem:[%s421] sm:$0x1] %vm1339, %v1336
      %p1341 = scmp.lt.s32.totalorder %s23, 1
      %s1342 = scalar_select %p1341, %s23, 1
      %s1343 = smul.addr %s1342, 4
      %s1344 = smul.addr %s1343, 4
      %s1345 = scalar_lea.vmem %s9, %s1344
      %p1346 = scmp.lt.s32.totalorder %s23, 1
      %s1347 = scalar_select %p1346, %s23, 1
      %s1348 = smul.addr %s1347, 4
      %s1349 = smul.addr %s1348, 4
      %s1350 = scalar_lea.vmem %s10, %s1349
      %p1351 = scmp.lt.s32.totalorder %s23, 1
      %s1352 = scalar_select %p1351, %s23, 1
      %s1353 = scalar_lea.vmem %s11, %s1352
      // Predicated region
      $region57: #{imitator_forward.3} parent=55 // pred_check
        %p1354 = pneg %p240
      $region58: #{imitator_forward.3} parent=55 // pred_check_branch
        %1356 = sbr.rel (%p1354) target = $region60
      $region59: #{imitator_forward.3} parent=55 // pred_region
        _
      $region60: #{imitator_forward.3} parent=55 // pred_fallthru
        _
      // Predicated region
      $region61: #{imitator_forward.3} parent=55 // pred_check
        %p1357 = pneg %p266
      $region62: #{imitator_forward.3} parent=55 // pred_check_branch
        %1359 = sbr.rel (%p1357) target = $region64
      $region63: #{imitator_forward.3} parent=55 // pred_region
        _
      $region64: #{imitator_forward.3} parent=55 // pred_fallthru
        _
      // Predicated region
      $region65: #{imitator_forward.3} parent=55 // pred_check
        %p1360 = pneg %p292
      $region66: #{imitator_forward.3} parent=55 // pred_check_branch
        %1362 = sbr.rel (%p1360) target = $region68
      $region67: #{imitator_forward.3} parent=55 // pred_region
        _
      $region68: #{imitator_forward.3} parent=55 // pred_fallthru
        _
    $region56: #{imitator_forward.3} parent=5 // pred_fallthru
      _
    %p1363 = scmp.le.s32.totalorder 2, %s18
    // Predicated region
    $region69: #{imitator_forward.3} parent=5 // pred_check
      %p1364 = pneg %p1363
    $region70: #{imitator_forward.3} parent=5 // pred_check_branch
      %1366 = sbr.rel (%p1364) target = $region72
    $region71: #{imitator_forward.3} parent=5 // pred_region
      %s1367 = ssub.s32 %s18, 2
      // Predicated region
      $region73: #{imitator_forward.3} parent=71 // pred_check
        %p1368 = pneg %p246
      $region74: #{imitator_forward.3} parent=71 // pred_check_branch
        %1370 = sbr.rel (%p1368) target = $region76
      $region75: #{imitator_forward.3} parent=71 // pred_region
        %p1371 = scmp.lt.s32.totalorder %s24, 1
        %s1372 = scalar_select %p1371, %s24, 1
        %s1373 = smul.addr %s1372, 4
        %s1374 = smul.addr %s1373, 4
        %s1375 = scalar_lea.vmem %s9, %s1374
      $region76: #{imitator_forward.3} parent=71 // pred_fallthru
        _
      // Predicated region
      $region77: #{imitator_forward.3} parent=71 // pred_check
        %p1376 = pneg %p272
      $region78: #{imitator_forward.3} parent=71 // pred_check_branch
        %1378 = sbr.rel (%p1376) target = $region80
      $region79: #{imitator_forward.3} parent=71 // pred_region
        %p1379 = scmp.lt.s32.totalorder %s24, 1
        %s1380 = scalar_select %p1379, %s24, 1
        %s1381 = smul.addr %s1380, 4
        %s1382 = smul.addr %s1381, 4
        %s1383 = scalar_lea.vmem %s10, %s1382
      $region80: #{imitator_forward.3} parent=71 // pred_fallthru
        _
      // Predicated region
      $region81: #{imitator_forward.3} parent=71 // pred_check
        %p1384 = pneg %p298
      $region82: #{imitator_forward.3} parent=71 // pred_check_branch
        %1386 = sbr.rel (%p1384) target = $region84
      $region83: #{imitator_forward.3} parent=71 // pred_region
        %p1387 = scmp.lt.s32.totalorder %s24, 1
        %s1388 = scalar_select %p1387, %s24, 1
        %s1389 = scalar_lea.vmem %s11, %s1388
      $region84: #{imitator_forward.3} parent=71 // pred_fallthru
        _
    $region72: #{imitator_forward.3} parent=5 // pred_fallthru
      _
  $region6: #{imitator_forward.3} parent=0 // loop_footer
    %s22 = sadd.s32 1, %s18
  $region7: #{imitator_forward.3} parent=0 // loop_footer_branch
    %17 = sbr.rel target = $region3
  $region8: #{imitator_forward.3} parent=0 // loop_exit
    _

// kernel: imitator_forward.4
$region0: #{imitator_forward.4}
  #allocation0 [shape = 'u32[]', space=smem, size = 0x4, offset = 0x4, fixed_abs, tag = 'smem constant byte address 0x4 - core index']
  #allocation1 [shape = 'u32[72,128]{1,0:T(1,128)}', space=vmem, size = 0x9000, scoped, tag = 'internal scratch']
  #allocation2 [shape = 'f32[8,64]{1,0:T(8,128)}', space=vmem, size = 0x1000, scoped, tag = 'scratch operand']
  %s0 = inlined_call_operand.vmem [shape: f32[2,1,64], index: 0, kind: input, shape index: {}]
  %s1 = inlined_call_operand.vmem [shape: f32[2,1,64], index: 1, kind: input, shape index: {}]
  %s2 = inlined_call_operand.vmem [shape: bf16[2,4,8,16], index: 2, kind: input, shape index: {}]
  %s3 = inlined_call_operand.vmem [shape: bf16[2,4,8,16], index: 3, kind: input, shape index: {}]
  %s4 = inlined_call_operand.vmem [shape: f32[8,8], index: 4, kind: input, shape index: {}]
  %s5 = inlined_call_operand.vmem [shape: f32[8,8], index: 5, kind: input, shape index: {}]
  %s6 = inlined_call_operand.vmem [shape: bf16[4,64,16], index: 6, kind: input, shape index: {}]
  %s7 = inlined_call_operand.vmem [shape: bf16[4,64,16], index: 7, kind: input, shape index: {}]
  %s8 = inlined_call_operand.vmem [shape: bf16[4,64,16], index: 8, kind: input, shape index: {}]
  %s9 = inlined_call_operand.vmem [shape: f32[4,1,16], index: 9, kind: input, shape index: {}]
  %s10 = inlined_call_operand.vmem [shape: f32[4,1,16], index: 10, kind: input, shape index: {}]
  %s11 = inlined_call_operand.vmem [shape: f32[4,1,16], index: 11, kind: input, shape index: {}]
  %s12 = inlined_call_operand.vmem [shape: bf16[4,16,64], index: 12, kind: input, shape index: {}]
  %s13 = inlined_call_operand.vmem [shape: f32[1,64], index: 13, kind: input, shape index: {}]
  %s14 = inlined_call_operand.vmem [shape: bf16[4,64,16], index: 14, kind: input, shape index: {}]
  %s15 = inlined_call_operand.vmem [shape: f32[4,1,16], index: 15, kind: input, shape index: {}]
  %s16 = inlined_call_operand.vmem [shape: bf16[4,16,64], index: 16, kind: input, shape index: {}]
  %s17 = inlined_call_operand.vmem [shape: f32[1,64], index: 17, kind: input, shape index: {}]
  %s18 = inlined_call_operand.vmem [shape: bf16[64,128], index: 18, kind: input, shape index: {}]
  %s19 = inlined_call_operand.vmem [shape: f32[1,128], index: 19, kind: input, shape index: {}]
  %s20 = inlined_call_operand.vmem [shape: bf16[128,64], index: 20, kind: input, shape index: {}]
  %s21 = inlined_call_operand.vmem [shape: f32[1,64], index: 21, kind: input, shape index: {}]
  %s22 = inlined_call_operand.vmem [shape: f32[1,64], index: 22, kind: input, shape index: {}]
  %s23 = inlined_call_operand.vmem [shape: f32[1,64], index: 23, kind: input, shape index: {}]
  %s24 = inlined_call_operand.vmem [shape: f32[1,64], index: 24, kind: input, shape index: {}]
  %s25 = inlined_call_operand.vmem [shape: f32[1,64], index: 25, kind: input, shape index: {}]
  %s26 = inlined_call_operand.vmem [shape: f32[1,64], index: 26, kind: input, shape index: {}]
  %s27 = inlined_call_operand.vmem [shape: f32[1,64], index: 27, kind: input, shape index: {}]
  %s28 = inlined_call_operand.vmem [shape: f32[2,8,64], index: 28, kind: output, shape index: {}]
  %s29 = sld [smem:[#allocation0]]
  $region157: #{imitator_forward.4} parent=0
    _
  %s31 = ssub.s32 1, %s29
  %s32 = scalar_select 0, %s31, %s29
  loop: start=0, step=1, limit=18
  $region2: #{imitator_forward.4} parent=0 // loop_pre_header
    _
  $region3: #{imitator_forward.4} parent=0 // loop_header
    %s34 = sphi 0, %s38
    %p35 = scmp.ge.s32.totalorder %s34, 18
    %s41 = sphi 0, %s53
    %s42 = sphi 0, %s49
    %s43 = sphi 0, %s41
    %s44 = sphi 0, %s42
    %s45 = sphi 0, %s43
    %s46 = sphi 0, %s44
    %s56 = sphi 0, %s58
    %s59 = sphi 0, %s56
    %s60 = sphi 0, %s59
    %s76 = sphi 0, %s60
    %s82 = sphi 0, %s84
    %s85 = sphi 0, %s82
    %s86 = sphi 0, %s85
    %s102 = sphi 0, %s86
    %s108 = sphi 0, %s110
    %s111 = sphi 0, %s108
    %s112 = sphi 0, %s111
    %s128 = sphi 0, %s112
    %s134 = sphi 0, %s136
    %s137 = sphi 0, %s134
    %s138 = sphi 0, %s137
    %s154 = sphi 0, %s138
    %s158 = sphi 0, %s158
    %s160 = sphi 0, %s158
    %s161 = sphi 0, %s160
    %s175 = sphi 0, %s161
    %s179 = sphi 0, %s179
    %s181 = sphi 0, %s179
    %s182 = sphi 0, %s181
    %s196 = sphi 0, %s182
    %s200 = sphi 0, %s200
    %s202 = sphi 0, %s200
    %s203 = sphi 0, %s202
    %s217 = sphi 0, %s203
    %s221 = sphi 0, %s221
    %s223 = sphi 0, %s221
    %s224 = sphi 0, %s223
    %s238 = sphi 0, %s224
    %s242 = sphi 0, %s242
    %s244 = sphi 0, %s242
    %s245 = sphi 0, %s244
    %s259 = sphi 0, %s245
    %s263 = sphi 0, %s263
    %s265 = sphi 0, %s263
    %s266 = sphi 0, %s265
    %s280 = sphi 0, %s266
    %s284 = sphi 0, %s284
    %s286 = sphi 0, %s284
    %s287 = sphi 0, %s286
    %s301 = sphi 0, %s287
    %s305 = sphi 0, %s305
    %s307 = sphi 0, %s305
    %s308 = sphi 0, %s307
    %s322 = sphi 0, %s308
    %s326 = sphi 0, %s326
    %s328 = sphi 0, %s326
    %s329 = sphi 0, %s328
    %s343 = sphi 0, %s329
    %s347 = sphi 0, %s347
    %s349 = sphi 0, %s347
    %s350 = sphi 0, %s349
    %s364 = sphi 0, %s350
    %s368 = sphi 0, %s368
    %s370 = sphi 0, %s368
    %s371 = sphi 0, %s370
    %s385 = sphi 0, %s371
    %s389 = sphi 0, %s389
    %s391 = sphi 0, %s389
    %s392 = sphi 0, %s391
    %s406 = sphi 0, %s392
    %s410 = sphi 0, %s410
    %s412 = sphi 0, %s410
    %s413 = sphi 0, %s412
    %s427 = sphi 0, %s413
    %s431 = sphi 0, %s431
    %s433 = sphi 0, %s431
    %s434 = sphi 0, %s433
    %s448 = sphi 0, %s434
    %s452 = sphi 0, %s452
    %s454 = sphi 0, %s452
    %s455 = sphi 0, %s454
    %s469 = sphi 0, %s455
    %s473 = sphi 0, %s473
    %s475 = sphi 0, %s473
    %s476 = sphi 0, %s475
    %s490 = sphi 0, %s476
    %s494 = sphi 0, %s494
    %s496 = sphi 0, %s494
    %s497 = sphi 0, %s496
    %s511 = sphi 0, %s497
    %s515 = sphi 0, %s515
    %s517 = sphi 0, %s515
    %s518 = sphi 0, %s517
    %s532 = sphi 0, %s518
    %s536 = sphi 0, %s536
    %s538 = sphi 0, %s536
    %s539 = sphi 0, %s538
    %s553 = sphi 0, %s539
    %s557 = sphi 0, %s557
    %s559 = sphi 0, %s557
    %s560 = sphi 0, %s559
    %s574 = sphi 0, %s560
    %s578 = sphi 0, %s578
    %s580 = sphi 0, %s578
    %s581 = sphi 0, %s580
    %s595 = sphi 0, %s581
    %s599 = sphi 0, %s599
    %s601 = sphi 0, %s599
    %s602 = sphi 0, %s601
    %s616 = sphi 0, %s602
    %s620 = sphi 0, %s620
    %s622 = sphi 0, %s620
    %s623 = sphi 0, %s622
    %s637 = sphi 0, %s623
    %s641 = sphi 0, %s641
    %s643 = sphi 0, %s641
    %s644 = sphi 0, %s643
    %s658 = sphi 0, %s644
    %s664 = sphi 0, %s666
    %s667 = sphi 0, %s664
    %s668 = sphi 0, %s667
    %s684 = sphi 0, %s668
  $region4: #{imitator_forward.4} parent=0 // loop_header_branch
    %37 = sbr.rel (%p35) target = $region8
  $region5: #{imitator_forward.4} parent=0 // loop_body
    %s39 = ssub.s32 %s34, 1
    %s40 = ssub.s32 %s34, 2
    %s47 = sadd.s32 1, %s42
    %p48 = scmp.ge.s32.totalorder %s47, 8
    %s49 = scalar_select %p48, 0, %s47
    %s50 = sadd.s32 1, %s41
    %s51 = scalar_select %p48, %s50, %s41
    %p52 = scmp.ge.s32.totalorder %s51, 2
    %s53 = scalar_select %p52, 0, %s51
    %s54 = ssub.s32 %s41, %s53
    %p55 = scmp.eq.s32.totalorder %s54, 0
    %s57 = sadd.s32 %s56, 1
    %s58 = scalar_select %p55, %s56, %s57
    %p61 = pneg %p55
    %p62 = scmp.eq.s32.totalorder %s34, 15
    %p63 = por %p61, %p62
    %p64 = scmp.ne.s32.totalorder %s56, %s59
    %p65 = scmp.eq.s32.totalorder %s34, 0
    %p66 = por %p64, %p65
    %p67 = scmp.ne.s32.totalorder %s56, %s59
    %p68 = scmp.eq.s32.totalorder %s39, 15
    %p69 = por %p67, %p68
    %p70 = scmp.ne.s32.totalorder %s59, %s60
    %p71 = scmp.eq.s32.totalorder %s39, 0
    %p72 = por %p70, %p71
    %p73 = scmp.ne.s32.totalorder %s59, %s60
    %p74 = scmp.eq.s32.totalorder %s40, 15
    %p75 = por %p73, %p74
    %p77 = scmp.ne.s32.totalorder %s60, %s76
    %p78 = scmp.eq.s32.totalorder %s40, 0
    %p79 = por %p77, %p78
    %s80 = ssub.s32 %s41, %s53
    %p81 = scmp.eq.s32.totalorder %s80, 0
    %s83 = sadd.s32 %s82, 1
    %s84 = scalar_select %p81, %s82, %s83
    %p87 = pneg %p81
    %p88 = scmp.eq.s32.totalorder %s34, 15
    %p89 = por %p87, %p88
    %p90 = scmp.ne.s32.totalorder %s82, %s85
    %p91 = scmp.eq.s32.totalorder %s34, 0
    %p92 = por %p90, %p91
    %p93 = scmp.ne.s32.totalorder %s82, %s85
    %p94 = scmp.eq.s32.totalorder %s39, 15
    %p95 = por %p93, %p94
    %p96 = scmp.ne.s32.totalorder %s85, %s86
    %p97 = scmp.eq.s32.totalorder %s39, 0
    %p98 = por %p96, %p97
    %p99 = scmp.ne.s32.totalorder %s85, %s86
    %p100 = scmp.eq.s32.totalorder %s40, 15
    %p101 = por %p99, %p100
    %p103 = scmp.ne.s32.totalorder %s86, %s102
    %p104 = scmp.eq.s32.totalorder %s40, 0
    %p105 = por %p103, %p104
    %s106 = ssub.s32 %s41, %s53
    %p107 = scmp.eq.s32.totalorder %s106, 0
    %s109 = sadd.s32 %s108, 1
    %s110 = scalar_select %p107, %s108, %s109
    %p113 = pneg %p107
    %p114 = scmp.eq.s32.totalorder %s34, 15
    %p115 = por %p113, %p114
    %p116 = scmp.ne.s32.totalorder %s108, %s111
    %p117 = scmp.eq.s32.totalorder %s34, 0
    %p118 = por %p116, %p117
    %p119 = scmp.ne.s32.totalorder %s108, %s111
    %p120 = scmp.eq.s32.totalorder %s39, 15
    %p121 = por %p119, %p120
    %p122 = scmp.ne.s32.totalorder %s111, %s112
    %p123 = scmp.eq.s32.totalorder %s39, 0
    %p124 = por %p122, %p123
    %p125 = scmp.ne.s32.totalorder %s111, %s112
    %p126 = scmp.eq.s32.totalorder %s40, 15
    %p127 = por %p125, %p126
    %p129 = scmp.ne.s32.totalorder %s112, %s128
    %p130 = scmp.eq.s32.totalorder %s40, 0
    %p131 = por %p129, %p130
    %s132 = ssub.s32 %s41, %s53
    %p133 = scmp.eq.s32.totalorder %s132, 0
    %s135 = sadd.s32 %s134, 1
    %s136 = scalar_select %p133, %s134, %s135
    %p139 = pneg %p133
    %p140 = scmp.eq.s32.totalorder %s34, 15
    %p141 = por %p139, %p140
    %p142 = scmp.ne.s32.totalorder %s134, %s137
    %p143 = scmp.eq.s32.totalorder %s34, 0
    %p144 = por %p142, %p143
    %p145 = scmp.ne.s32.totalorder %s134, %s137
    %p146 = scmp.eq.s32.totalorder %s39, 15
    %p147 = por %p145, %p146
    %p148 = scmp.ne.s32.totalorder %s137, %s138
    %p149 = scmp.eq.s32.totalorder %s39, 0
    %p150 = por %p148, %p149
    %p151 = scmp.ne.s32.totalorder %s137, %s138
    %p152 = scmp.eq.s32.totalorder %s40, 15
    %p153 = por %p151, %p152
    %p155 = scmp.ne.s32.totalorder %s138, %s154
    %p156 = scmp.eq.s32.totalorder %s40, 0
    %p157 = por %p155, %p156
    %s159 = sadd.s32 %s158, 1
    %p162 = scmp.eq.s32.totalorder %s34, 15
    %p163 = scmp.ne.s32.totalorder %s158, %s160
    %p164 = scmp.eq.s32.totalorder %s34, 0
    %p165 = por %p163, %p164
    %p166 = scmp.ne.s32.totalorder %s158, %s160
    %p167 = scmp.eq.s32.totalorder %s39, 15
    %p168 = por %p166, %p167
    %p169 = scmp.ne.s32.totalorder %s160, %s161
    %p170 = scmp.eq.s32.totalorder %s39, 0
    %p171 = por %p169, %p170
    %p172 = scmp.ne.s32.totalorder %s160, %s161
    %p173 = scmp.eq.s32.totalorder %s40, 15
    %p174 = por %p172, %p173
    %p176 = scmp.ne.s32.totalorder %s161, %s175
    %p177 = scmp.eq.s32.totalorder %s40, 0
    %p178 = por %p176, %p177
    %s180 = sadd.s32 %s179, 1
    %p183 = scmp.eq.s32.totalorder %s34, 15
    %p184 = scmp.ne.s32.totalorder %s179, %s181
    %p185 = scmp.eq.s32.totalorder %s34, 0
    %p186 = por %p184, %p185
    %p187 = scmp.ne.s32.totalorder %s179, %s181
    %p188 = scmp.eq.s32.totalorder %s39, 15
    %p189 = por %p187, %p188
    %p190 = scmp.ne.s32.totalorder %s181, %s182
    %p191 = scmp.eq.s32.totalorder %s39, 0
    %p192 = por %p190, %p191
    %p193 = scmp.ne.s32.totalorder %s181, %s182
    %p194 = scmp.eq.s32.totalorder %s40, 15
    %p195 = por %p193, %p194
    %p197 = scmp.ne.s32.totalorder %s182, %s196
    %p198 = scmp.eq.s32.totalorder %s40, 0
    %p199 = por %p197, %p198
    %s201 = sadd.s32 %s200, 1
    %p204 = scmp.eq.s32.totalorder %s34, 15
    %p205 = scmp.ne.s32.totalorder %s200, %s202
    %p206 = scmp.eq.s32.totalorder %s34, 0
    %p207 = por %p205, %p206
    %p208 = scmp.ne.s32.totalorder %s200, %s202
    %p209 = scmp.eq.s32.totalorder %s39, 15
    %p210 = por %p208, %p209
    %p211 = scmp.ne.s32.totalorder %s202, %s203
    %p212 = scmp.eq.s32.totalorder %s39, 0
    %p213 = por %p211, %p212
    %p214 = scmp.ne.s32.totalorder %s202, %s203
    %p215 = scmp.eq.s32.totalorder %s40, 15
    %p216 = por %p214, %p215
    %p218 = scmp.ne.s32.totalorder %s203, %s217
    %p219 = scmp.eq.s32.totalorder %s40, 0
    %p220 = por %p218, %p219
    %s222 = sadd.s32 %s221, 1
    %p225 = scmp.eq.s32.totalorder %s34, 15
    %p226 = scmp.ne.s32.totalorder %s221, %s223
    %p227 = scmp.eq.s32.totalorder %s34, 0
    %p228 = por %p226, %p227
    %p229 = scmp.ne.s32.totalorder %s221, %s223
    %p230 = scmp.eq.s32.totalorder %s39, 15
    %p231 = por %p229, %p230
    %p232 = scmp.ne.s32.totalorder %s223, %s224
    %p233 = scmp.eq.s32.totalorder %s39, 0
    %p234 = por %p232, %p233
    %p235 = scmp.ne.s32.totalorder %s223, %s224
    %p236 = scmp.eq.s32.totalorder %s40, 15
    %p237 = por %p235, %p236
    %p239 = scmp.ne.s32.totalorder %s224, %s238
    %p240 = scmp.eq.s32.totalorder %s40, 0
    %p241 = por %p239, %p240
    %s243 = sadd.s32 %s242, 1
    %p246 = scmp.eq.s32.totalorder %s34, 15
    %p247 = scmp.ne.s32.totalorder %s242, %s244
    %p248 = scmp.eq.s32.totalorder %s34, 0
    %p249 = por %p247, %p248
    %p250 = scmp.ne.s32.totalorder %s242, %s244
    %p251 = scmp.eq.s32.totalorder %s39, 15
    %p252 = por %p250, %p251
    %p253 = scmp.ne.s32.totalorder %s244, %s245
    %p254 = scmp.eq.s32.totalorder %s39, 0
    %p255 = por %p253, %p254
    %p256 = scmp.ne.s32.totalorder %s244, %s245
    %p257 = scmp.eq.s32.totalorder %s40, 15
    %p258 = por %p256, %p257
    %p260 = scmp.ne.s32.totalorder %s245, %s259
    %p261 = scmp.eq.s32.totalorder %s40, 0
    %p262 = por %p260, %p261
    %s264 = sadd.s32 %s263, 1
    %p267 = scmp.eq.s32.totalorder %s34, 15
    %p268 = scmp.ne.s32.totalorder %s263, %s265
    %p269 = scmp.eq.s32.totalorder %s34, 0
    %p270 = por %p268, %p269
    %p271 = scmp.ne.s32.totalorder %s263, %s265
    %p272 = scmp.eq.s32.totalorder %s39, 15
    %p273 = por %p271, %p272
    %p274 = scmp.ne.s32.totalorder %s265, %s266
    %p275 = scmp.eq.s32.totalorder %s39, 0
    %p276 = por %p274, %p275
    %p277 = scmp.ne.s32.totalorder %s265, %s266
    %p278 = scmp.eq.s32.totalorder %s40, 15
    %p279 = por %p277, %p278
    %p281 = scmp.ne.s32.totalorder %s266, %s280
    %p282 = scmp.eq.s32.totalorder %s40, 0
    %p283 = por %p281, %p282
    %s285 = sadd.s32 %s284, 1
    %p288 = scmp.eq.s32.totalorder %s34, 15
    %p289 = scmp.ne.s32.totalorder %s284, %s286
    %p290 = scmp.eq.s32.totalorder %s34, 0
    %p291 = por %p289, %p290
    %p292 = scmp.ne.s32.totalorder %s284, %s286
    %p293 = scmp.eq.s32.totalorder %s39, 15
    %p294 = por %p292, %p293
    %p295 = scmp.ne.s32.totalorder %s286, %s287
    %p296 = scmp.eq.s32.totalorder %s39, 0
    %p297 = por %p295, %p296
    %p298 = scmp.ne.s32.totalorder %s286, %s287
    %p299 = scmp.eq.s32.totalorder %s40, 15
    %p300 = por %p298, %p299
    %p302 = scmp.ne.s32.totalorder %s287, %s301
    %p303 = scmp.eq.s32.totalorder %s40, 0
    %p304 = por %p302, %p303
    %s306 = sadd.s32 %s305, 1
    %p309 = scmp.eq.s32.totalorder %s34, 15
    %p310 = scmp.ne.s32.totalorder %s305, %s307
    %p311 = scmp.eq.s32.totalorder %s34, 0
    %p312 = por %p310, %p311
    %p313 = scmp.ne.s32.totalorder %s305, %s307
    %p314 = scmp.eq.s32.totalorder %s39, 15
    %p315 = por %p313, %p314
    %p316 = scmp.ne.s32.totalorder %s307, %s308
    %p317 = scmp.eq.s32.totalorder %s39, 0
    %p318 = por %p316, %p317
    %p319 = scmp.ne.s32.totalorder %s307, %s308
    %p320 = scmp.eq.s32.totalorder %s40, 15
    %p321 = por %p319, %p320
    %p323 = scmp.ne.s32.totalorder %s308, %s322
    %p324 = scmp.eq.s32.totalorder %s40, 0
    %p325 = por %p323, %p324
    %s327 = sadd.s32 %s326, 1
    %p330 = scmp.eq.s32.totalorder %s34, 15
    %p331 = scmp.ne.s32.totalorder %s326, %s328
    %p332 = scmp.eq.s32.totalorder %s34, 0
    %p333 = por %p331, %p332
    %p334 = scmp.ne.s32.totalorder %s326, %s328
    %p335 = scmp.eq.s32.totalorder %s39, 15
    %p336 = por %p334, %p335
    %p337 = scmp.ne.s32.totalorder %s328, %s329
    %p338 = scmp.eq.s32.totalorder %s39, 0
    %p339 = por %p337, %p338
    %p340 = scmp.ne.s32.totalorder %s328, %s329
    %p341 = scmp.eq.s32.totalorder %s40, 15
    %p342 = por %p340, %p341
    %p344 = scmp.ne.s32.totalorder %s329, %s343
    %p345 = scmp.eq.s32.totalorder %s40, 0
    %p346 = por %p344, %p345
    %s348 = sadd.s32 %s347, 1
    %p351 = scmp.eq.s32.totalorder %s34, 15
    %p352 = scmp.ne.s32.totalorder %s347, %s349
    %p353 = scmp.eq.s32.totalorder %s34, 0
    %p354 = por %p352, %p353
    %p355 = scmp.ne.s32.totalorder %s347, %s349
    %p356 = scmp.eq.s32.totalorder %s39, 15
    %p357 = por %p355, %p356
    %p358 = scmp.ne.s32.totalorder %s349, %s350
    %p359 = scmp.eq.s32.totalorder %s39, 0
    %p360 = por %p358, %p359
    %p361 = scmp.ne.s32.totalorder %s349, %s350
    %p362 = scmp.eq.s32.totalorder %s40, 15
    %p363 = por %p361, %p362
    %p365 = scmp.ne.s32.totalorder %s350, %s364
    %p366 = scmp.eq.s32.totalorder %s40, 0
    %p367 = por %p365, %p366
    %s369 = sadd.s32 %s368, 1
    %p372 = scmp.eq.s32.totalorder %s34, 15
    %p373 = scmp.ne.s32.totalorder %s368, %s370
    %p374 = scmp.eq.s32.totalorder %s34, 0
    %p375 = por %p373, %p374
    %p376 = scmp.ne.s32.totalorder %s368, %s370
    %p377 = scmp.eq.s32.totalorder %s39, 15
    %p378 = por %p376, %p377
    %p379 = scmp.ne.s32.totalorder %s370, %s371
    %p380 = scmp.eq.s32.totalorder %s39, 0
    %p381 = por %p379, %p380
    %p382 = scmp.ne.s32.totalorder %s370, %s371
    %p383 = scmp.eq.s32.totalorder %s40, 15
    %p384 = por %p382, %p383
    %p386 = scmp.ne.s32.totalorder %s371, %s385
    %p387 = scmp.eq.s32.totalorder %s40, 0
    %p388 = por %p386, %p387
    %s390 = sadd.s32 %s389, 1
    %p393 = scmp.eq.s32.totalorder %s34, 15
    %p394 = scmp.ne.s32.totalorder %s389, %s391
    %p395 = scmp.eq.s32.totalorder %s34, 0
    %p396 = por %p394, %p395
    %p397 = scmp.ne.s32.totalorder %s389, %s391
    %p398 = scmp.eq.s32.totalorder %s39, 15
    %p399 = por %p397, %p398
    %p400 = scmp.ne.s32.totalorder %s391, %s392
    %p401 = scmp.eq.s32.totalorder %s39, 0
    %p402 = por %p400, %p401
    %p403 = scmp.ne.s32.totalorder %s391, %s392
    %p404 = scmp.eq.s32.totalorder %s40, 15
    %p405 = por %p403, %p404
    %p407 = scmp.ne.s32.totalorder %s392, %s406
    %p408 = scmp.eq.s32.totalorder %s40, 0
    %p409 = por %p407, %p408
    %s411 = sadd.s32 %s410, 1
    %p414 = scmp.eq.s32.totalorder %s34, 15
    %p415 = scmp.ne.s32.totalorder %s410, %s412
    %p416 = scmp.eq.s32.totalorder %s34, 0
    %p417 = por %p415, %p416
    %p418 = scmp.ne.s32.totalorder %s410, %s412
    %p419 = scmp.eq.s32.totalorder %s39, 15
    %p420 = por %p418, %p419
    %p421 = scmp.ne.s32.totalorder %s412, %s413
    %p422 = scmp.eq.s32.totalorder %s39, 0
    %p423 = por %p421, %p422
    %p424 = scmp.ne.s32.totalorder %s412, %s413
    %p425 = scmp.eq.s32.totalorder %s40, 15
    %p426 = por %p424, %p425
    %p428 = scmp.ne.s32.totalorder %s413, %s427
    %p429 = scmp.eq.s32.totalorder %s40, 0
    %p430 = por %p428, %p429
    %s432 = sadd.s32 %s431, 1
    %p435 = scmp.eq.s32.totalorder %s34, 15
    %p436 = scmp.ne.s32.totalorder %s431, %s433
    %p437 = scmp.eq.s32.totalorder %s34, 0
    %p438 = por %p436, %p437
    %p439 = scmp.ne.s32.totalorder %s431, %s433
    %p440 = scmp.eq.s32.totalorder %s39, 15
    %p441 = por %p439, %p440
    %p442 = scmp.ne.s32.totalorder %s433, %s434
    %p443 = scmp.eq.s32.totalorder %s39, 0
    %p444 = por %p442, %p443
    %p445 = scmp.ne.s32.totalorder %s433, %s434
    %p446 = scmp.eq.s32.totalorder %s40, 15
    %p447 = por %p445, %p446
    %p449 = scmp.ne.s32.totalorder %s434, %s448
    %p450 = scmp.eq.s32.totalorder %s40, 0
    %p451 = por %p449, %p450
    %s453 = sadd.s32 %s452, 1
    %p456 = scmp.eq.s32.totalorder %s34, 15
    %p457 = scmp.ne.s32.totalorder %s452, %s454
    %p458 = scmp.eq.s32.totalorder %s34, 0
    %p459 = por %p457, %p458
    %p460 = scmp.ne.s32.totalorder %s452, %s454
    %p461 = scmp.eq.s32.totalorder %s39, 15
    %p462 = por %p460, %p461
    %p463 = scmp.ne.s32.totalorder %s454, %s455
    %p464 = scmp.eq.s32.totalorder %s39, 0
    %p465 = por %p463, %p464
    %p466 = scmp.ne.s32.totalorder %s454, %s455
    %p467 = scmp.eq.s32.totalorder %s40, 15
    %p468 = por %p466, %p467
    %p470 = scmp.ne.s32.totalorder %s455, %s469
    %p471 = scmp.eq.s32.totalorder %s40, 0
    %p472 = por %p470, %p471
    %s474 = sadd.s32 %s473, 1
    %p477 = scmp.eq.s32.totalorder %s34, 15
    %p478 = scmp.ne.s32.totalorder %s473, %s475
    %p479 = scmp.eq.s32.totalorder %s34, 0
    %p480 = por %p478, %p479
    %p481 = scmp.ne.s32.totalorder %s473, %s475
    %p482 = scmp.eq.s32.totalorder %s39, 15
    %p483 = por %p481, %p482
    %p484 = scmp.ne.s32.totalorder %s475, %s476
    %p485 = scmp.eq.s32.totalorder %s39, 0
    %p486 = por %p484, %p485
    %p487 = scmp.ne.s32.totalorder %s475, %s476
    %p488 = scmp.eq.s32.totalorder %s40, 15
    %p489 = por %p487, %p488
    %p491 = scmp.ne.s32.totalorder %s476, %s490
    %p492 = scmp.eq.s32.totalorder %s40, 0
    %p493 = por %p491, %p492
    %s495 = sadd.s32 %s494, 1
    %p498 = scmp.eq.s32.totalorder %s34, 15
    %p499 = scmp.ne.s32.totalorder %s494, %s496
    %p500 = scmp.eq.s32.totalorder %s34, 0
    %p501 = por %p499, %p500
    %p502 = scmp.ne.s32.totalorder %s494, %s496
    %p503 = scmp.eq.s32.totalorder %s39, 15
    %p504 = por %p502, %p503
    %p505 = scmp.ne.s32.totalorder %s496, %s497
    %p506 = scmp.eq.s32.totalorder %s39, 0
    %p507 = por %p505, %p506
    %p508 = scmp.ne.s32.totalorder %s496, %s497
    %p509 = scmp.eq.s32.totalorder %s40, 15
    %p510 = por %p508, %p509
    %p512 = scmp.ne.s32.totalorder %s497, %s511
    %p513 = scmp.eq.s32.totalorder %s40, 0
    %p514 = por %p512, %p513
    %s516 = sadd.s32 %s515, 1
    %p519 = scmp.eq.s32.totalorder %s34, 15
    %p520 = scmp.ne.s32.totalorder %s515, %s517
    %p521 = scmp.eq.s32.totalorder %s34, 0
    %p522 = por %p520, %p521
    %p523 = scmp.ne.s32.totalorder %s515, %s517
    %p524 = scmp.eq.s32.totalorder %s39, 15
    %p525 = por %p523, %p524
    %p526 = scmp.ne.s32.totalorder %s517, %s518
    %p527 = scmp.eq.s32.totalorder %s39, 0
    %p528 = por %p526, %p527
    %p529 = scmp.ne.s32.totalorder %s517, %s518
    %p530 = scmp.eq.s32.totalorder %s40, 15
    %p531 = por %p529, %p530
    %p533 = scmp.ne.s32.totalorder %s518, %s532
    %p534 = scmp.eq.s32.totalorder %s40, 0
    %p535 = por %p533, %p534
    %s537 = sadd.s32 %s536, 1
    %p540 = scmp.eq.s32.totalorder %s34, 15
    %p541 = scmp.ne.s32.totalorder %s536, %s538
    %p542 = scmp.eq.s32.totalorder %s34, 0
    %p543 = por %p541, %p542
    %p544 = scmp.ne.s32.totalorder %s536, %s538
    %p545 = scmp.eq.s32.totalorder %s39, 15
    %p546 = por %p544, %p545
    %p547 = scmp.ne.s32.totalorder %s538, %s539
    %p548 = scmp.eq.s32.totalorder %s39, 0
    %p549 = por %p547, %p548
    %p550 = scmp.ne.s32.totalorder %s538, %s539
    %p551 = scmp.eq.s32.totalorder %s40, 15
    %p552 = por %p550, %p551
    %p554 = scmp.ne.s32.totalorder %s539, %s553
    %p555 = scmp.eq.s32.totalorder %s40, 0
    %p556 = por %p554, %p555
    %s558 = sadd.s32 %s557, 1
    %p561 = scmp.eq.s32.totalorder %s34, 15
    %p562 = scmp.ne.s32.totalorder %s557, %s559
    %p563 = scmp.eq.s32.totalorder %s34, 0
    %p564 = por %p562, %p563
    %p565 = scmp.ne.s32.totalorder %s557, %s559
    %p566 = scmp.eq.s32.totalorder %s39, 15
    %p567 = por %p565, %p566
    %p568 = scmp.ne.s32.totalorder %s559, %s560
    %p569 = scmp.eq.s32.totalorder %s39, 0
    %p570 = por %p568, %p569
    %p571 = scmp.ne.s32.totalorder %s559, %s560
    %p572 = scmp.eq.s32.totalorder %s40, 15
    %p573 = por %p571, %p572
    %p575 = scmp.ne.s32.totalorder %s560, %s574
    %p576 = scmp.eq.s32.totalorder %s40, 0
    %p577 = por %p575, %p576
    %s579 = sadd.s32 %s578, 1
    %p582 = scmp.eq.s32.totalorder %s34, 15
    %p583 = scmp.ne.s32.totalorder %s578, %s580
    %p584 = scmp.eq.s32.totalorder %s34, 0
    %p585 = por %p583, %p584
    %p586 = scmp.ne.s32.totalorder %s578, %s580
    %p587 = scmp.eq.s32.totalorder %s39, 15
    %p588 = por %p586, %p587
    %p589 = scmp.ne.s32.totalorder %s580, %s581
    %p590 = scmp.eq.s32.totalorder %s39, 0
    %p591 = por %p589, %p590
    %p592 = scmp.ne.s32.totalorder %s580, %s581
    %p593 = scmp.eq.s32.totalorder %s40, 15
    %p594 = por %p592, %p593
    %p596 = scmp.ne.s32.totalorder %s581, %s595
    %p597 = scmp.eq.s32.totalorder %s40, 0
    %p598 = por %p596, %p597
    %s600 = sadd.s32 %s599, 1
    %p603 = scmp.eq.s32.totalorder %s34, 15
    %p604 = scmp.ne.s32.totalorder %s599, %s601
    %p605 = scmp.eq.s32.totalorder %s34, 0
    %p606 = por %p604, %p605
    %p607 = scmp.ne.s32.totalorder %s599, %s601
    %p608 = scmp.eq.s32.totalorder %s39, 15
    %p609 = por %p607, %p608
    %p610 = scmp.ne.s32.totalorder %s601, %s602
    %p611 = scmp.eq.s32.totalorder %s39, 0
    %p612 = por %p610, %p611
    %p613 = scmp.ne.s32.totalorder %s601, %s602
    %p614 = scmp.eq.s32.totalorder %s40, 15
    %p615 = por %p613, %p614
    %p617 = scmp.ne.s32.totalorder %s602, %s616
    %p618 = scmp.eq.s32.totalorder %s40, 0
    %p619 = por %p617, %p618
    %s621 = sadd.s32 %s620, 1
    %p624 = scmp.eq.s32.totalorder %s34, 15
    %p625 = scmp.ne.s32.totalorder %s620, %s622
    %p626 = scmp.eq.s32.totalorder %s34, 0
    %p627 = por %p625, %p626
    %p628 = scmp.ne.s32.totalorder %s620, %s622
    %p629 = scmp.eq.s32.totalorder %s39, 15
    %p630 = por %p628, %p629
    %p631 = scmp.ne.s32.totalorder %s622, %s623
    %p632 = scmp.eq.s32.totalorder %s39, 0
    %p633 = por %p631, %p632
    %p634 = scmp.ne.s32.totalorder %s622, %s623
    %p635 = scmp.eq.s32.totalorder %s40, 15
    %p636 = por %p634, %p635
    %p638 = scmp.ne.s32.totalorder %s623, %s637
    %p639 = scmp.eq.s32.totalorder %s40, 0
    %p640 = por %p638, %p639
    %s642 = sadd.s32 %s641, 1
    %p645 = scmp.eq.s32.totalorder %s34, 15
    %p646 = scmp.ne.s32.totalorder %s641, %s643
    %p647 = scmp.eq.s32.totalorder %s34, 0
    %p648 = por %p646, %p647
    %p649 = scmp.ne.s32.totalorder %s641, %s643
    %p650 = scmp.eq.s32.totalorder %s39, 15
    %p651 = por %p649, %p650
    %p652 = scmp.ne.s32.totalorder %s643, %s644
    %p653 = scmp.eq.s32.totalorder %s39, 0
    %p654 = por %p652, %p653
    %p655 = scmp.ne.s32.totalorder %s643, %s644
    %p656 = scmp.eq.s32.totalorder %s40, 15
    %p657 = por %p655, %p656
    %p659 = scmp.ne.s32.totalorder %s644, %s658
    %p660 = scmp.eq.s32.totalorder %s40, 0
    %p661 = por %p659, %p660
    %s662 = ssub.s32 %s41, %s53
    %p663 = scmp.eq.s32.totalorder %s662, 0
    %s665 = sadd.s32 %s664, 1
    %s666 = scalar_select %p663, %s664, %s665
    %p669 = pneg %p663
    %p670 = scmp.eq.s32.totalorder %s34, 15
    %p671 = por %p669, %p670
    %p672 = scmp.ne.s32.totalorder %s664, %s667
    %p673 = scmp.eq.s32.totalorder %s34, 0
    %p674 = por %p672, %p673
    %p675 = scmp.ne.s32.totalorder %s664, %s667
    %p676 = scmp.eq.s32.totalorder %s39, 15
    %p677 = por %p675, %p676
    %p678 = scmp.ne.s32.totalorder %s667, %s668
    %p679 = scmp.eq.s32.totalorder %s39, 0
    %p680 = por %p678, %p679
    %p681 = scmp.ne.s32.totalorder %s667, %s668
    %p682 = scmp.eq.s32.totalorder %s40, 15
    %p683 = por %p681, %p682
    %p685 = scmp.ne.s32.totalorder %s668, %s684
    %p686 = scmp.eq.s32.totalorder %s40, 0
    %p687 = por %p685, %p686
    %p688 = scmp.le.s32.totalorder 1, %s34
    %p689 = scmp.lt.s32.totalorder %s34, 17
    %p690 = pnand %p688, %p689
    %p691 = pneg %p690
    // Predicated region
    $region9: #{imitator_forward.4} parent=5 // pred_check
      _
    $region10: #{imitator_forward.4} parent=5 // pred_check_branch
      %693 = sbr.rel (%p690) target = $region12
    $region11: #{imitator_forward.4} parent=5 // pred_region
      %s694 = ssub.s32 %s34, 1
      // Predicated region
      $region13: #{imitator_forward.4} parent=11 // pred_check
        %p695 = pneg %p171
      $region14: #{imitator_forward.4} parent=11 // pred_check_branch
        %697 = sbr.rel (%p695) target = $region16
      $region15: #{imitator_forward.4} parent=11 // pred_region
        _
      $region16: #{imitator_forward.4} parent=11 // pred_fallthru
        _
      // Predicated region
      $region17: #{imitator_forward.4} parent=11 // pred_check
        %p698 = pneg %p192
      $region18: #{imitator_forward.4} parent=11 // pred_check_branch
        %700 = sbr.rel (%p698) target = $region20
      $region19: #{imitator_forward.4} parent=11 // pred_region
        _
      $region20: #{imitator_forward.4} parent=11 // pred_fallthru
        _
      // Predicated region
      $region21: #{imitator_forward.4} parent=11 // pred_check
        %p701 = pneg %p213
      $region22: #{imitator_forward.4} parent=11 // pred_check_branch
        %703 = sbr.rel (%p701) target = $region24
      $region23: #{imitator_forward.4} parent=11 // pred_region
        _
      $region24: #{imitator_forward.4} parent=11 // pred_fallthru
        _
      // Predicated region
      $region25: #{imitator_forward.4} parent=11 // pred_check
        %p704 = pneg %p234
      $region26: #{imitator_forward.4} parent=11 // pred_check_branch
        %706 = sbr.rel (%p704) target = $region28
      $region27: #{imitator_forward.4} parent=11 // pred_region
        _
      $region28: #{imitator_forward.4} parent=11 // pred_fallthru
        _
      // Predicated region
      $region29: #{imitator_forward.4} parent=11 // pred_check
        %p707 = pneg %p255
      $region30: #{imitator_forward.4} parent=11 // pred_check_branch
        %709 = sbr.rel (%p707) target = $region32
      $region31: #{imitator_forward.4} parent=11 // pred_region
        _
      $region32: #{imitator_forward.4} parent=11 // pred_fallthru
        _
      // Predicated region
      $region33: #{imitator_forward.4} parent=11 // pred_check
        %p710 = pneg %p276
      $region34: #{imitator_forward.4} parent=11 // pred_check_branch
        %712 = sbr.rel (%p710) target = $region36
      $region35: #{imitator_forward.4} parent=11 // pred_region
        _
      $region36: #{imitator_forward.4} parent=11 // pred_fallthru
        _
      // Predicated region
      $region37: #{imitator_forward.4} parent=11 // pred_check
        %p713 = pneg %p297
      $region38: #{imitator_forward.4} parent=11 // pred_check_branch
        %715 = sbr.rel (%p713) target = $region40
      $region39: #{imitator_forward.4} parent=11 // pred_region
        _
      $region40: #{imitator_forward.4} parent=11 // pred_fallthru
        _
      // Predicated region
      $region41: #{imitator_forward.4} parent=11 // pred_check
        %p716 = pneg %p318
      $region42: #{imitator_forward.4} parent=11 // pred_check_branch
        %718 = sbr.rel (%p716) target = $region44
      $region43: #{imitator_forward.4} parent=11 // pred_region
        _
      $region44: #{imitator_forward.4} parent=11 // pred_fallthru
        _
      // Predicated region
      $region45: #{imitator_forward.4} parent=11 // pred_check
        %p719 = pneg %p339
      $region46: #{imitator_forward.4} parent=11 // pred_check_branch
        %721 = sbr.rel (%p719) target = $region48
      $region47: #{imitator_forward.4} parent=11 // pred_region
        _
      $region48: #{imitator_forward.4} parent=11 // pred_fallthru
        _
      // Predicated region
      $region49: #{imitator_forward.4} parent=11 // pred_check
        %p722 = pneg %p360
      $region50: #{imitator_forward.4} parent=11 // pred_check_branch
        %724 = sbr.rel (%p722) target = $region52
      $region51: #{imitator_forward.4} parent=11 // pred_region
        _
      $region52: #{imitator_forward.4} parent=11 // pred_fallthru
        _
      // Predicated region
      $region53: #{imitator_forward.4} parent=11 // pred_check
        %p725 = pneg %p381
      $region54: #{imitator_forward.4} parent=11 // pred_check_branch
        %727 = sbr.rel (%p725) target = $region56
      $region55: #{imitator_forward.4} parent=11 // pred_region
        _
      $region56: #{imitator_forward.4} parent=11 // pred_fallthru
        _
      // Predicated region
      $region57: #{imitator_forward.4} parent=11 // pred_check
        %p728 = pneg %p402
      $region58: #{imitator_forward.4} parent=11 // pred_check_branch
        %730 = sbr.rel (%p728) target = $region60
      $region59: #{imitator_forward.4} parent=11 // pred_region
        _
      $region60: #{imitator_forward.4} parent=11 // pred_fallthru
        _
      // Predicated region
      $region61: #{imitator_forward.4} parent=11 // pred_check
        %p731 = pneg %p423
      $region62: #{imitator_forward.4} parent=11 // pred_check_branch
        %733 = sbr.rel (%p731) target = $region64
      $region63: #{imitator_forward.4} parent=11 // pred_region
        _
      $region64: #{imitator_forward.4} parent=11 // pred_fallthru
        _
      // Predicated region
      $region65: #{imitator_forward.4} parent=11 // pred_check
        %p734 = pneg %p444
      $region66: #{imitator_forward.4} parent=11 // pred_check_branch
        %736 = sbr.rel (%p734) target = $region68
      $region67: #{imitator_forward.4} parent=11 // pred_region
        _
      $region68: #{imitator_forward.4} parent=11 // pred_fallthru
        _
      // Predicated region
      $region69: #{imitator_forward.4} parent=11 // pred_check
        %p737 = pneg %p465
      $region70: #{imitator_forward.4} parent=11 // pred_check_branch
        %739 = sbr.rel (%p737) target = $region72
      $region71: #{imitator_forward.4} parent=11 // pred_region
        _
      $region72: #{imitator_forward.4} parent=11 // pred_fallthru
        _
      // Predicated region
      $region73: #{imitator_forward.4} parent=11 // pred_check
        %p740 = pneg %p486
      $region74: #{imitator_forward.4} parent=11 // pred_check_branch
        %742 = sbr.rel (%p740) target = $region76
      $region75: #{imitator_forward.4} parent=11 // pred_region
        _
      $region76: #{imitator_forward.4} parent=11 // pred_fallthru
        _
      // Predicated region
      $region77: #{imitator_forward.4} parent=11 // pred_check
        %p743 = pneg %p507
      $region78: #{imitator_forward.4} parent=11 // pred_check_branch
        %745 = sbr.rel (%p743) target = $region80
      $region79: #{imitator_forward.4} parent=11 // pred_region
        _
      $region80: #{imitator_forward.4} parent=11 // pred_fallthru
        _
      // Predicated region
      $region81: #{imitator_forward.4} parent=11 // pred_check
        %p746 = pneg %p528
      $region82: #{imitator_forward.4} parent=11 // pred_check_branch
        %748 = sbr.rel (%p746) target = $region84
      $region83: #{imitator_forward.4} parent=11 // pred_region
        _
      $region84: #{imitator_forward.4} parent=11 // pred_fallthru
        _
      // Predicated region
      $region85: #{imitator_forward.4} parent=11 // pred_check
        %p749 = pneg %p549
      $region86: #{imitator_forward.4} parent=11 // pred_check_branch
        %751 = sbr.rel (%p749) target = $region88
      $region87: #{imitator_forward.4} parent=11 // pred_region
        _
      $region88: #{imitator_forward.4} parent=11 // pred_fallthru
        _
      // Predicated region
      $region89: #{imitator_forward.4} parent=11 // pred_check
        %p752 = pneg %p570
      $region90: #{imitator_forward.4} parent=11 // pred_check_branch
        %754 = sbr.rel (%p752) target = $region92
      $region91: #{imitator_forward.4} parent=11 // pred_region
        _
      $region92: #{imitator_forward.4} parent=11 // pred_fallthru
        _
      // Predicated region
      $region93: #{imitator_forward.4} parent=11 // pred_check
        %p755 = pneg %p591
      $region94: #{imitator_forward.4} parent=11 // pred_check_branch
        %757 = sbr.rel (%p755) target = $region96
      $region95: #{imitator_forward.4} parent=11 // pred_region
        _
      $region96: #{imitator_forward.4} parent=11 // pred_fallthru
        _
      // Predicated region
      $region97: #{imitator_forward.4} parent=11 // pred_check
        %p758 = pneg %p612
      $region98: #{imitator_forward.4} parent=11 // pred_check_branch
        %760 = sbr.rel (%p758) target = $region100
      $region99: #{imitator_forward.4} parent=11 // pred_region
        _
      $region100: #{imitator_forward.4} parent=11 // pred_fallthru
        _
      // Predicated region
      $region101: #{imitator_forward.4} parent=11 // pred_check
        %p761 = pneg %p633
      $region102: #{imitator_forward.4} parent=11 // pred_check_branch
        %763 = sbr.rel (%p761) target = $region104
      $region103: #{imitator_forward.4} parent=11 // pred_region
        _
      $region104: #{imitator_forward.4} parent=11 // pred_fallthru
        _
      // Predicated region
      $region105: #{imitator_forward.4} parent=11 // pred_check
        %p764 = pneg %p654
      $region106: #{imitator_forward.4} parent=11 // pred_check_branch
        %766 = sbr.rel (%p764) target = $region108
      $region107: #{imitator_forward.4} parent=11 // pred_region
        _
      $region108: #{imitator_forward.4} parent=11 // pred_fallthru
        _
    $region12: #{imitator_forward.4} parent=5 // pred_fallthru
      _
    %p767 = scmp.lt.s32.totalorder %s34, 16
    // Predicated region
    $region109: #{imitator_forward.4} parent=5 // pred_check
      %p768 = pneg %p767
    $region110: #{imitator_forward.4} parent=5 // pred_check_branch
      %770 = sbr.rel (%p768) target = $region112
    $region111: #{imitator_forward.4} parent=5 // pred_region
      // Predicated region
      $region113: #{imitator_forward.4} parent=111 // pred_check
        %p771 = pneg %p66
      $region114: #{imitator_forward.4} parent=111 // pred_check_branch
        %773 = sbr.rel (%p771) target = $region116
      $region115: #{imitator_forward.4} parent=111 // pred_region
        %p774 = scmp.lt.s32.totalorder %s41, 1
        %s775 = scalar_select %p774, %s41, 1
        %s776 = scalar_lea.vmem %s0, %s775
      $region116: #{imitator_forward.4} parent=111 // pred_fallthru
        _
      // Predicated region
      $region117: #{imitator_forward.4} parent=111 // pred_check
        %p777 = pneg %p92
      $region118: #{imitator_forward.4} parent=111 // pred_check_branch
        %779 = sbr.rel (%p777) target = $region120
      $region119: #{imitator_forward.4} parent=111 // pred_region
        %p780 = scmp.lt.s32.totalorder %s41, 1
        %s781 = scalar_select %p780, %s41, 1
        %s782 = scalar_lea.vmem %s1, %s781
      $region120: #{imitator_forward.4} parent=111 // pred_fallthru
        _
      // Predicated region
      $region121: #{imitator_forward.4} parent=111 // pred_check
        %p783 = pneg %p118
      $region122: #{imitator_forward.4} parent=111 // pred_check_branch
        %785 = sbr.rel (%p783) target = $region124
      $region123: #{imitator_forward.4} parent=111 // pred_region
        %p786 = scmp.lt.s32.totalorder %s41, 1
        %s787 = scalar_select %p786, %s41, 1
        %s788 = smul.addr %s787, 4
        %s789 = smul.addr %s788, 4
        %s790 = scalar_lea.vmem %s2, %s789
      $region124: #{imitator_forward.4} parent=111 // pred_fallthru
        _
      // Predicated region
      $region125: #{imitator_forward.4} parent=111 // pred_check
        %p791 = pneg %p144
      $region126: #{imitator_forward.4} parent=111 // pred_check_branch
        %793 = sbr.rel (%p791) target = $region128
      $region127: #{imitator_forward.4} parent=111 // pred_region
        %p794 = scmp.lt.s32.totalorder %s41, 1
        %s795 = scalar_select %p794, %s41, 1
        %s796 = smul.addr %s795, 4
        %s797 = smul.addr %s796, 4
        %s798 = scalar_lea.vmem %s3, %s797
      $region128: #{imitator_forward.4} parent=111 // pred_fallthru
        _
    $region112: #{imitator_forward.4} parent=5 // pred_fallthru
      _
    %p799 = scmp.le.s32.totalorder 1, %s34
    %p800 = scmp.lt.s32.totalorder %s34, 17
    %p801 = pnand %p799, %p800
    %p802 = pneg %p801
    // Predicated region
    $region129: #{imitator_forward.4} parent=5 // pred_check
      _
    $region130: #{imitator_forward.4} parent=5 // pred_check_branch
      %804 = sbr.rel (%p801) target = $region132
    $region131: #{imitator_forward.4} parent=5 // pred_region
      %s805 = ssub.s32 %s34, 1
      %p806 = scmp.lt.s32.totalorder %s43, 1
      %s807 = scalar_select %p806, %s43, 1
      %s808 = scalar_lea.vmem %s0, %s807
      %p809 = pneg %p72
      %p810 = pneg %p69
      %p811 = scmp.lt.s32.totalorder %s43, 1
      %s812 = scalar_select %p811, %s43, 1
      %s813 = scalar_lea.vmem %s1, %s812
      %p814 = pneg %p98
      %p815 = pneg %p95
      %p816 = scmp.lt.s32.totalorder %s43, 1
      %s817 = scalar_select %p816, %s43, 1
      %s818 = smul.addr %s817, 4
      %s819 = smul.addr %s818, 4
      %s820 = scalar_lea.vmem %s2, %s819
      %p821 = pneg %p124
      %p822 = pneg %p121
      %p823 = scmp.lt.s32.totalorder %s43, 1
      %s824 = scalar_select %p823, %s43, 1
      %s825 = smul.addr %s824, 4
      %s826 = smul.addr %s825, 4
      %s827 = scalar_lea.vmem %s3, %s826
      %p828 = pneg %p150
      %p829 = pneg %p147
      %p830 = pneg %p171
      %p831 = pneg %p168
      %p832 = pneg %p192
      %p833 = pneg %p189
      %p834 = pneg %p213
      %p835 = pneg %p210
      %p836 = pneg %p234
      %p837 = pneg %p231
      %p838 = pneg %p255
      %p839 = pneg %p252
      %p840 = pneg %p276
      %p841 = pneg %p273
      %p842 = pneg %p297
      %p843 = pneg %p294
      %p844 = pneg %p318
      %p845 = pneg %p315
      %p846 = pneg %p339
      %p847 = pneg %p336
      %p848 = pneg %p360
      %p849 = pneg %p357
      %p850 = pneg %p381
      %p851 = pneg %p378
      %p852 = pneg %p402
      %p853 = pneg %p399
      %p854 = pneg %p423
      %p855 = pneg %p420
      %p856 = pneg %p444
      %p857 = pneg %p441
      %p858 = pneg %p465
      %p859 = pneg %p462
      %p860 = pneg %p486
      %p861 = pneg %p483
      %p862 = pneg %p507
      %p863 = pneg %p504
      %p864 = pneg %p528
      %p865 = pneg %p525
      %p866 = pneg %p549
      %p867 = pneg %p546
      %p868 = pneg %p570
      %p869 = pneg %p567
      %p870 = pneg %p591
      %p871 = pneg %p588
      %p872 = pneg %p612
      %p873 = pneg %p609
      %p874 = pneg %p633
      %p875 = pneg %p630
      %p876 = pneg %p654
      %p877 = pneg %p651
      %p878 = pneg %p680
      %p879 = pneg %p677
      %p880 = scmp.lt.s32.totalorder %s43, 1
      %s881 = scalar_select %p880, %s43, 1
      %s882 = smul.addr %s881, 8
      %s883 = scalar_lea.vmem %s28, %s882
      %p884 = scmp.lt.s32.totalorder %s43, 1
      %s885 = scalar_select %p884, %s43, 1
      %s886 = scalar_lea.vmem %s0, %s885
      %p887 = scmp.lt.s32.totalorder %s43, 1
      %s888 = scalar_select %p887, %s43, 1
      %s889 = scalar_lea.vmem %s1, %s888
      %p890 = scmp.lt.s32.totalorder %s43, 1
      %s891 = scalar_select %p890, %s43, 1
      %s892 = smul.addr %s891, 4
      %s893 = smul.addr %s892, 4
      %s894 = scalar_lea.vmem %s2, %s893
      %p895 = scmp.lt.s32.totalorder %s43, 1
      %s896 = scalar_select %p895, %s43, 1
      %s897 = smul.addr %s896, 4
      %s898 = smul.addr %s897, 4
      %s899 = scalar_lea.vmem %s3, %s898
      %p900 = scmp.lt.s32.totalorder %s43, 1
      %s901 = scalar_select %p900, %s43, 1
      %s902 = smul.addr %s901, 8
      %s903 = scalar_lea.vmem %s28, %s902
      %p905 = scmp.eq.s32.totalorder %s44, 0
      // Predicated region
      $region133: #{imitator_forward.4} parent=131 // pred_check
        %p906 = pneg %p905
      $region134: #{imitator_forward.4} parent=131 // pred_check_branch
        %908 = sbr.rel (%p906) target = $region136
      $region135: #{imitator_forward.4} parent=131 // pred_region
        %vm909 = vcmask 523264
        %910 = vst.msk [vmem:[#allocation2] sm:$0xff] %vm909, 0.0
      $region136: #{imitator_forward.4} parent=131 // pred_fallthru
        _
      %v911 = vld [vmem:[#allocation2] sm:$0xff]
      %v912 = vld [vmem:[%s886] sm:$0x1]
      %v914 = vperm.slane %v912, 0
      %v916 = vadd.f32 %v911, %v914
      // Predicated region
      $region137: #{imitator_forward.4} parent=131 // pred_check
        %p917 = pneg %p905
      $region138: #{imitator_forward.4} parent=131 // pred_check_branch
        %919 = sbr.rel (%p917) target = $region140
      $region139: #{imitator_forward.4} parent=131 // pred_region
        %v920 = vld [vmem:[%s889] sm:$0x1]
        %vm921 = vcmask 516096
        %922 = vst.msk [vmem:[#allocation2] sm:$0x1] %vm921, %v920
      $region140: #{imitator_forward.4} parent=131 // pred_fallthru
        _
      %v923 = vpack.c.bf16 %v916, %v916
      %v924 = vld [vmem:[%s6] sm:$0xf]
      %v925 = vld [vmem:[%s6 + $0x4] sm:$0xf]
      %v926 = vld [vmem:[%s6 + $0x8] sm:$0xf]
      %v927 = vld [vmem:[%s6 + $0xc] sm:$0xf]
      %v928 = vld [vmem:[%s6 + $0x10] sm:$0xf]
      %v929 = vld [vmem:[%s6 + $0x14] sm:$0xf]
      %v930 = vld [vmem:[%s6 + $0x18] sm:$0xf]
      %v931 = vld [vmem:[%s6 + $0x1c] sm:$0xf]
      %v932 = vld [vmem:[%s6 + $0x20] sm:$0xf]
      %v933 = vld [vmem:[%s6 + $0x24] sm:$0xf]
      %v934 = vld [vmem:[%s6 + $0x28] sm:$0xf]
      %v935 = vld [vmem:[%s6 + $0x2c] sm:$0xf]
      %v936 = vld [vmem:[%s6 + $0x30] sm:$0xf]
      %v937 = vld [vmem:[%s6 + $0x34] sm:$0xf]
      %v938 = vld [vmem:[%s6 + $0x38] sm:$0xf]
      %v939 = vld [vmem:[%s6 + $0x3c] sm:$0xf]
      %v940 = vld [vmem:[%s6 + $0x40] sm:$0xf]
      %v941 = vld [vmem:[%s6 + $0x44] sm:$0xf]
      %v942 = vld [vmem:[%s6 + $0x48] sm:$0xf]
      %v943 = vld [vmem:[%s6 + $0x4c] sm:$0xf]
      %v944 = vld [vmem:[%s6 + $0x50] sm:$0xf]
      %v945 = vld [vmem:[%s6 + $0x54] sm:$0xf]
      %v946 = vld [vmem:[%s6 + $0x58] sm:$0xf]
      %v947 = vld [vmem:[%s6 + $0x5c] sm:$0xf]
      %v948 = vld [vmem:[%s6 + $0x60] sm:$0xf]
      %v949 = vld [vmem:[%s6 + $0x64] sm:$0xf]
      %v950 = vld [vmem:[%s6 + $0x68] sm:$0xf]
      %v951 = vld [vmem:[%s6 + $0x6c] sm:$0xf]
      %v952 = vld [vmem:[%s6 + $0x70] sm:$0xf]
      %v953 = vld [vmem:[%s6 + $0x74] sm:$0xf]
      %v954 = vld [vmem:[%s6 + $0x78] sm:$0xf]
      %v955 = vld [vmem:[%s6 + $0x7c] sm:$0xf]
      %v956 = vld [vmem:[%s9] sm:$0x1]
      %v957 = vld [vmem:[%s9 + $0x1] sm:$0x1]
      %v958 = vld [vmem:[%s9 + $0x2] sm:$0x1]
      %v959 = vld [vmem:[%s9 + $0x3] sm:$0x1]
      %v964 = vperm.slane %v956, 0
      %v965 = vperm.slane %v957, 0
      %v966 = vperm.slane %v958, 0
      %v967 = vperm.slane %v959, 0
      %v980 = vunpack.c.l.b16 %v924
      %v981 = vunpack.c.l.b16 %v925
      %v982 = vunpack.c.l.b16 %v926
      %v983 = vunpack.c.l.b16 %v927
      %v984 = vunpack.c.l.b16 %v928
      %v985 = vunpack.c.l.b16 %v929
      %v986 = vunpack.c.l.b16 %v930
      %v987 = vunpack.c.l.b16 %v931
      %v988 = vpack.c.b16 %v981, %v980
      %v989 = vpack.c.b16 %v983, %v982
      %v990 = vpack.c.b16 %v985, %v984
      %v991 = vpack.c.b16 %v987, %v986
      %vm996 = vcmask 523264
      %v998 = vsel %vm996, %v923, 0
      %1000 = vmatpush.bf16.msra.mxu0 0
      %1001 = vmatpush.bf16.msra.mxu0 0
      %1002 = vmatpush.bf16.msra.mxu0 0
      %1003 = vmatpush.bf16.msra.mxu0 0
      %1004 = vmatpush.bf16.msra.mxu0 %v991
      %1005 = vmatpush.bf16.msra.mxu0 %v990
      %1006 = vmatpush.bf16.msra.mxu0 %v989
      %1007 = vmatpush.bf16.msra.mxu0 %v988
      %1008 = vmatmul.bf16.gmra.mxu0 %v998
      %v1009 = vpop.f32.mrf.mxu0
      %v1010 = vadd.f32 %v964, %v1009
      %v1011 = vpop.f32.mrf.mxu0
      %1012 = vdwg.mxu0
      %v1021 = vunpack.c.l.b16 %v932
      %v1022 = vunpack.c.l.b16 %v933
      %v1023 = vunpack.c.l.b16 %v934
      %v1024 = vunpack.c.l.b16 %v935
      %v1025 = vunpack.c.l.b16 %v936
      %v1026 = vunpack.c.l.b16 %v937
      %v1027 = vunpack.c.l.b16 %v938
      %v1028 = vunpack.c.l.b16 %v939
      %v1029 = vpack.c.b16 %v1022, %v1021
      %v1030 = vpack.c.b16 %v1024, %v1023
      %v1031 = vpack.c.b16 %v1026, %v1025
      %v1032 = vpack.c.b16 %v1028, %v1027
      %1037 = vmatpush.bf16.msra.mxu0 0
      %1038 = vmatpush.bf16.msra.mxu0 0
      %1039 = vmatpush.bf16.msra.mxu0 0
      %1040 = vmatpush.bf16.msra.mxu0 0
      %1041 = vmatpush.bf16.msra.mxu0 %v1032
      %1042 = vmatpush.bf16.msra.mxu0 %v1031
      %1043 = vmatpush.bf16.msra.mxu0 %v1030
      %1044 = vmatpush.bf16.msra.mxu0 %v1029
      %1045 = vmatmul.bf16.gmra.mxu0 %v998
      %v1046 = vpop.f32.mrf.mxu0
      %v1047 = vadd.f32 %v965, %v1046
      %v1048 = vpop.f32.mrf.mxu0
      %1049 = vdwg.mxu0
      %v1058 = vunpack.c.l.b16 %v940
      %v1059 = vunpack.c.l.b16 %v941
      %v1060 = vunpack.c.l.b16 %v942
      %v1061 = vunpack.c.l.b16 %v943
      %v1062 = vunpack.c.l.b16 %v944
      %v1063 = vunpack.c.l.b16 %v945
      %v1064 = vunpack.c.l.b16 %v946
      %v1065 = vunpack.c.l.b16 %v947
      %v1066 = vpack.c.b16 %v1059, %v1058
      %v1067 = vpack.c.b16 %v1061, %v1060
      %v1068 = vpack.c.b16 %v1063, %v1062
      %v1069 = vpack.c.b16 %v1065, %v1064
      %1074 = vmatpush.bf16.msra.mxu0 0
      %1075 = vmatpush.bf16.msra.mxu0 0
      %1076 = vmatpush.bf16.msra.mxu0 0
      %1077 = vmatpush.bf16.msra.mxu0 0
      %1078 = vmatpush.bf16.msra.mxu0 %v1069
      %1079 = vmatpush.bf16.msra.mxu0 %v1068
      %1080 = vmatpush.bf16.msra.mxu0 %v1067
      %1081 = vmatpush.bf16.msra.mxu0 %v1066
      %1082 = vmatmul.bf16.gmra.mxu0 %v998
      %v1083 = vpop.f32.mrf.mxu0
      %v1084 = vadd.f32 %v966, %v1083
      %v1085 = vpop.f32.mrf.mxu0
      %1086 = vdwg.mxu0
      %v1095 = vunpack.c.l.b16 %v948
      %v1096 = vunpack.c.l.b16 %v949
      %v1097 = vunpack.c.l.b16 %v950
      %v1098 = vunpack.c.l.b16 %v951
      %v1099 = vunpack.c.l.b16 %v952
      %v1100 = vunpack.c.l.b16 %v953
      %v1101 = vunpack.c.l.b16 %v954
      %v1102 = vunpack.c.l.b16 %v955
      %v1103 = vpack.c.b16 %v1096, %v1095
      %v1104 = vpack.c.b16 %v1098, %v1097
      %v1105 = vpack.c.b16 %v1100, %v1099
      %v1106 = vpack.c.b16 %v1102, %v1101
      %1111 = vmatpush.bf16.msra.mxu0 0
      %1112 = vmatpush.bf16.msra.mxu0 0
      %1113 = vmatpush.bf16.msra.mxu0 0
      %1114 = vmatpush.bf16.msra.mxu0 0
      %1115 = vmatpush.bf16.msra.mxu0 %v1106
      %1116 = vmatpush.bf16.msra.mxu0 %v1105
      %1117 = vmatpush.bf16.msra.mxu0 %v1104
      %1118 = vmatpush.bf16.msra.mxu0 %v1103
      %1119 = vmatmul.bf16.gmra.mxu0 %v998
      %v1120 = vpop.f32.mrf.mxu0
      %v1121 = vadd.f32 %v967, %v1120
      %v1122 = vpop.f32.mrf.mxu0
      %1123 = vdwg.mxu0
      %v1124 = vld [vmem:[%s7] sm:$0xf]
      %v1125 = vld [vmem:[%s7 + $0x4] sm:$0xf]
      %v1126 = vld [vmem:[%s7 + $0x8] sm:$0xf]
      %v1127 = vld [vmem:[%s7 + $0xc] sm:$0xf]
      %v1128 = vld [vmem:[%s7 + $0x10] sm:$0xf]
      %v1129 = vld [vmem:[%s7 + $0x14] sm:$0xf]
      %v1130 = vld [vmem:[%s7 + $0x18] sm:$0xf]
      %v1131 = vld [vmem:[%s7 + $0x1c] sm:$0xf]
      %v1132 = vld [vmem:[%s7 + $0x20] sm:$0xf]
      %v1133 = vld [vmem:[%s7 + $0x24] sm:$0xf]
      %v1134 = vld [vmem:[%s7 + $0x28] sm:$0xf]
      %v1135 = vld [vmem:[%s7 + $0x2c] sm:$0xf]
      %v1136 = vld [vmem:[%s7 + $0x30] sm:$0xf]
      %v1137 = vld [vmem:[%s7 + $0x34] sm:$0xf]
      %v1138 = vld [vmem:[%s7 + $0x38] sm:$0xf]
      %v1139 = vld [vmem:[%s7 + $0x3c] sm:$0xf]
      %v1140 = vld [vmem:[%s7 + $0x40] sm:$0xf]
      %v1141 = vld [vmem:[%s7 + $0x44] sm:$0xf]
      %v1142 = vld [vmem:[%s7 + $0x48] sm:$0xf]
      %v1143 = vld [vmem:[%s7 + $0x4c] sm:$0xf]
      %v1144 = vld [vmem:[%s7 + $0x50] sm:$0xf]
      %v1145 = vld [vmem:[%s7 + $0x54] sm:$0xf]
      %v1146 = vld [vmem:[%s7 + $0x58] sm:$0xf]
      %v1147 = vld [vmem:[%s7 + $0x5c] sm:$0xf]
      %v1148 = vld [vmem:[%s7 + $0x60] sm:$0xf]
      %v1149 = vld [vmem:[%s7 + $0x64] sm:$0xf]
      %v1150 = vld [vmem:[%s7 + $0x68] sm:$0xf]
      %v1151 = vld [vmem:[%s7 + $0x6c] sm:$0xf]
      %v1152 = vld [vmem:[%s7 + $0x70] sm:$0xf]
      %v1153 = vld [vmem:[%s7 + $0x74] sm:$0xf]
      %v1154 = vld [vmem:[%s7 + $0x78] sm:$0xf]
      %v1155 = vld [vmem:[%s7 + $0x7c] sm:$0xf]
      %v1156 = vld [vmem:[%s10] sm:$0x1]
      %v1157 = vld [vmem:[%s10 + $0x1] sm:$0x1]
      %v1158 = vld [vmem:[%s10 + $0x2] sm:$0x1]
      %v1159 = vld [vmem:[%s10 + $0x3] sm:$0x1]
      %v1164 = vperm.slane %v1156, 0
      %v1165 = vperm.slane %v1157, 0
      %v1166 = vperm.slane %v1158, 0
      %v1167 = vperm.slane %v1159, 0
      %v1180 = vunpack.c.l.b16 %v1124
      %v1181 = vunpack.c.l.b16 %v1125
      %v1182 = vunpack.c.l.b16 %v1126
      %v1183 = vunpack.c.l.b16 %v1127
      %v1184 = vunpack.c.l.b16 %v1128
      %v1185 = vunpack.c.l.b16 %v1129
      %v1186 = vunpack.c.l.b16 %v1130
      %v1187 = vunpack.c.l.b16 %v1131
      %v1188 = vpack.c.b16 %v1181, %v1180
      %v1189 = vpack.c.b16 %v1183, %v1182
      %v1190 = vpack.c.b16 %v1185, %v1184
      %v1191 = vpack.c.b16 %v1187, %v1186
      %1196 = vmatpush.bf16.msra.mxu0 0
      %1197 = vmatpush.bf16.msra.mxu0 0
      %1198 = vmatpush.bf16.msra.mxu0 0
      %1199 = vmatpush.bf16.msra.mxu0 0
      %1200 = vmatpush.bf16.msra.mxu0 %v1191
      %1201 = vmatpush.bf16.msra.mxu0 %v1190
      %1202 = vmatpush.bf16.msra.mxu0 %v1189
      %1203 = vmatpush.bf16.msra.mxu0 %v1188
      %1204 = vmatmul.bf16.gmra.mxu0 %v998
      %v1205 = vpop.f32.mrf.mxu0
      %v1206 = vadd.f32 %v1164, %v1205
      %v1207 = vpop.f32.mrf.mxu0
      %1208 = vdwg.mxu0
      %v1217 = vunpack.c.l.b16 %v1132
      %v1218 = vunpack.c.l.b16 %v1133
      %v1219 = vunpack.c.l.b16 %v1134
      %v1220 = vunpack.c.l.b16 %v1135
      %v1221 = vunpack.c.l.b16 %v1136
      %v1222 = vunpack.c.l.b16 %v1137
      %v1223 = vunpack.c.l.b16 %v1138
      %v1224 = vunpack.c.l.b16 %v1139
      %v1225 = vpack.c.b16 %v1218, %v1217
      %v1226 = vpack.c.b16 %v1220, %v1219
      %v1227 = vpack.c.b16 %v1222, %v1221
      %v1228 = vpack.c.b16 %v1224, %v1223
      %1233 = vmatpush.bf16.msra.mxu0 0
      %1234 = vmatpush.bf16.msra.mxu0 0
      %1235 = vmatpush.bf16.msra.mxu0 0
      %1236 = vmatpush.bf16.msra.mxu0 0
      %1237 = vmatpush.bf16.msra.mxu0 %v1228
      %1238 = vmatpush.bf16.msra.mxu0 %v1227
      %1239 = vmatpush.bf16.msra.mxu0 %v1226
      %1240 = vmatpush.bf16.msra.mxu0 %v1225
      %1241 = vmatmul.bf16.gmra.mxu0 %v998
      %v1242 = vpop.f32.mrf.mxu0
      %v1243 = vadd.f32 %v1165, %v1242
      %v1244 = vpop.f32.mrf.mxu0
      %1245 = vdwg.mxu0
      %v1254 = vunpack.c.l.b16 %v1140
      %v1255 = vunpack.c.l.b16 %v1141
      %v1256 = vunpack.c.l.b16 %v1142
      %v1257 = vunpack.c.l.b16 %v1143
      %v1258 = vunpack.c.l.b16 %v1144
      %v1259 = vunpack.c.l.b16 %v1145
      %v1260 = vunpack.c.l.b16 %v1146
      %v1261 = vunpack.c.l.b16 %v1147
      %v1262 = vpack.c.b16 %v1255, %v1254
      %v1263 = vpack.c.b16 %v1257, %v1256
      %v1264 = vpack.c.b16 %v1259, %v1258
      %v1265 = vpack.c.b16 %v1261, %v1260
      %1270 = vmatpush.bf16.msra.mxu0 0
      %1271 = vmatpush.bf16.msra.mxu0 0
      %1272 = vmatpush.bf16.msra.mxu0 0
      %1273 = vmatpush.bf16.msra.mxu0 0
      %1274 = vmatpush.bf16.msra.mxu0 %v1265
      %1275 = vmatpush.bf16.msra.mxu0 %v1264
      %1276 = vmatpush.bf16.msra.mxu0 %v1263
      %1277 = vmatpush.bf16.msra.mxu0 %v1262
      %1278 = vmatmul.bf16.gmra.mxu0 %v998
      %v1279 = vpop.f32.mrf.mxu0
      %v1280 = vadd.f32 %v1166, %v1279
      %v1281 = vpop.f32.mrf.mxu0
      %1282 = vdwg.mxu0
      %v1291 = vunpack.c.l.b16 %v1148
      %v1292 = vunpack.c.l.b16 %v1149
      %v1293 = vunpack.c.l.b16 %v1150
      %v1294 = vunpack.c.l.b16 %v1151
      %v1295 = vunpack.c.l.b16 %v1152
      %v1296 = vunpack.c.l.b16 %v1153
      %v1297 = vunpack.c.l.b16 %v1154
      %v1298 = vunpack.c.l.b16 %v1155
      %v1299 = vpack.c.b16 %v1292, %v1291
      %v1300 = vpack.c.b16 %v1294, %v1293
      %v1301 = vpack.c.b16 %v1296, %v1295
      %v1302 = vpack.c.b16 %v1298, %v1297
      %1307 = vmatpush.bf16.msra.mxu0 0
      %1308 = vmatpush.bf16.msra.mxu0 0
      %1309 = vmatpush.bf16.msra.mxu0 0
      %1310 = vmatpush.bf16.msra.mxu0 0
      %1311 = vmatpush.bf16.msra.mxu0 %v1302
      %1312 = vmatpush.bf16.msra.mxu0 %v1301
      %1313 = vmatpush.bf16.msra.mxu0 %v1300
      %1314 = vmatpush.bf16.msra.mxu0 %v1299
      %1315 = vmatmul.bf16.gmra.mxu0 %v998
      %v1316 = vpop.f32.mrf.mxu0
      %v1317 = vadd.f32 %v1167, %v1316
      %v1318 = vpop.f32.mrf.mxu0
      %1319 = vdwg.mxu0
      %v1320 = vld [vmem:[%s8] sm:$0xf]
      %v1321 = vld [vmem:[%s8 + $0x4] sm:$0xf]
      %v1322 = vld [vmem:[%s8 + $0x8] sm:$0xf]
      %v1323 = vld [vmem:[%s8 + $0xc] sm:$0xf]
      %v1324 = vld [vmem:[%s8 + $0x10] sm:$0xf]
      %v1325 = vld [vmem:[%s8 + $0x14] sm:$0xf]
      %v1326 = vld [vmem:[%s8 + $0x18] sm:$0xf]
      %v1327 = vld [vmem:[%s8 + $0x1c] sm:$0xf]
      %v1328 = vld [vmem:[%s8 + $0x20] sm:$0xf]
      %v1329 = vld [vmem:[%s8 + $0x24] sm:$0xf]
      %v1330 = vld [vmem:[%s8 + $0x28] sm:$0xf]
      %v1331 = vld [vmem:[%s8 + $0x2c] sm:$0xf]
      %v1332 = vld [vmem:[%s8 + $0x30] sm:$0xf]
      %v1333 = vld [vmem:[%s8 + $0x34] sm:$0xf]
      %v1334 = vld [vmem:[%s8 + $0x38] sm:$0xf]
      %v1335 = vld [vmem:[%s8 + $0x3c] sm:$0xf]
      %v1336 = vld [vmem:[%s8 + $0x40] sm:$0xf]
      %v1337 = vld [vmem:[%s8 + $0x44] sm:$0xf]
      %v1338 = vld [vmem:[%s8 + $0x48] sm:$0xf]
      %v1339 = vld [vmem:[%s8 + $0x4c] sm:$0xf]
      %v1340 = vld [vmem:[%s8 + $0x50] sm:$0xf]
      %v1341 = vld [vmem:[%s8 + $0x54] sm:$0xf]
      %v1342 = vld [vmem:[%s8 + $0x58] sm:$0xf]
      %v1343 = vld [vmem:[%s8 + $0x5c] sm:$0xf]
      %v1344 = vld [vmem:[%s8 + $0x60] sm:$0xf]
      %v1345 = vld [vmem:[%s8 + $0x64] sm:$0xf]
      %v1346 = vld [vmem:[%s8 + $0x68] sm:$0xf]
      %v1347 = vld [vmem:[%s8 + $0x6c] sm:$0xf]
      %v1348 = vld [vmem:[%s8 + $0x70] sm:$0xf]
      %v1349 = vld [vmem:[%s8 + $0x74] sm:$0xf]
      %v1350 = vld [vmem:[%s8 + $0x78] sm:$0xf]
      %v1351 = vld [vmem:[%s8 + $0x7c] sm:$0xf]
      %v1352 = vld [vmem:[%s11] sm:$0x1]
      %v1353 = vld [vmem:[%s11 + $0x1] sm:$0x1]
      %v1354 = vld [vmem:[%s11 + $0x2] sm:$0x1]
      %v1355 = vld [vmem:[%s11 + $0x3] sm:$0x1]
      %v1360 = vperm.slane %v1352, 0
      %v1361 = vperm.slane %v1353, 0
      %v1362 = vperm.slane %v1354, 0
      %v1363 = vperm.slane %v1355, 0
      %v1376 = vunpack.c.l.b16 %v1320
      %v1377 = vunpack.c.l.b16 %v1321
      %v1378 = vunpack.c.l.b16 %v1322
      %v1379 = vunpack.c.l.b16 %v1323
      %v1380 = vunpack.c.l.b16 %v1324
      %v1381 = vunpack.c.l.b16 %v1325
      %v1382 = vunpack.c.l.b16 %v1326
      %v1383 = vunpack.c.l.b16 %v1327
      %v1384 = vpack.c.b16 %v1377, %v1376
      %v1385 = vpack.c.b16 %v1379, %v1378
      %v1386 = vpack.c.b16 %v1381, %v1380
      %v1387 = vpack.c.b16 %v1383, %v1382
      %1392 = vmatpush.bf16.msra.mxu0 0
      %1393 = vmatpush.bf16.msra.mxu0 0
      %1394 = vmatpush.bf16.msra.mxu0 0
      %1395 = vmatpush.bf16.msra.mxu0 0
      %1396 = vmatpush.bf16.msra.mxu0 %v1387
      %1397 = vmatpush.bf16.msra.mxu0 %v1386
      %1398 = vmatpush.bf16.msra.mxu0 %v1385
      %1399 = vmatpush.bf16.msra.mxu0 %v1384
      %1400 = vmatmul.bf16.gmra.mxu0 %v998
      %v1401 = vpop.f32.mrf.mxu0
      %v1402 = vadd.f32 %v1360, %v1401
      %v1403 = vpop.f32.mrf.mxu0
      %1404 = vdwg.mxu0
      %v1413 = vunpack.c.l.b16 %v1328
      %v1414 = vunpack.c.l.b16 %v1329
      %v1415 = vunpack.c.l.b16 %v1330
      %v1416 = vunpack.c.l.b16 %v1331
      %v1417 = vunpack.c.l.b16 %v1332
      %v1418 = vunpack.c.l.b16 %v1333
      %v1419 = vunpack.c.l.b16 %v1334
      %v1420 = vunpack.c.l.b16 %v1335
      %v1421 = vpack.c.b16 %v1414, %v1413
      %v1422 = vpack.c.b16 %v1416, %v1415
      %v1423 = vpack.c.b16 %v1418, %v1417
      %v1424 = vpack.c.b16 %v1420, %v1419
      %1429 = vmatpush.bf16.msra.mxu0 0
      %1430 = vmatpush.bf16.msra.mxu0 0
      %1431 = vmatpush.bf16.msra.mxu0 0
      %1432 = vmatpush.bf16.msra.mxu0 0
      %1433 = vmatpush.bf16.msra.mxu0 %v1424
      %1434 = vmatpush.bf16.msra.mxu0 %v1423
      %1435 = vmatpush.bf16.msra.mxu0 %v1422
      %1436 = vmatpush.bf16.msra.mxu0 %v1421
      %1437 = vmatmul.bf16.gmra.mxu0 %v998
      %v1438 = vpop.f32.mrf.mxu0
      %v1439 = vadd.f32 %v1361, %v1438
      %v1440 = vpop.f32.mrf.mxu0
      %1441 = vdwg.mxu0
      %v1450 = vunpack.c.l.b16 %v1336
      %v1451 = vunpack.c.l.b16 %v1337
      %v1452 = vunpack.c.l.b16 %v1338
      %v1453 = vunpack.c.l.b16 %v1339
      %v1454 = vunpack.c.l.b16 %v1340
      %v1455 = vunpack.c.l.b16 %v1341
      %v1456 = vunpack.c.l.b16 %v1342
      %v1457 = vunpack.c.l.b16 %v1343
      %v1458 = vpack.c.b16 %v1451, %v1450
      %v1459 = vpack.c.b16 %v1453, %v1452
      %v1460 = vpack.c.b16 %v1455, %v1454
      %v1461 = vpack.c.b16 %v1457, %v1456
      %1466 = vmatpush.bf16.msra.mxu0 0
      %1467 = vmatpush.bf16.msra.mxu0 0
      %1468 = vmatpush.bf16.msra.mxu0 0
      %1469 = vmatpush.bf16.msra.mxu0 0
      %1470 = vmatpush.bf16.msra.mxu0 %v1461
      %1471 = vmatpush.bf16.msra.mxu0 %v1460
      %1472 = vmatpush.bf16.msra.mxu0 %v1459
      %1473 = vmatpush.bf16.msra.mxu0 %v1458
      %1474 = vmatmul.bf16.gmra.mxu0 %v998
      %v1475 = vpop.f32.mrf.mxu0
      %v1476 = vadd.f32 %v1362, %v1475
      %v1477 = vpop.f32.mrf.mxu0
      %1478 = vdwg.mxu0
      %v1487 = vunpack.c.l.b16 %v1344
      %v1488 = vunpack.c.l.b16 %v1345
      %v1489 = vunpack.c.l.b16 %v1346
      %v1490 = vunpack.c.l.b16 %v1347
      %v1491 = vunpack.c.l.b16 %v1348
      %v1492 = vunpack.c.l.b16 %v1349
      %v1493 = vunpack.c.l.b16 %v1350
      %v1494 = vunpack.c.l.b16 %v1351
      %v1495 = vpack.c.b16 %v1488, %v1487
      %v1496 = vpack.c.b16 %v1490, %v1489
      %v1497 = vpack.c.b16 %v1492, %v1491
      %v1498 = vpack.c.b16 %v1494, %v1493
      %1503 = vmatpush.bf16.msra.mxu0 0
      %1504 = vmatpush.bf16.msra.mxu0 0
      %1505 = vmatpush.bf16.msra.mxu0 0
      %1506 = vmatpush.bf16.msra.mxu0 0
      %1507 = vmatpush.bf16.msra.mxu0 %v1498
      %1508 = vmatpush.bf16.msra.mxu0 %v1497
      %1509 = vmatpush.bf16.msra.mxu0 %v1496
      %1510 = vmatpush.bf16.msra.mxu0 %v1495
      %1511 = vmatmul.bf16.gmra.mxu0 %v998
      %v1512 = vpop.f32.mrf.mxu0
      %v1513 = vadd.f32 %v1363, %v1512
      %v1514 = vpop.f32.mrf.mxu0
      %1515 = vdwg.mxu0
      %v1516 = vld [vmem:[%s4] sm:$0xff]
      %v1517 = vpack.c.bf16 %v1010, %v1010
      %v1518 = vpack.c.bf16 %v1047, %v1047
      %v1519 = vpack.c.bf16 %v1084, %v1084
      %v1520 = vpack.c.bf16 %v1121, %v1121
      %v1521 = vpack.c.bf16 %v1206, %v1206
      %v1522 = vpack.c.bf16 %v1243, %v1243
      %v1523 = vpack.c.bf16 %v1280, %v1280
      %v1524 = vpack.c.bf16 %v1317, %v1317
      %vm1525 = vcmask 130048
      %v1527 = vsel %vm1525, %v1517, 0
      %v1530 = vsel %vm1525, %v1521, 0
      %1532 = vmatpush.bf16.xpose.msra.mxu0 0
      %1533 = vmatpush.bf16.xpose.msra.mxu0 0
      %1534 = vmatpush.bf16.xpose.msra.mxu0 0
      %1535 = vmatpush.bf16.xpose.msra.mxu0 0
      %1536 = vmatpush.bf16.xpose.msra.mxu0 0
      %1537 = vmatpush.bf16.xpose.msra.mxu0 0
      %1538 = vmatpush.bf16.xpose.msra.mxu0 0
      %1539 = vmatpush.bf16.xpose.msra.mxu0 %v1530
      %1540 = vmatmul.bf16.gmra.mxu0 %v1527
      %v1541 = vpop.f32.mrf.mxu0
      %v1542 = vadd.f32 0.0, %v1541
      %v1543 = vpop.f32.mrf.mxu0
      %1544 = vdwg.mxu0
      %v1546 = vsel %vm1525, %v1518, 0
      %v1549 = vsel %vm1525, %v1522, 0
      %1551 = vmatpush.bf16.xpose.msra.mxu0 0
      %1552 = vmatpush.bf16.xpose.msra.mxu0 0
      %1553 = vmatpush.bf16.xpose.msra.mxu0 0
      %1554 = vmatpush.bf16.xpose.msra.mxu0 0
      %1555 = vmatpush.bf16.xpose.msra.mxu0 0
      %1556 = vmatpush.bf16.xpose.msra.mxu0 0
      %1557 = vmatpush.bf16.xpose.msra.mxu0 0
      %1558 = vmatpush.bf16.xpose.msra.mxu0 %v1549
      %1559 = vmatmul.bf16.gmra.mxu0 %v1546
      %v1560 = vpop.f32.mrf.mxu0
      %v1561 = vadd.f32 0.0, %v1560
      %v1562 = vpop.f32.mrf.mxu0
      %1563 = vdwg.mxu0
      %v1565 = vsel %vm1525, %v1519, 0
      %v1568 = vsel %vm1525, %v1523, 0
      %1570 = vmatpush.bf16.xpose.msra.mxu0 0
      %1571 = vmatpush.bf16.xpose.msra.mxu0 0
      %1572 = vmatpush.bf16.xpose.msra.mxu0 0
      %1573 = vmatpush.bf16.xpose.msra.mxu0 0
      %1574 = vmatpush.bf16.xpose.msra.mxu0 0
      %1575 = vmatpush.bf16.xpose.msra.mxu0 0
      %1576 = vmatpush.bf16.xpose.msra.mxu0 0
      %1577 = vmatpush.bf16.xpose.msra.mxu0 %v1568
      %1578 = vmatmul.bf16.gmra.mxu0 %v1565
      %v1579 = vpop.f32.mrf.mxu0
      %v1580 = vadd.f32 0.0, %v1579
      %v1581 = vpop.f32.mrf.mxu0
      %1582 = vdwg.mxu0
      %v1584 = vsel %vm1525, %v1520, 0
      %v1587 = vsel %vm1525, %v1524, 0
      %1589 = vmatpush.bf16.xpose.msra.mxu0 0
      %1590 = vmatpush.bf16.xpose.msra.mxu0 0
      %1591 = vmatpush.bf16.xpose.msra.mxu0 0
      %1592 = vmatpush.bf16.xpose.msra.mxu0 0
      %1593 = vmatpush.bf16.xpose.msra.mxu0 0
      %1594 = vmatpush.bf16.xpose.msra.mxu0 0
      %1595 = vmatpush.bf16.xpose.msra.mxu0 0
      %1596 = vmatpush.bf16.xpose.msra.mxu0 %v1587
      %1597 = vmatmul.bf16.gmra.mxu0 %v1584
      %v1598 = vpop.f32.mrf.mxu0
      %v1599 = vadd.f32 0.0, %v1598
      %v1600 = vpop.f32.mrf.mxu0
      %1601 = vdwg.mxu0
      %v1602 = vmul.f32 %v1542, 0.25
      %v1603 = vmul.f32 %v1561, 0.25
      %v1604 = vmul.f32 %v1580, 0.25
      %v1605 = vmul.f32 %v1599, 0.25
      %v1606 = vadd.f32 %v1602, %v1516
      %v1607 = vadd.f32 %v1603, %v1516
      %v1608 = vadd.f32 %v1604, %v1516
      %v1609 = vadd.f32 %v1605, %v1516
      %vm1610 = vcmask 64512
      %v1611 = vsel %vm1610, %v1606, -inf
      %1612 = vmax.xlane.f32.xlu0 %v1611
      %v1613 = vpop.xlane.xlu0 %1612
      %v1614 = vsel %vm1610, %v1607, -inf
      %1615 = vmax.xlane.f32.xlu0 %v1614
      %v1616 = vpop.xlane.xlu0 %1615
      %v1617 = vsel %vm1610, %v1608, -inf
      %1618 = vmax.xlane.f32.xlu0 %v1617
      %v1619 = vpop.xlane.xlu0 %1618
      %v1620 = vsel %vm1610, %v1609, -inf
      %1621 = vmax.xlane.f32.xlu0 %v1620
      %v1622 = vpop.xlane.xlu0 %1621
      %v1623 = vsub.f32 %v1606, %v1613
      %v1624 = vsub.f32 %v1607, %v1616
      %v1625 = vsub.f32 %v1608, %v1619
      %v1626 = vsub.f32 %v1609, %v1622
      %v1627 = vmul.f32 %v1623, 1.442695
      %v1628 = vpow.pop %v1627
      %v1629 = vmul.f32 %v1624, 1.442695
      %v1630 = vpow.pop %v1629
      %v1631 = vmul.f32 %v1625, 1.442695
      %v1632 = vpow.pop %v1631
      %v1633 = vmul.f32 %v1626, 1.442695
      %v1634 = vpow.pop %v1633
      %v1635 = vsel %vm1610, %v1628, 0.0
      %1636 = vadd.xlane.f32.xlu0 %v1635
      %v1637 = vpop.xlane.xlu0 %1636
      %v1638 = vsel %vm1610, %v1630, 0.0
      %1639 = vadd.xlane.f32.xlu0 %v1638
      %v1640 = vpop.xlane.xlu0 %1639
      %v1641 = vsel %vm1610, %v1632, 0.0
      %1642 = vadd.xlane.f32.xlu0 %v1641
      %v1643 = vpop.xlane.xlu0 %1642
      %v1644 = vsel %vm1610, %v1634, 0.0
      %1645 = vadd.xlane.f32.xlu0 %v1644
      %v1646 = vpop.xlane.xlu0 %1645
      %v1647 = vrcp.pop %v1637
      %v1648 = vrcp.pop %v1640
      %v1649 = vrcp.pop %v1643
      %v1650 = vrcp.pop %v1646
      %v1651 = vmul.f32 %v1628, %v1647
      %v1652 = vmul.f32 %v1630, %v1648
      %v1653 = vmul.f32 %v1632, %v1649
      %v1654 = vmul.f32 %v1634, %v1650
      %v1655 = vpack.c.bf16 %v1651, %v1651
      %v1656 = vpack.c.bf16 %v1652, %v1652
      %v1657 = vpack.c.bf16 %v1653, %v1653
      %v1658 = vpack.c.bf16 %v1654, %v1654
      %v1659 = vpack.c.bf16 %v1402, %v1402
      %v1660 = vpack.c.bf16 %v1439, %v1439
      %v1661 = vpack.c.bf16 %v1476, %v1476
      %v1662 = vpack.c.bf16 %v1513, %v1513
      %v1664 = vsel %vm1610, %v1655, 0
      %vm1666 = vcmask 1043456
      %v1668 = vsel %vm1666, %v1659, 0
      %1670 = vmatpush.bf16.msra.mxu0 0
      %1671 = vmatpush.bf16.msra.mxu0 0
      %1672 = vmatpush.bf16.msra.mxu0 0
      %1673 = vmatpush.bf16.msra.mxu0 0
      %1674 = vmatpush.bf16.msra.mxu0 0
      %1675 = vmatpush.bf16.msra.mxu0 0
      %1676 = vmatpush.bf16.msra.mxu0 0
      %1677 = vmatpush.bf16.msra.mxu0 %v1668
      %1678 = vmatmul.bf16.gmra.mxu0 %v1664
      %v1679 = vpop.f32.mrf.mxu0
      %v1680 = vadd.f32 0.0, %v1679
      %v1681 = vpop.f32.mrf.mxu0
      %1682 = vdwg.mxu0
      %v1684 = vsel %vm1610, %v1656, 0
      %v1687 = vsel %vm1666, %v1660, 0
      %1689 = vmatpush.bf16.msra.mxu0 0
      %1690 = vmatpush.bf16.msra.mxu0 0
      %1691 = vmatpush.bf16.msra.mxu0 0
      %1692 = vmatpush.bf16.msra.mxu0 0
      %1693 = vmatpush.bf16.msra.mxu0 0
      %1694 = vmatpush.bf16.msra.mxu0 0
      %1695 = vmatpush.bf16.msra.mxu0 0
      %1696 = vmatpush.bf16.msra.mxu0 %v1687
      %1697 = vmatmul.bf16.gmra.mxu0 %v1684
      %v1698 = vpop.f32.mrf.mxu0
      %v1699 = vadd.f32 0.0, %v1698
      %v1700 = vpop.f32.mrf.mxu0
      %1701 = vdwg.mxu0
      %v1703 = vsel %vm1610, %v1657, 0
      %v1706 = vsel %vm1666, %v1661, 0
      %1708 = vmatpush.bf16.msra.mxu0 0
      %1709 = vmatpush.bf16.msra.mxu0 0
      %1710 = vmatpush.bf16.msra.mxu0 0
      %1711 = vmatpush.bf16.msra.mxu0 0
      %1712 = vmatpush.bf16.msra.mxu0 0
      %1713 = vmatpush.bf16.msra.mxu0 0
      %1714 = vmatpush.bf16.msra.mxu0 0
      %1715 = vmatpush.bf16.msra.mxu0 %v1706
      %1716 = vmatmul.bf16.gmra.mxu0 %v1703
      %v1717 = vpop.f32.mrf.mxu0
      %v1718 = vadd.f32 0.0, %v1717
      %v1719 = vpop.f32.mrf.mxu0
      %1720 = vdwg.mxu0
      %v1722 = vsel %vm1610, %v1658, 0
      %v1725 = vsel %vm1666, %v1662, 0
      %1727 = vmatpush.bf16.msra.mxu0 0
      %1728 = vmatpush.bf16.msra.mxu0 0
      %1729 = vmatpush.bf16.msra.mxu0 0
      %1730 = vmatpush.bf16.msra.mxu0 0
      %1731 = vmatpush.bf16.msra.mxu0 0
      %1732 = vmatpush.bf16.msra.mxu0 0
      %1733 = vmatpush.bf16.msra.mxu0 0
      %1734 = vmatpush.bf16.msra.mxu0 %v1725
      %1735 = vmatmul.bf16.gmra.mxu0 %v1722
      %v1736 = vpop.f32.mrf.mxu0
      %v1737 = vadd.f32 0.0, %v1736
      %v1738 = vpop.f32.mrf.mxu0
      %1739 = vdwg.mxu0
      %v1740 = vld [vmem:[%s12] sm:$0xf]
      %v1741 = vld [vmem:[%s12 + $0x4] sm:$0xf]
      %v1742 = vld [vmem:[%s12 + $0x8] sm:$0xf]
      %v1743 = vld [vmem:[%s12 + $0xc] sm:$0xf]
      %v1744 = vld [vmem:[%s12 + $0x10] sm:$0xf]
      %v1745 = vld [vmem:[%s12 + $0x14] sm:$0xf]
      %v1746 = vld [vmem:[%s12 + $0x18] sm:$0xf]
      %v1747 = vld [vmem:[%s12 + $0x1c] sm:$0xf]
      %v1748 = vld [vmem:[%s13] sm:$0x1]
      %v1749 = vpack.c.bf16 %v1680, %v1680
      %v1750 = vpack.c.bf16 %v1699, %v1699
      %v1751 = vpack.c.bf16 %v1718, %v1718
      %v1752 = vpack.c.bf16 %v1737, %v1737
      %v1755 = vunpack.c.l.b16 %v1740
      %v1756 = vunpack.c.l.b16 %v1741
      %v1757 = vpack.c.b16 %v1756, %v1755
      %v1760 = vsel %vm1525, %v1749, 0
      %1762 = vmatpush.bf16.msra.mxu0 0
      %1763 = vmatpush.bf16.msra.mxu0 0
      %1764 = vmatpush.bf16.msra.mxu0 0
      %1765 = vmatpush.bf16.msra.mxu0 0
      %1766 = vmatpush.bf16.msra.mxu0 0
      %1767 = vmatpush.bf16.msra.mxu0 0
      %1768 = vmatpush.bf16.msra.mxu0 0
      %1769 = vmatpush.bf16.msra.mxu0 %v1757
      %1770 = vmatmul.bf16.gmra.mxu0 %v1760
      %v1771 = vpop.f32.mrf.mxu0
      %v1772 = vadd.f32 0.0, %v1771
      %v1773 = vpop.f32.mrf.mxu0
      %1774 = vdwg.mxu0
      %v1777 = vunpack.c.l.b16 %v1742
      %v1778 = vunpack.c.l.b16 %v1743
      %v1779 = vpack.c.b16 %v1778, %v1777
      %v1782 = vsel %vm1525, %v1750, 0
      %1784 = vmatpush.bf16.msra.mxu0 0
      %1785 = vmatpush.bf16.msra.mxu0 0
      %1786 = vmatpush.bf16.msra.mxu0 0
      %1787 = vmatpush.bf16.msra.mxu0 0
      %1788 = vmatpush.bf16.msra.mxu0 0
      %1789 = vmatpush.bf16.msra.mxu0 0
      %1790 = vmatpush.bf16.msra.mxu0 0
      %1791 = vmatpush.bf16.msra.mxu0 %v1779
      %1792 = vmatmul.bf16.gmra.mxu0 %v1782
      %v1793 = vpop.f32.mrf.mxu0
      %v1794 = vadd.f32 0.0, %v1793
      %v1795 = vpop.f32.mrf.mxu0
      %1796 = vdwg.mxu0
      %v1799 = vunpack.c.l.b16 %v1744
      %v1800 = vunpack.c.l.b16 %v1745
      %v1801 = vpack.c.b16 %v1800, %v1799
      %v1804 = vsel %vm1525, %v1751, 0
      %1806 = vmatpush.bf16.msra.mxu0 0
      %1807 = vmatpush.bf16.msra.mxu0 0
      %1808 = vmatpush.bf16.msra.mxu0 0
      %1809 = vmatpush.bf16.msra.mxu0 0
      %1810 = vmatpush.bf16.msra.mxu0 0
      %1811 = vmatpush.bf16.msra.mxu0 0
      %1812 = vmatpush.bf16.msra.mxu0 0
      %1813 = vmatpush.bf16.msra.mxu0 %v1801
      %1814 = vmatmul.bf16.gmra.mxu0 %v1804
      %v1815 = vpop.f32.mrf.mxu0
      %v1816 = vadd.f32 0.0, %v1815
      %v1817 = vpop.f32.mrf.mxu0
      %1818 = vdwg.mxu0
      %v1821 = vunpack.c.l.b16 %v1746
      %v1822 = vunpack.c.l.b16 %v1747
      %v1823 = vpack.c.b16 %v1822, %v1821
      %v1826 = vsel %vm1525, %v1752, 0
      %1828 = vmatpush.bf16.msra.mxu0 0
      %1829 = vmatpush.bf16.msra.mxu0 0
      %1830 = vmatpush.bf16.msra.mxu0 0
      %1831 = vmatpush.bf16.msra.mxu0 0
      %1832 = vmatpush.bf16.msra.mxu0 0
      %1833 = vmatpush.bf16.msra.mxu0 0
      %1834 = vmatpush.bf16.msra.mxu0 0
      %1835 = vmatpush.bf16.msra.mxu0 %v1823
      %1836 = vmatmul.bf16.gmra.mxu0 %v1826
      %v1837 = vpop.f32.mrf.mxu0
      %v1838 = vadd.f32 0.0, %v1837
      %v1839 = vpop.f32.mrf.mxu0
      %1840 = vdwg.mxu0
      %v1841 = vsel %vm996, %v1772, 0.0
      %v1842 = vsel %vm996, %v1794, 0.0
      %v1843 = vadd.f32 %v1841, %v1842
      %v1844 = vsel %vm996, %v1816, 0.0
      %v1845 = vadd.f32 %v1843, %v1844
      %v1846 = vsel %vm996, %v1838, 0.0
      %v1847 = vadd.f32 %v1845, %v1846
      %v1849 = vperm.slane %v1748, 0
      %v1851 = vadd.f32 %v1847, %v1849
      %v1852 = vadd.f32 %v916, %v1851
      %v1853 = vld [vmem:[%s22] sm:$0x1]
      %v1854 = vld [vmem:[%s23] sm:$0x1]
      %v1855 = vsel %vm996, %v1852, 0.0
      %1856 = vadd.xlane.f32.xlu0 %v1855
      %v1857 = vpop.xlane.xlu0 %1856
      %v1858 = vrcp.pop 64.0
      %v1859 = vmul.f32 64.0, %v1858
      %v1860 = vsub.f32 1.0, %v1859
      %v1861 = vmul.f32 %v1858, %v1860
      %v1862 = vadd.f32 %v1858, %v1861
      %vm1863 = vweird.f32 %v1858
      %v1864 = vsel %vm1863, %v1858, %v1862
      %v1865 = vmul.f32 %v1857, %v1864
      %v1866 = vsub.f32 %v1852, %v1865
      %v1867 = vmul.f32 %v1866, %v1866
      %v1868 = vsel %vm996, %v1867, 0.0
      %1869 = vadd.xlane.f32.xlu0 %v1868
      %v1870 = vpop.xlane.xlu0 %1869
      %v1871 = vmul.f32 %v1870, %v1864
      %v1872 = vadd.f32 %v1871, 1e-05
      %v1873 = vrsqrt.pop %v1872
      %v1874 = vmul.f32 %v1873, %v1872
      %v1875 = vmul.f32 %v1874, %v1873
      %v1876 = vmul.f32 0.5, %v1875
      %v1877 = vsub.f32 1.5, %v1876
      %v1878 = vmul.f32 %v1873, %v1877
      %vm1879 = vweird.f32 %v1872
      %vm1880 = vweird.f32 %v1873
      %vm1881 = vmor %vm1879, %vm1880
      %v1882 = vsel %vm1881, %v1873, %v1878
      %v1883 = vmul.f32 %v1866, %v1882
      %v1885 = vperm.slane %v1853, 0
      %v1887 = vmul.f32 %v1883, %v1885
      %v1889 = vperm.slane %v1854, 0
      %v1891 = vadd.f32 %v1887, %v1889
      %v1892 = vpack.c.bf16 %v1891, %v1891
      %v1893 = vld [vmem:[%s14] sm:$0xf]
      %v1894 = vld [vmem:[%s14 + $0x4] sm:$0xf]
      %v1895 = vld [vmem:[%s14 + $0x8] sm:$0xf]
      %v1896 = vld [vmem:[%s14 + $0xc] sm:$0xf]
      %v1897 = vld [vmem:[%s14 + $0x10] sm:$0xf]
      %v1898 = vld [vmem:[%s14 + $0x14] sm:$0xf]
      %v1899 = vld [vmem:[%s14 + $0x18] sm:$0xf]
      %v1900 = vld [vmem:[%s14 + $0x1c] sm:$0xf]
      %v1901 = vld [vmem:[%s14 + $0x20] sm:$0xf]
      %v1902 = vld [vmem:[%s14 + $0x24] sm:$0xf]
      %v1903 = vld [vmem:[%s14 + $0x28] sm:$0xf]
      %v1904 = vld [vmem:[%s14 + $0x2c] sm:$0xf]
      %v1905 = vld [vmem:[%s14 + $0x30] sm:$0xf]
      %v1906 = vld [vmem:[%s14 + $0x34] sm:$0xf]
      %v1907 = vld [vmem:[%s14 + $0x38] sm:$0xf]
      %v1908 = vld [vmem:[%s14 + $0x3c] sm:$0xf]
      %v1909 = vld [vmem:[%s14 + $0x40] sm:$0xf]
      %v1910 = vld [vmem:[%s14 + $0x44] sm:$0xf]
      %v1911 = vld [vmem:[%s14 + $0x48] sm:$0xf]
      %v1912 = vld [vmem:[%s14 + $0x4c] sm:$0xf]
      %v1913 = vld [vmem:[%s14 + $0x50] sm:$0xf]
      %v1914 = vld [vmem:[%s14 + $0x54] sm:$0xf]
      %v1915 = vld [vmem:[%s14 + $0x58] sm:$0xf]
      %v1916 = vld [vmem:[%s14 + $0x5c] sm:$0xf]
      %v1917 = vld [vmem:[%s14 + $0x60] sm:$0xf]
      %v1918 = vld [vmem:[%s14 + $0x64] sm:$0xf]
      %v1919 = vld [vmem:[%s14 + $0x68] sm:$0xf]
      %v1920 = vld [vmem:[%s14 + $0x6c] sm:$0xf]
      %v1921 = vld [vmem:[%s14 + $0x70] sm:$0xf]
      %v1922 = vld [vmem:[%s14 + $0x74] sm:$0xf]
      %v1923 = vld [vmem:[%s14 + $0x78] sm:$0xf]
      %v1924 = vld [vmem:[%s14 + $0x7c] sm:$0xf]
      %v1925 = vld [vmem:[%s15] sm:$0x1]
      %v1926 = vld [vmem:[%s15 + $0x1] sm:$0x1]
      %v1927 = vld [vmem:[%s15 + $0x2] sm:$0x1]
      %v1928 = vld [vmem:[%s15 + $0x3] sm:$0x1]
      %v1933 = vperm.slane %v1925, 0
      %v1934 = vperm.slane %v1926, 0
      %v1935 = vperm.slane %v1927, 0
      %v1936 = vperm.slane %v1928, 0
      %v1949 = vunpack.c.l.b16 %v1893
      %v1950 = vunpack.c.l.b16 %v1894
      %v1951 = vunpack.c.l.b16 %v1895
      %v1952 = vunpack.c.l.b16 %v1896
      %v1953 = vunpack.c.l.b16 %v1897
      %v1954 = vunpack.c.l.b16 %v1898
      %v1955 = vunpack.c.l.b16 %v1899
      %v1956 = vunpack.c.l.b16 %v1900
      %v1957 = vpack.c.b16 %v1950, %v1949
      %v1958 = vpack.c.b16 %v1952, %v1951
      %v1959 = vpack.c.b16 %v1954, %v1953
      %v1960 = vpack.c.b16 %v1956, %v1955
      %v1966 = vsel %vm996, %v1892, 0
      %1968 = vmatpush.bf16.msra.mxu0 0
      %1969 = vmatpush.bf16.msra.mxu0 0
      %1970 = vmatpush.bf16.msra.mxu0 0
      %1971 = vmatpush.bf16.msra.mxu0 0
      %1972 = vmatpush.bf16.msra.mxu0 %v1960
      %1973 = vmatpush.bf16.msra.mxu0 %v1959
      %1974 = vmatpush.bf16.msra.mxu0 %v1958
      %1975 = vmatpush.bf16.msra.mxu0 %v1957
      %1976 = vmatmul.bf16.gmra.mxu0 %v1966
      %v1977 = vpop.f32.mrf.mxu0
      %v1978 = vadd.f32 %v1933, %v1977
      %v1979 = vpop.f32.mrf.mxu0
      %1980 = vdwg.mxu0
      %v1989 = vunpack.c.l.b16 %v1901
      %v1990 = vunpack.c.l.b16 %v1902
      %v1991 = vunpack.c.l.b16 %v1903
      %v1992 = vunpack.c.l.b16 %v1904
      %v1993 = vunpack.c.l.b16 %v1905
      %v1994 = vunpack.c.l.b16 %v1906
      %v1995 = vunpack.c.l.b16 %v1907
      %v1996 = vunpack.c.l.b16 %v1908
      %v1997 = vpack.c.b16 %v1990, %v1989
      %v1998 = vpack.c.b16 %v1992, %v1991
      %v1999 = vpack.c.b16 %v1994, %v1993
      %v2000 = vpack.c.b16 %v1996, %v1995
      %2005 = vmatpush.bf16.msra.mxu0 0
      %2006 = vmatpush.bf16.msra.mxu0 0
      %2007 = vmatpush.bf16.msra.mxu0 0
      %2008 = vmatpush.bf16.msra.mxu0 0
      %2009 = vmatpush.bf16.msra.mxu0 %v2000
      %2010 = vmatpush.bf16.msra.mxu0 %v1999
      %2011 = vmatpush.bf16.msra.mxu0 %v1998
      %2012 = vmatpush.bf16.msra.mxu0 %v1997
      %2013 = vmatmul.bf16.gmra.mxu0 %v1966
      %v2014 = vpop.f32.mrf.mxu0
      %v2015 = vadd.f32 %v1934, %v2014
      %v2016 = vpop.f32.mrf.mxu0
      %2017 = vdwg.mxu0
      %v2026 = vunpack.c.l.b16 %v1909
      %v2027 = vunpack.c.l.b16 %v1910
      %v2028 = vunpack.c.l.b16 %v1911
      %v2029 = vunpack.c.l.b16 %v1912
      %v2030 = vunpack.c.l.b16 %v1913
      %v2031 = vunpack.c.l.b16 %v1914
      %v2032 = vunpack.c.l.b16 %v1915
      %v2033 = vunpack.c.l.b16 %v1916
      %v2034 = vpack.c.b16 %v2027, %v2026
      %v2035 = vpack.c.b16 %v2029, %v2028
      %v2036 = vpack.c.b16 %v2031, %v2030
      %v2037 = vpack.c.b16 %v2033, %v2032
      %2042 = vmatpush.bf16.msra.mxu0 0
      %2043 = vmatpush.bf16.msra.mxu0 0
      %2044 = vmatpush.bf16.msra.mxu0 0
      %2045 = vmatpush.bf16.msra.mxu0 0
      %2046 = vmatpush.bf16.msra.mxu0 %v2037
      %2047 = vmatpush.bf16.msra.mxu0 %v2036
      %2048 = vmatpush.bf16.msra.mxu0 %v2035
      %2049 = vmatpush.bf16.msra.mxu0 %v2034
      %2050 = vmatmul.bf16.gmra.mxu0 %v1966
      %v2051 = vpop.f32.mrf.mxu0
      %v2052 = vadd.f32 %v1935, %v2051
      %v2053 = vpop.f32.mrf.mxu0
      %2054 = vdwg.mxu0
      %v2063 = vunpack.c.l.b16 %v1917
      %v2064 = vunpack.c.l.b16 %v1918
      %v2065 = vunpack.c.l.b16 %v1919
      %v2066 = vunpack.c.l.b16 %v1920
      %v2067 = vunpack.c.l.b16 %v1921
      %v2068 = vunpack.c.l.b16 %v1922
      %v2069 = vunpack.c.l.b16 %v1923
      %v2070 = vunpack.c.l.b16 %v1924
      %v2071 = vpack.c.b16 %v2064, %v2063
      %v2072 = vpack.c.b16 %v2066, %v2065
      %v2073 = vpack.c.b16 %v2068, %v2067
      %v2074 = vpack.c.b16 %v2070, %v2069
      %2079 = vmatpush.bf16.msra.mxu0 0
      %2080 = vmatpush.bf16.msra.mxu0 0
      %2081 = vmatpush.bf16.msra.mxu0 0
      %2082 = vmatpush.bf16.msra.mxu0 0
      %2083 = vmatpush.bf16.msra.mxu0 %v2074
      %2084 = vmatpush.bf16.msra.mxu0 %v2073
      %2085 = vmatpush.bf16.msra.mxu0 %v2072
      %2086 = vmatpush.bf16.msra.mxu0 %v2071
      %2087 = vmatmul.bf16.gmra.mxu0 %v1966
      %v2088 = vpop.f32.mrf.mxu0
      %v2089 = vadd.f32 %v1936, %v2088
      %v2090 = vpop.f32.mrf.mxu0
      %2091 = vdwg.mxu0
      %v2092 = vld [vmem:[%s894] sm:$0xf]
      %v2093 = vld [vmem:[%s894 + $0x4] sm:$0xf]
      %v2094 = vld [vmem:[%s894 + $0x8] sm:$0xf]
      %v2095 = vld [vmem:[%s894 + $0xc] sm:$0xf]
      %v2096 = vld [vmem:[%s899] sm:$0xf]
      %v2097 = vld [vmem:[%s899 + $0x4] sm:$0xf]
      %v2098 = vld [vmem:[%s899 + $0x8] sm:$0xf]
      %v2099 = vld [vmem:[%s899 + $0xc] sm:$0xf]
      %v2100 = vld [vmem:[%s5] sm:$0xff]
      %v2101 = vpack.c.bf16 %v1978, %v1978
      %v2102 = vpack.c.bf16 %v2015, %v2015
      %v2103 = vpack.c.bf16 %v2052, %v2052
      %v2104 = vpack.c.bf16 %v2089, %v2089
      %v2106 = vsel %vm1525, %v2101, 0
      %v2109 = vsel %vm1525, %v2092, 0
      %2111 = vmatpush.bf16.xpose.msra.mxu0 0
      %2112 = vmatpush.bf16.xpose.msra.mxu0 0
      %2113 = vmatpush.bf16.xpose.msra.mxu0 0
      %2114 = vmatpush.bf16.xpose.msra.mxu0 0
      %2115 = vmatpush.bf16.xpose.msra.mxu0 0
      %2116 = vmatpush.bf16.xpose.msra.mxu0 0
      %2117 = vmatpush.bf16.xpose.msra.mxu0 0
      %2118 = vmatpush.bf16.xpose.msra.mxu0 %v2109
      %2119 = vmatmul.bf16.gmra.mxu0 %v2106
      %v2120 = vpop.f32.mrf.mxu0
      %v2121 = vadd.f32 0.0, %v2120
      %v2122 = vpop.f32.mrf.mxu0
      %2123 = vdwg.mxu0
      %v2125 = vsel %vm1525, %v2102, 0
      %v2128 = vsel %vm1525, %v2093, 0
      %2130 = vmatpush.bf16.xpose.msra.mxu0 0
      %2131 = vmatpush.bf16.xpose.msra.mxu0 0
      %2132 = vmatpush.bf16.xpose.msra.mxu0 0
      %2133 = vmatpush.bf16.xpose.msra.mxu0 0
      %2134 = vmatpush.bf16.xpose.msra.mxu0 0
      %2135 = vmatpush.bf16.xpose.msra.mxu0 0
      %2136 = vmatpush.bf16.xpose.msra.mxu0 0
      %2137 = vmatpush.bf16.xpose.msra.mxu0 %v2128
      %2138 = vmatmul.bf16.gmra.mxu0 %v2125
      %v2139 = vpop.f32.mrf.mxu0
      %v2140 = vadd.f32 0.0, %v2139
      %v2141 = vpop.f32.mrf.mxu0
      %2142 = vdwg.mxu0
      %v2144 = vsel %vm1525, %v2103, 0
      %v2147 = vsel %vm1525, %v2094, 0
      %2149 = vmatpush.bf16.xpose.msra.mxu0 0
      %2150 = vmatpush.bf16.xpose.msra.mxu0 0
      %2151 = vmatpush.bf16.xpose.msra.mxu0 0
      %2152 = vmatpush.bf16.xpose.msra.mxu0 0
      %2153 = vmatpush.bf16.xpose.msra.mxu0 0
      %2154 = vmatpush.bf16.xpose.msra.mxu0 0
      %2155 = vmatpush.bf16.xpose.msra.mxu0 0
      %2156 = vmatpush.bf16.xpose.msra.mxu0 %v2147
      %2157 = vmatmul.bf16.gmra.mxu0 %v2144
      %v2158 = vpop.f32.mrf.mxu0
      %v2159 = vadd.f32 0.0, %v2158
      %v2160 = vpop.f32.mrf.mxu0
      %2161 = vdwg.mxu0
      %v2163 = vsel %vm1525, %v2104, 0
      %v2166 = vsel %vm1525, %v2095, 0
      %2168 = vmatpush.bf16.xpose.msra.mxu0 0
      %2169 = vmatpush.bf16.xpose.msra.mxu0 0
      %2170 = vmatpush.bf16.xpose.msra.mxu0 0
      %2171 = vmatpush.bf16.xpose.msra.mxu0 0
      %2172 = vmatpush.bf16.xpose.msra.mxu0 0
      %2173 = vmatpush.bf16.xpose.msra.mxu0 0
      %2174 = vmatpush.bf16.xpose.msra.mxu0 0
      %2175 = vmatpush.bf16.xpose.msra.mxu0 %v2166
      %2176 = vmatmul.bf16.gmra.mxu0 %v2163
      %v2177 = vpop.f32.mrf.mxu0
      %v2178 = vadd.f32 0.0, %v2177
      %v2179 = vpop.f32.mrf.mxu0
      %2180 = vdwg.mxu0
      %v2181 = vmul.f32 %v2121, 0.25
      %v2182 = vmul.f32 %v2140, 0.25
      %v2183 = vmul.f32 %v2159, 0.25
      %v2184 = vmul.f32 %v2178, 0.25
      %v2185 = vadd.f32 %v2181, %v2100
      %v2186 = vadd.f32 %v2182, %v2100
      %v2187 = vadd.f32 %v2183, %v2100
      %v2188 = vadd.f32 %v2184, %v2100
      %v2189 = vsel %vm1610, %v2185, -inf
      %2190 = vmax.xlane.f32.xlu0 %v2189
      %v2191 = vpop.xlane.xlu0 %2190
      %v2192 = vsel %vm1610, %v2186, -inf
      %2193 = vmax.xlane.f32.xlu0 %v2192
      %v2194 = vpop.xlane.xlu0 %2193
      %v2195 = vsel %vm1610, %v2187, -inf
      %2196 = vmax.xlane.f32.xlu0 %v2195
      %v2197 = vpop.xlane.xlu0 %2196
      %v2198 = vsel %vm1610, %v2188, -inf
      %2199 = vmax.xlane.f32.xlu0 %v2198
      %v2200 = vpop.xlane.xlu0 %2199
      %v2201 = vsub.f32 %v2185, %v2191
      %v2202 = vsub.f32 %v2186, %v2194
      %v2203 = vsub.f32 %v2187, %v2197
      %v2204 = vsub.f32 %v2188, %v2200
      %v2205 = vmul.f32 %v2201, 1.442695
      %v2206 = vpow.pop %v2205
      %v2207 = vmul.f32 %v2202, 1.442695
      %v2208 = vpow.pop %v2207
      %v2209 = vmul.f32 %v2203, 1.442695
      %v2210 = vpow.pop %v2209
      %v2211 = vmul.f32 %v2204, 1.442695
      %v2212 = vpow.pop %v2211
      %v2213 = vsel %vm1610, %v2206, 0.0
      %2214 = vadd.xlane.f32.xlu0 %v2213
      %v2215 = vpop.xlane.xlu0 %2214
      %v2216 = vsel %vm1610, %v2208, 0.0
      %2217 = vadd.xlane.f32.xlu0 %v2216
      %v2218 = vpop.xlane.xlu0 %2217
      %v2219 = vsel %vm1610, %v2210, 0.0
      %2220 = vadd.xlane.f32.xlu0 %v2219
      %v2221 = vpop.xlane.xlu0 %2220
      %v2222 = vsel %vm1610, %v2212, 0.0
      %2223 = vadd.xlane.f32.xlu0 %v2222
      %v2224 = vpop.xlane.xlu0 %2223
      %v2225 = vrcp.pop %v2215
      %v2226 = vrcp.pop %v2218
      %v2227 = vrcp.pop %v2221
      %v2228 = vrcp.pop %v2224
      %v2229 = vmul.f32 %v2206, %v2225
      %v2230 = vmul.f32 %v2208, %v2226
      %v2231 = vmul.f32 %v2210, %v2227
      %v2232 = vmul.f32 %v2212, %v2228
      %v2233 = vpack.c.bf16 %v2229, %v2229
      %v2234 = vpack.c.bf16 %v2230, %v2230
      %v2235 = vpack.c.bf16 %v2231, %v2231
      %v2236 = vpack.c.bf16 %v2232, %v2232
      %v2238 = vsel %vm1610, %v2233, 0
      %v2241 = vsel %vm1666, %v2096, 0
      %2243 = vmatpush.bf16.msra.mxu0 0
      %2244 = vmatpush.bf16.msra.mxu0 0
      %2245 = vmatpush.bf16.msra.mxu0 0
      %2246 = vmatpush.bf16.msra.mxu0 0
      %2247 = vmatpush.bf16.msra.mxu0 0
      %2248 = vmatpush.bf16.msra.mxu0 0
      %2249 = vmatpush.bf16.msra.mxu0 0
      %2250 = vmatpush.bf16.msra.mxu0 %v2241
      %2251 = vmatmul.bf16.gmra.mxu0 %v2238
      %v2252 = vpop.f32.mrf.mxu0
      %v2253 = vadd.f32 0.0, %v2252
      %v2254 = vpop.f32.mrf.mxu0
      %2255 = vdwg.mxu0
      %v2257 = vsel %vm1610, %v2234, 0
      %v2260 = vsel %vm1666, %v2097, 0
      %2262 = vmatpush.bf16.msra.mxu0 0
      %2263 = vmatpush.bf16.msra.mxu0 0
      %2264 = vmatpush.bf16.msra.mxu0 0
      %2265 = vmatpush.bf16.msra.mxu0 0
      %2266 = vmatpush.bf16.msra.mxu0 0
      %2267 = vmatpush.bf16.msra.mxu0 0
      %2268 = vmatpush.bf16.msra.mxu0 0
      %2269 = vmatpush.bf16.msra.mxu0 %v2260
      %2270 = vmatmul.bf16.gmra.mxu0 %v2257
      %v2271 = vpop.f32.mrf.mxu0
      %v2272 = vadd.f32 0.0, %v2271
      %v2273 = vpop.f32.mrf.mxu0
      %2274 = vdwg.mxu0
      %v2276 = vsel %vm1610, %v2235, 0
      %v2279 = vsel %vm1666, %v2098, 0
      %2281 = vmatpush.bf16.msra.mxu0 0
      %2282 = vmatpush.bf16.msra.mxu0 0
      %2283 = vmatpush.bf16.msra.mxu0 0
      %2284 = vmatpush.bf16.msra.mxu0 0
      %2285 = vmatpush.bf16.msra.mxu0 0
      %2286 = vmatpush.bf16.msra.mxu0 0
      %2287 = vmatpush.bf16.msra.mxu0 0
      %2288 = vmatpush.bf16.msra.mxu0 %v2279
      %2289 = vmatmul.bf16.gmra.mxu0 %v2276
      %v2290 = vpop.f32.mrf.mxu0
      %v2291 = vadd.f32 0.0, %v2290
      %v2292 = vpop.f32.mrf.mxu0
      %2293 = vdwg.mxu0
      %v2295 = vsel %vm1610, %v2236, 0
      %v2298 = vsel %vm1666, %v2099, 0
      %2300 = vmatpush.bf16.msra.mxu0 0
      %2301 = vmatpush.bf16.msra.mxu0 0
      %2302 = vmatpush.bf16.msra.mxu0 0
      %2303 = vmatpush.bf16.msra.mxu0 0
      %2304 = vmatpush.bf16.msra.mxu0 0
      %2305 = vmatpush.bf16.msra.mxu0 0
      %2306 = vmatpush.bf16.msra.mxu0 0
      %2307 = vmatpush.bf16.msra.mxu0 %v2298
      %2308 = vmatmul.bf16.gmra.mxu0 %v2295
      %v2309 = vpop.f32.mrf.mxu0
      %v2310 = vadd.f32 0.0, %v2309
      %v2311 = vpop.f32.mrf.mxu0
      %2312 = vdwg.mxu0
      %v2313 = vld [vmem:[%s16] sm:$0xf]
      %v2314 = vld [vmem:[%s16 + $0x4] sm:$0xf]
      %v2315 = vld [vmem:[%s16 + $0x8] sm:$0xf]
      %v2316 = vld [vmem:[%s16 + $0xc] sm:$0xf]
      %v2317 = vld [vmem:[%s16 + $0x10] sm:$0xf]
      %v2318 = vld [vmem:[%s16 + $0x14] sm:$0xf]
      %v2319 = vld [vmem:[%s16 + $0x18] sm:$0xf]
      %v2320 = vld [vmem:[%s16 + $0x1c] sm:$0xf]
      %v2321 = vld [vmem:[%s17] sm:$0x1]
      %v2322 = vpack.c.bf16 %v2253, %v2253
      %v2323 = vpack.c.bf16 %v2272, %v2272
      %v2324 = vpack.c.bf16 %v2291, %v2291
      %v2325 = vpack.c.bf16 %v2310, %v2310
      %v2328 = vunpack.c.l.b16 %v2313
      %v2329 = vunpack.c.l.b16 %v2314
      %v2330 = vpack.c.b16 %v2329, %v2328
      %v2333 = vsel %vm1525, %v2322, 0
      %2335 = vmatpush.bf16.msra.mxu0 0
      %2336 = vmatpush.bf16.msra.mxu0 0
      %2337 = vmatpush.bf16.msra.mxu0 0
      %2338 = vmatpush.bf16.msra.mxu0 0
      %2339 = vmatpush.bf16.msra.mxu0 0
      %2340 = vmatpush.bf16.msra.mxu0 0
      %2341 = vmatpush.bf16.msra.mxu0 0
      %2342 = vmatpush.bf16.msra.mxu0 %v2330
      %2343 = vmatmul.bf16.gmra.mxu0 %v2333
      %v2344 = vpop.f32.mrf.mxu0
      %v2345 = vadd.f32 0.0, %v2344
      %v2346 = vpop.f32.mrf.mxu0
      %2347 = vdwg.mxu0
      %v2350 = vunpack.c.l.b16 %v2315
      %v2351 = vunpack.c.l.b16 %v2316
      %v2352 = vpack.c.b16 %v2351, %v2350
      %v2355 = vsel %vm1525, %v2323, 0
      %2357 = vmatpush.bf16.msra.mxu0 0
      %2358 = vmatpush.bf16.msra.mxu0 0
      %2359 = vmatpush.bf16.msra.mxu0 0
      %2360 = vmatpush.bf16.msra.mxu0 0
      %2361 = vmatpush.bf16.msra.mxu0 0
      %2362 = vmatpush.bf16.msra.mxu0 0
      %2363 = vmatpush.bf16.msra.mxu0 0
      %2364 = vmatpush.bf16.msra.mxu0 %v2352
      %2365 = vmatmul.bf16.gmra.mxu0 %v2355
      %v2366 = vpop.f32.mrf.mxu0
      %v2367 = vadd.f32 0.0, %v2366
      %v2368 = vpop.f32.mrf.mxu0
      %2369 = vdwg.mxu0
      %v2372 = vunpack.c.l.b16 %v2317
      %v2373 = vunpack.c.l.b16 %v2318
      %v2374 = vpack.c.b16 %v2373, %v2372
      %v2377 = vsel %vm1525, %v2324, 0
      %2379 = vmatpush.bf16.msra.mxu0 0
      %2380 = vmatpush.bf16.msra.mxu0 0
      %2381 = vmatpush.bf16.msra.mxu0 0
      %2382 = vmatpush.bf16.msra.mxu0 0
      %2383 = vmatpush.bf16.msra.mxu0 0
      %2384 = vmatpush.bf16.msra.mxu0 0
      %2385 = vmatpush.bf16.msra.mxu0 0
      %2386 = vmatpush.bf16.msra.mxu0 %v2374
      %2387 = vmatmul.bf16.gmra.mxu0 %v2377
      %v2388 = vpop.f32.mrf.mxu0
      %v2389 = vadd.f32 0.0, %v2388
      %v2390 = vpop.f32.mrf.mxu0
      %2391 = vdwg.mxu0
      %v2394 = vunpack.c.l.b16 %v2319
      %v2395 = vunpack.c.l.b16 %v2320
      %v2396 = vpack.c.b16 %v2395, %v2394
      %v2399 = vsel %vm1525, %v2325, 0
      %2401 = vmatpush.bf16.msra.mxu0 0
      %2402 = vmatpush.bf16.msra.mxu0 0
      %2403 = vmatpush.bf16.msra.mxu0 0
      %2404 = vmatpush.bf16.msra.mxu0 0
      %2405 = vmatpush.bf16.msra.mxu0 0
      %2406 = vmatpush.bf16.msra.mxu0 0
      %2407 = vmatpush.bf16.msra.mxu0 0
      %2408 = vmatpush.bf16.msra.mxu0 %v2396
      %2409 = vmatmul.bf16.gmra.mxu0 %v2399
      %v2410 = vpop.f32.mrf.mxu0
      %v2411 = vadd.f32 0.0, %v2410
      %v2412 = vpop.f32.mrf.mxu0
      %2413 = vdwg.mxu0
      %v2414 = vsel %vm996, %v2345, 0.0
      %v2415 = vsel %vm996, %v2367, 0.0
      %v2416 = vadd.f32 %v2414, %v2415
      %v2417 = vsel %vm996, %v2389, 0.0
      %v2418 = vadd.f32 %v2416, %v2417
      %v2419 = vsel %vm996, %v2411, 0.0
      %v2420 = vadd.f32 %v2418, %v2419
      %v2422 = vperm.slane %v2321, 0
      %v2424 = vadd.f32 %v2420, %v2422
      %v2425 = vadd.f32 %v1891, %v2424
      %v2426 = vld [vmem:[%s24] sm:$0x1]
      %v2427 = vld [vmem:[%s25] sm:$0x1]
      %v2428 = vsel %vm996, %v2425, 0.0
      %2429 = vadd.xlane.f32.xlu0 %v2428
      %v2430 = vpop.xlane.xlu0 %2429
      %v2431 = vmul.f32 %v2430, %v1864
      %v2432 = vsub.f32 %v2425, %v2431
      %v2433 = vmul.f32 %v2432, %v2432
      %v2434 = vsel %vm996, %v2433, 0.0
      %2435 = vadd.xlane.f32.xlu0 %v2434
      %v2436 = vpop.xlane.xlu0 %2435
      %v2437 = vmul.f32 %v2436, %v1864
      %v2438 = vadd.f32 %v2437, 1e-05
      %v2439 = vrsqrt.pop %v2438
      %v2440 = vmul.f32 %v2439, %v2438
      %v2441 = vmul.f32 %v2440, %v2439
      %v2442 = vmul.f32 0.5, %v2441
      %v2443 = vsub.f32 1.5, %v2442
      %v2444 = vmul.f32 %v2439, %v2443
      %vm2445 = vweird.f32 %v2438
      %vm2446 = vweird.f32 %v2439
      %vm2447 = vmor %vm2445, %vm2446
      %v2448 = vsel %vm2447, %v2439, %v2444
      %v2449 = vmul.f32 %v2432, %v2448
      %v2451 = vperm.slane %v2426, 0
      %v2453 = vmul.f32 %v2449, %v2451
      %v2455 = vperm.slane %v2427, 0
      %v2457 = vadd.f32 %v2453, %v2455
      %v2458 = vpack.c.bf16 %v2457, %v2457
      %v2459 = vld [vmem:[%s18] sm:$0xf]
      %v2460 = vld [vmem:[%s18 + $0x4] sm:$0xf]
      %v2461 = vld [vmem:[%s18 + $0x8] sm:$0xf]
      %v2462 = vld [vmem:[%s18 + $0xc] sm:$0xf]
      %v2463 = vld [vmem:[%s18 + $0x10] sm:$0xf]
      %v2464 = vld [vmem:[%s18 + $0x14] sm:$0xf]
      %v2465 = vld [vmem:[%s18 + $0x18] sm:$0xf]
      %v2466 = vld [vmem:[%s18 + $0x1c] sm:$0xf]
      %v2467 = vld [vmem:[%s19] sm:$0x1]
      %v2469 = vperm.slane %v2467, 0
      %v2479 = vunpack.c.l.b16 %v2459
      %v2480 = vunpack.c.l.b16 %v2460
      %v2481 = vunpack.c.l.b16 %v2461
      %v2482 = vunpack.c.l.b16 %v2462
      %v2483 = vunpack.c.l.b16 %v2463
      %v2484 = vunpack.c.l.b16 %v2464
      %v2485 = vunpack.c.l.b16 %v2465
      %v2486 = vunpack.c.l.b16 %v2466
      %v2487 = vpack.c.b16 %v2480, %v2479
      %v2488 = vpack.c.b16 %v2482, %v2481
      %v2489 = vpack.c.b16 %v2484, %v2483
      %v2490 = vpack.c.b16 %v2486, %v2485
      %v2496 = vsel %vm996, %v2458, 0
      %2498 = vmatpush.bf16.msra.mxu0 0
      %2499 = vmatpush.bf16.msra.mxu0 0
      %2500 = vmatpush.bf16.msra.mxu0 0
      %2501 = vmatpush.bf16.msra.mxu0 0
      %2502 = vmatpush.bf16.msra.mxu0 %v2490
      %2503 = vmatpush.bf16.msra.mxu0 %v2489
      %2504 = vmatpush.bf16.msra.mxu0 %v2488
      %2505 = vmatpush.bf16.msra.mxu0 %v2487
      %2506 = vmatmul.bf16.gmra.mxu0 %v2496
      %v2507 = vpop.f32.mrf.mxu0
      %v2508 = vadd.f32 %v2469, %v2507
      %v2509 = vpop.f32.mrf.mxu0
      %2510 = vdwg.mxu0
      %v2511 = vmax.f32 %v2508, 0.0
      %v2512 = vpack.c.bf16 %v2511, %v2511
      %v2513 = vld [vmem:[%s20] sm:$0xf]
      %v2514 = vld [vmem:[%s20 + $0x4] sm:$0xf]
      %v2515 = vld [vmem:[%s20 + $0x8] sm:$0xf]
      %v2516 = vld [vmem:[%s20 + $0xc] sm:$0xf]
      %v2517 = vld [vmem:[%s20 + $0x10] sm:$0xf]
      %v2518 = vld [vmem:[%s20 + $0x14] sm:$0xf]
      %v2519 = vld [vmem:[%s20 + $0x18] sm:$0xf]
      %v2520 = vld [vmem:[%s20 + $0x1c] sm:$0xf]
      %v2521 = vld [vmem:[%s20 + $0x20] sm:$0xf]
      %v2522 = vld [vmem:[%s20 + $0x24] sm:$0xf]
      %v2523 = vld [vmem:[%s20 + $0x28] sm:$0xf]
      %v2524 = vld [vmem:[%s20 + $0x2c] sm:$0xf]
      %v2525 = vld [vmem:[%s20 + $0x30] sm:$0xf]
      %v2526 = vld [vmem:[%s20 + $0x34] sm:$0xf]
      %v2527 = vld [vmem:[%s20 + $0x38] sm:$0xf]
      %v2528 = vld [vmem:[%s20 + $0x3c] sm:$0xf]
      %v2529 = vld [vmem:[%s21] sm:$0x1]
      %v2531 = vperm.slane %v2529, 0
      %v2549 = vunpack.c.l.b16 %v2513
      %v2550 = vunpack.c.l.b16 %v2514
      %v2551 = vunpack.c.l.b16 %v2515
      %v2552 = vunpack.c.l.b16 %v2516
      %v2553 = vunpack.c.l.b16 %v2517
      %v2554 = vunpack.c.l.b16 %v2518
      %v2555 = vunpack.c.l.b16 %v2519
      %v2556 = vunpack.c.l.b16 %v2520
      %v2557 = vunpack.c.l.b16 %v2521
      %v2558 = vunpack.c.l.b16 %v2522
      %v2559 = vunpack.c.l.b16 %v2523
      %v2560 = vunpack.c.l.b16 %v2524
      %v2561 = vunpack.c.l.b16 %v2525
      %v2562 = vunpack.c.l.b16 %v2526
      %v2563 = vunpack.c.l.b16 %v2527
      %v2564 = vunpack.c.l.b16 %v2528
      %v2565 = vpack.c.b16 %v2550, %v2549
      %v2566 = vpack.c.b16 %v2552, %v2551
      %v2567 = vpack.c.b16 %v2554, %v2553
      %v2568 = vpack.c.b16 %v2556, %v2555
      %v2569 = vpack.c.b16 %v2558, %v2557
      %v2570 = vpack.c.b16 %v2560, %v2559
      %v2571 = vpack.c.b16 %v2562, %v2561
      %v2572 = vpack.c.b16 %v2564, %v2563
      %2581 = vmatpush.bf16.msra.mxu0 %v2572
      %2582 = vmatpush.bf16.msra.mxu0 %v2571
      %2583 = vmatpush.bf16.msra.mxu0 %v2570
      %2584 = vmatpush.bf16.msra.mxu0 %v2569
      %2585 = vmatpush.bf16.msra.mxu0 %v2568
      %2586 = vmatpush.bf16.msra.mxu0 %v2567
      %2587 = vmatpush.bf16.msra.mxu0 %v2566
      %2588 = vmatpush.bf16.msra.mxu0 %v2565
      %2589 = vmatmul.bf16.gmra.mxu0 %v2512
      %v2590 = vpop.f32.mrf.mxu0
      %v2591 = vadd.f32 %v2531, %v2590
      %v2592 = vpop.f32.mrf.mxu0
      %2593 = vdwg.mxu0
      %v2594 = vadd.f32 %v2457, %v2591
      %v2595 = vld [vmem:[%s26] sm:$0x1]
      %v2596 = vld [vmem:[%s27] sm:$0x1]
      %v2597 = vsel %vm996, %v2594, 0.0
      %2598 = vadd.xlane.f32.xlu0 %v2597
      %v2599 = vpop.xlane.xlu0 %2598
      %v2600 = vmul.f32 %v2599, %v1864
      %v2601 = vsub.f32 %v2594, %v2600
      %v2602 = vmul.f32 %v2601, %v2601
      %v2603 = vsel %vm996, %v2602, 0.0
      %2604 = vadd.xlane.f32.xlu0 %v2603
      %v2605 = vpop.xlane.xlu0 %2604
      %v2606 = vmul.f32 %v2605, %v1864
      %v2607 = vadd.f32 %v2606, 1e-05
      %v2608 = vrsqrt.pop %v2607
      %v2609 = vmul.f32 %v2608, %v2607
      %v2610 = vmul.f32 %v2609, %v2608
      %v2611 = vmul.f32 0.5, %v2610
      %v2612 = vsub.f32 1.5, %v2611
      %v2613 = vmul.f32 %v2608, %v2612
      %vm2614 = vweird.f32 %v2607
      %vm2615 = vweird.f32 %v2608
      %vm2616 = vmor %vm2614, %vm2615
      %v2617 = vsel %vm2616, %v2608, %v2613
      %v2618 = vmul.f32 %v2601, %v2617
      %v2620 = vperm.slane %v2595, 0
      %v2622 = vmul.f32 %v2618, %v2620
      %v2624 = vperm.slane %v2596, 0
      %v2626 = vadd.f32 %v2622, %v2624
      %2627 = vst.msk [vmem:[%s903] sm:$0xff] %vm996, %v2626
      %s2628 = sadd.s32 %s44, 1
      %p2629 = scmp.lt.s32.totalorder %s2628, 8
      // Predicated region
      $region141: #{imitator_forward.4} parent=131 // pred_check
        %p2630 = pneg %p2629
      $region142: #{imitator_forward.4} parent=131 // pred_check_branch
        %2632 = sbr.rel (%p2630) target = $region144
      $region143: #{imitator_forward.4} parent=131 // pred_region
        %s2633 = scalar_lea.vmem %s903, %s44
        %v2634 = vld [vmem:[%s2633] sm:$0x1]
        %s2635 = scalar_lea.vmem [#allocation2], %s2628
        %vm2636 = vcmask 516096
        %2637 = vst.msk [vmem:[%s2635] sm:$0x1] %vm2636, %v2634
      $region144: #{imitator_forward.4} parent=131 // pred_fallthru
        _
      %p2638 = scmp.lt.s32.totalorder %s43, 1
      %s2639 = scalar_select %p2638, %s43, 1
      %s2640 = smul.addr %s2639, 8
      %s2641 = scalar_lea.vmem %s28, %s2640
      // Predicated region
      $region145: #{imitator_forward.4} parent=131 // pred_check
        %p2642 = pneg %p677
      $region146: #{imitator_forward.4} parent=131 // pred_check_branch
        %2644 = sbr.rel (%p2642) target = $region148
      $region147: #{imitator_forward.4} parent=131 // pred_region
        _
      $region148: #{imitator_forward.4} parent=131 // pred_fallthru
        _
    $region132: #{imitator_forward.4} parent=5 // pred_fallthru
      _
    %p2645 = scmp.le.s32.totalorder 2, %s34
    // Predicated region
    $region149: #{imitator_forward.4} parent=5 // pred_check
      %p2646 = pneg %p2645
    $region150: #{imitator_forward.4} parent=5 // pred_check_branch
      %2648 = sbr.rel (%p2646) target = $region152
    $region151: #{imitator_forward.4} parent=5 // pred_region
      %s2649 = ssub.s32 %s34, 2
      // Predicated region
      $region153: #{imitator_forward.4} parent=151 // pred_check
        %p2650 = pneg %p683
      $region154: #{imitator_forward.4} parent=151 // pred_check_branch
        %2652 = sbr.rel (%p2650) target = $region156
      $region155: #{imitator_forward.4} parent=151 // pred_region
        %p2653 = scmp.lt.s32.totalorder %s45, 1
        %s2654 = scalar_select %p2653, %s45, 1
        %s2655 = smul.addr %s2654, 8
        %s2656 = scalar_lea.vmem %s28, %s2655
      $region156: #{imitator_forward.4} parent=151 // pred_fallthru
        _
    $region152: #{imitator_forward.4} parent=5 // pred_fallthru
      _
  $region6: #{imitator_forward.4} parent=0 // loop_footer
    %s38 = sadd.s32 1, %s34
  $region7: #{imitator_forward.4} parent=0 // loop_footer_branch
    %33 = sbr.rel target = $region3
  $region8: #{imitator_forward.4} parent=0 // loop_exit
    _

</llo_original>
